<compile_context>
chip_gen: v6e
topology: v6e:2x2x1
jax: 0.10.0
libtpu: 0.0.40
codegen_flags: <defaults>
</compile_context>

<pallas_src>
import functools

import numpy as np
import jax
import jax.numpy as jnp
from jax import lax
from jax.experimental import pallas as pl
from jax.experimental.pallas import tpu as pltpu

LEAKY_SLOPE = 0.01


# ----------------------------------------------------------------------------
# Pallas kernels
# ----------------------------------------------------------------------------
def _mm_bias_act_kernel(x_ref, w_ref, b_ref, o_ref, *, act):
    """One M-tile of  out = act(x @ w + b).  bf16 operands, f32 accumulate."""
    acc = jnp.dot(x_ref[...], w_ref[...], preferred_element_type=jnp.float32)
    acc = acc + b_ref[...]
    if act == "leaky":
        acc = jnp.where(acc >= 0, acc, LEAKY_SLOPE * acc)
    elif act == "sigmoid":
        acc = jax.nn.sigmoid(acc)
    o_ref[...] = acc.astype(o_ref.dtype)


def _mm_kernel(x_ref, w_ref, o_ref):
    """One M-tile of  out = x @ w  (no bias / activation)."""
    o_ref[...] = jnp.dot(x_ref[...], w_ref[...],
                         preferred_element_type=jnp.float32).astype(o_ref.dtype)


def _enc3_reparam_kernel(x_ref, wmu_ref, wlv_ref, bmu_ref, blv_ref, eps_ref,
                         mu_ref, lv_ref, z_ref):
    """Fused last encoder conv (mu / logvar heads) + VAE reparametrization."""
    x = x_ref[...]
    mu = jnp.dot(x, wmu_ref[...], preferred_element_type=jnp.float32) + bmu_ref[...]
    lv = jnp.dot(x, wlv_ref[...], preferred_element_type=jnp.float32) + blv_ref[...]
    mu_ref[...] = mu
    lv_ref[...] = lv
    z_ref[...] = eps_ref[...] * jnp.exp(0.5 * lv) + mu


# ----------------------------------------------------------------------------
# Pallas wrappers
# ----------------------------------------------------------------------------
def _pick_tm(M):
    # Small problems: one whole-array block (no per-step overhead, no padding).
    # Larger ones: 128-row steps so a "parallel" grid can shard across cores.
    return M if M <= 256 else 128


def pallas_matmul_bias_act(x, w, b, act="none", out_dtype=jnp.float32):
    """act(x @ w + b), tiled over M.  MXU operands fed as bf16."""
    M, K = x.shape
    N = w.shape[1]
    tm = _pick_tm(M)
    kern = functools.partial(_mm_bias_act_kernel, act=act)
    return pl.pallas_call(
        kern,
        out_shape=jax.ShapeDtypeStruct((M, N), out_dtype),
        grid=(pl.cdiv(M, tm),),
        in_specs=[
            pl.BlockSpec((tm, K), lambda i: (i, 0)),
            pl.BlockSpec((K, N), lambda i: (0, 0)),
            pl.BlockSpec((1, N), lambda i: (0, 0)),
        ],
        out_specs=pl.BlockSpec((tm, N), lambda i: (i, 0)),
        compiler_params=pltpu.CompilerParams(dimension_semantics=("parallel",)),
    )(x.astype(jnp.bfloat16), w.astype(jnp.bfloat16),
      b.reshape(1, N).astype(jnp.float32))


def pallas_matmul(x, w, out_dtype=jnp.float32):
    """x @ w, tiled over M.  MXU operands fed as bf16, f32 result."""
    M, K = x.shape
    N = w.shape[1]
    tm = _pick_tm(M)
    return pl.pallas_call(
        _mm_kernel,
        out_shape=jax.ShapeDtypeStruct((M, N), out_dtype),
        grid=(pl.cdiv(M, tm),),
        in_specs=[
            pl.BlockSpec((tm, K), lambda i: (i, 0)),
            pl.BlockSpec((K, N), lambda i: (0, 0)),
        ],
        out_specs=pl.BlockSpec((tm, N), lambda i: (i, 0)),
        compiler_params=pltpu.CompilerParams(dimension_semantics=("parallel",)),
    )(x.astype(jnp.bfloat16), w.astype(jnp.bfloat16))


def pallas_conv3_reparam(patches, wm, b, eps, half, out_dtype=jnp.float32):
    """mu = p@wm[:,:half]+b[:half]; logvar likewise; z = eps*exp(.5*lv)+mu."""
    M, K = patches.shape
    return pl.pallas_call(
        _enc3_reparam_kernel,
        out_shape=(jax.ShapeDtypeStruct((M, half), out_dtype),) * 3,
        grid=(1,),
        in_specs=[
            pl.BlockSpec((M, K), lambda i: (0, 0)),
            pl.BlockSpec((K, half), lambda i: (0, 0)),
            pl.BlockSpec((K, half), lambda i: (0, 0)),
            pl.BlockSpec((1, half), lambda i: (0, 0)),
            pl.BlockSpec((1, half), lambda i: (0, 0)),
            pl.BlockSpec((M, half), lambda i: (0, 0)),
        ],
        out_specs=(pl.BlockSpec((M, half), lambda i: (0, 0)),) * 3,
        compiler_params=pltpu.CompilerParams(dimension_semantics=("arbitrary",)),
    )(patches.astype(jnp.bfloat16),
      wm[:, :half].astype(jnp.bfloat16), wm[:, half:].astype(jnp.bfloat16),
      b[:half].reshape(1, half).astype(jnp.float32),
      b[half:].reshape(1, half).astype(jnp.float32),
      eps.astype(jnp.float32))


# ----------------------------------------------------------------------------
# Plain-JAX glue (NHWC throughout): im2col, deconv col2im assembly, crop, init
# ----------------------------------------------------------------------------
def _im2col_nhwc(x, kh, kw, stride, padding):
    """x:(B,H,W,C) -> patches:(B*oh*ow, kh*kw*C) with K ordered as (ki,kj,c)."""
    if padding > 0:
        x = jnp.pad(x, ((0, 0), (padding, padding), (padding, padding), (0, 0)))
    B, H, W, C = x.shape
    oh = (H - kh) // stride + 1
    ow = (W - kw) // stride + 1
    cols = []
    for i in range(kh):
        for j in range(kw):
            cols.append(x[:, i:i + stride * oh:stride, j:j + stride * ow:stride, :])
    patches = jnp.stack(cols, axis=3)            # (B, oh, ow, kh*kw, C)
    return patches.reshape(B * oh * ow, kh * kw * C), oh, ow


def conv2d_nhwc(x, w, b, stride, padding, act):
    """PyTorch-semantics Conv2d on NHWC activations.  w:(cout,cin,kh,kw)."""
    cout, cin, kh, kw = w.shape
    B = x.shape[0]
    patches, oh, ow = _im2col_nhwc(x.astype(jnp.bfloat16), kh, kw, stride, padding)
    wm = jnp.transpose(w, (2, 3, 1, 0)).reshape(kh * kw * cin, cout)
    out = pallas_matmul_bias_act(patches, wm, b, act=act)
    return out.reshape(B, oh, ow, cout)


def conv2d_reparam_nhwc(x, w, b, stride, padding, eps):
    """Last encoder conv fused with the VAE reparametrization (one kernel)."""
    cout, cin, kh, kw = w.shape
    half = cout // 2
    B = x.shape[0]
    patches, oh, ow = _im2col_nhwc(x.astype(jnp.bfloat16), kh, kw, stride, padding)
    wm = jnp.transpose(w, (2, 3, 1, 0)).reshape(kh * kw * cin, cout)
    mu, logvar, z = pallas_conv3_reparam(patches, wm, b, eps, half)
    shape = (B, oh, ow, half)
    return mu.reshape(shape), logvar.reshape(shape), z.reshape(shape)


def _interleave_phases(phases, axis, total):
    """Merge per-phase (stride-decimated) arrays back into one axis."""
    s = len(phases)
    if s == 1:
        return phases[0]
    n0 = phases[0].shape[axis]
    padded = []
    for p in phases:
        d = n0 - p.shape[axis]
        if d > 0:
            pw = [(0, 0)] * p.ndim
            pw[axis] = (0, d)
            p = jnp.pad(p, pw)
        padded.append(p)
    stacked = jnp.stack(padded, axis=axis + 1)       # (..., n0, s, ...)
    shape = list(phases[0].shape)
    shape[axis] = n0 * s
    out = stacked.reshape(shape)
    return lax.slice_in_dim(out, 0, total, axis=axis)


def _deconv_col2im(contrib, bias, stride, act):
    """contrib:(B,ih,iw,kh,kw,cout) -> ConvTranspose2d output (B,OH,OW,cout)."""
    B, ih, iw, kh, kw, cout = contrib.shape
    OH = (ih - 1) * stride + kh
    OW = (iw - 1) * stride + kw
    row_phases = []
    for py in range(stride):
        ph_h = len(range(py, OH, stride))
        col_phases = []
        for px in range(stride):
            ph_w = len(range(px, OW, stride))
            acc = jnp.zeros((B, ph_h, ph_w, cout), jnp.float32)
            for ky in range(py, kh, stride):
                m = (ky - py) // stride
                for kx in range(px, kw, stride):
                    n = (kx - px) // stride
                    tap = contrib[:, :, :, ky, kx, :]
                    tap = jnp.pad(tap, ((0, 0), (m, ph_h - ih - m),
                                        (n, ph_w - iw - n), (0, 0)))
                    acc = acc + tap
            col_phases.append(acc)
        row_phases.append(_interleave_phases(col_phases, axis=2, total=OW))
    out = _interleave_phases(row_phases, axis=1, total=OH)
    out = out + bias.reshape(1, 1, 1, cout).astype(jnp.float32)
    if act == "leaky":
        out = jnp.where(out >= 0, out, LEAKY_SLOPE * out)
    elif act == "sigmoid":
        out = jax.nn.sigmoid(out)
    return out


def conv_transpose2d_nhwc(x, w, b, stride, act):
    """PyTorch-semantics ConvTranspose2d (padding=0) on NHWC activations.

    One dense (B*ih*iw, cin) x (cin, kh*kw*cout) Pallas matmul (no dilated
    zeros, no im2col) followed by a cheap XLA col2im phase assembly.
    """
    cin, cout, kh, kw = w.shape
    B, ih, iw, _ = x.shape
    w2 = jnp.transpose(w, (0, 2, 3, 1)).reshape(cin, kh * kw * cout)
    contrib = pallas_matmul(x.reshape(B * ih * iw, cin), w2)
    contrib = contrib.reshape(B, ih, iw, kh, kw, cout)
    return _deconv_col2im(contrib, b, stride, act)


def crop_img_nhwc(x, size):
    """crop_img_tensor / _pad_crop_img(mode='crop') semantics, NHWC layout."""
    h, w = x.shape[1], x.shape[2]
    assert h >= size[0] and w >= size[1]
    dr, dc = h - size[0], w - size[1]
    dr1, dc1 = dr // 2, dc // 2
    return x[:, dr1:dr1 + size[0], dc1:dc1 + size[1], :]


def _uniform_init(key, shape, fan_in):
    bound = 1.0 / np.sqrt(fan_in)
    return jax.random.uniform(key, shape, minval=-bound, maxval=bound,
                              dtype=jnp.float32)


def init_params(key, latent):
    channels = 64
    ks = jax.random.split(key, 12)
    p = {}
    # encoder (Conv2d weights are (cout, cin, kh, kw))
    p["enc1_w"] = _uniform_init(ks[0], (channels, 1, 4, 4), 1 * 4 * 4)
    p["enc1_b"] = _uniform_init(ks[1], (channels,), 1 * 4 * 4)
    p["enc2_w"] = _uniform_init(ks[2], (channels, channels, 4, 4), channels * 4 * 4)
    p["enc2_b"] = _uniform_init(ks[3], (channels,), channels * 4 * 4)
    p["enc3_w"] = _uniform_init(ks[4], (latent, channels, 3, 3), channels * 3 * 3)
    p["enc3_b"] = _uniform_init(ks[5], (latent,), channels * 3 * 3)
    # decoder (ConvTranspose2d weights are (cin, cout, kh, kw))
    half = latent // 2
    p["dec1_w"] = _uniform_init(ks[6], (half, channels, 3, 3), channels * 3 * 3)
    p["dec1_b"] = _uniform_init(ks[7], (channels,), channels * 3 * 3)
    p["dec2_w"] = _uniform_init(ks[8], (channels, channels, 4, 4), channels * 4 * 4)
    p["dec2_b"] = _uniform_init(ks[9], (channels,), channels * 4 * 4)
    p["dec3_w"] = _uniform_init(ks[10], (channels, 1, 4, 4), 1 * 4 * 4)
    p["dec3_b"] = _uniform_init(ks[11], (1,), 1 * 4 * 4)
    return p


# ----------------------------------------------------------------------------
# Forward pass (== Norm_3d_Conv_15.forward)
# ----------------------------------------------------------------------------
def forward(params, x, eps_key, image_size):
    B = x.shape[0]
    # NCHW -> NHWC is a free reshape here because the input has one channel.
    h = x.reshape(B, x.shape[2], x.shape[3], 1)

    # --- encode (activations stay NHWC end-to-end) ---
    h = conv2d_nhwc(h, params["enc1_w"], params["enc1_b"], stride=2, padding=0,
                    act="leaky")
    # TODO(synk): block(channels, dropout=...) treated as identity (see header).
    h = conv2d_nhwc(h, params["enc2_w"], params["enc2_b"], stride=2, padding=0,
                    act="leaky")

    # --- enc3 + reparametrize fused into a single Pallas kernel ---
    latent = params["enc3_w"].shape[0]
    oh3 = (h.shape[1] + 2 * 1 - 3) // 2 + 1
    ow3 = (h.shape[2] + 2 * 1 - 3) // 2 + 1
    eps = jax.random.normal(eps_key, (B * oh3 * ow3, latent // 2),
                            dtype=jnp.float32)
    mu_nhwc, logvar_nhwc, z = conv2d_reparam_nhwc(
        h, params["enc3_w"], params["enc3_b"], stride=2, padding=1, eps=eps)
    mu = jnp.transpose(mu_nhwc, (0, 3, 1, 2))        # NCHW, as PyTorch returns
    logvar = jnp.transpose(logvar_nhwc, (0, 3, 1, 2))

    # --- decode (NHWC, no zero-dilation, no im2col) ---
    d = conv_transpose2d_nhwc(z, params["dec1_w"], params["dec1_b"], stride=2,
                              act="leaky")
    d = conv_transpose2d_nhwc(d, params["dec2_w"], params["dec2_b"], stride=2,
                              act="leaky")
    # sigmoid is elementwise -> applying it before the crop is equivalent
    d = conv_transpose2d_nhwc(d, params["dec3_w"], params["dec3_b"], stride=2,
                              act="sigmoid")
    d = crop_img_nhwc(d, (image_size, image_size))
    # NHWC -> NCHW free reshape (single output channel).
    res = d.reshape(B, 1, image_size, image_size)
    return res, mu, logvar


if __name__ == "__main__":
    latent = 8          # -> mu/logvar have latent//2 = 4 channels
    image_size = 32     # encoder spatial path 32 -> 15 -> 6 -> 3
    batch = 2

    key = jax.random.PRNGKey(0)
    k_param, k_x, k_eps = jax.random.split(key, 3)

    params = init_params(k_param, latent)
    x = jax.random.normal(k_x, (batch, 1, image_size, image_size),
                          dtype=jnp.float32)

    fwd = jax.jit(functools.partial(forward, image_size=image_size))
    res, mu, logvar = fwd(params, x, k_eps)
    jax.block_until_ready((res, mu, logvar))

    assert res.shape == (batch, 1, image_size, image_size)
    assert mu.shape == (batch, latent // 2, 3, 3)
    assert logvar.shape == (batch, latent // 2, 3, 3)
    assert bool(jnp.all(jnp.isfinite(res)))
    assert bool(jnp.all(jnp.isfinite(mu))) and bool(jnp.all(jnp.isfinite(logvar)))
    print("KERNEL_OK")
</pallas_src>

<mosaic_0001>
module attributes {stable_mosaic.version = 11 : i64} {
  func.func @_mm_bias_act_kernel(%arg0: i32, %arg1: memref<128x16xbf16, #tpu.memory_space<vmem>>, %arg2: memref<16x64xbf16, #tpu.memory_space<vmem>>, %arg3: memref<1x64xf32, #tpu.memory_space<vmem>>, %arg4: memref<128x64xf32, #tpu.memory_space<vmem>>) attributes {dimension_semantics = [#tpu.dimension_semantics<parallel>], iteration_bounds = array<i64: 4>, scalar_prefetch = 0 : i64, scratch_operands = 0 : i64, tpu.core_type = #tpu.core_type<tc>, window_params = [{transform_indices = @transform_0, window_bounds = array<i64: 128, 16>}, {pipeline_mode = #tpu.pipeline_mode<synchronous>, transform_indices = @transform_1, window_bounds = array<i64: 16, 64>}, {pipeline_mode = #tpu.pipeline_mode<synchronous>, transform_indices = @transform_2, window_bounds = array<i64: 1, 64>}, {transform_indices = @transform_3, window_bounds = array<i64: 128, 64>}]} {
    %c0 = arith.constant 0 : index
    %c0_0 = arith.constant 0 : index
    %0 = vector.load %arg1[%c0, %c0_0] : memref<128x16xbf16, #tpu.memory_space<vmem>>, vector<128x16xbf16>
    %c0_1 = arith.constant 0 : index
    %c0_2 = arith.constant 0 : index
    %1 = vector.load %arg2[%c0_1, %c0_2] : memref<16x64xbf16, #tpu.memory_space<vmem>>, vector<16x64xbf16>
    %cst = arith.constant dense<0.000000e+00> : vector<128x64xf32>
    %2 = tpu.matmul %0, %1, %cst {dimension_numbers = #tpu.dot_dimension_numbers<[1], [0], [0], [1], [0, 0, 1, 1], [], []>} : vector<128x16xbf16>, vector<16x64xbf16>, vector<128x64xf32> -> vector<128x64xf32>
    %c0_3 = arith.constant 0 : index
    %c0_4 = arith.constant 0 : index
    %3 = vector.load %arg3[%c0_3, %c0_4] : memref<1x64xf32, #tpu.memory_space<vmem>>, vector<1x64xf32>
    %4 = vector.broadcast %3 : vector<1x64xf32> to vector<128x64xf32>
    %5 = arith.addf %2, %4 : vector<128x64xf32>
    %cst_5 = arith.constant 0.000000e+00 : f32
    %6 = vector.broadcast %cst_5 : f32 to vector<128x64xf32>
    %7 = arith.cmpf oge, %5, %6 : vector<128x64xf32>
    %cst_6 = arith.constant 0.00999999977 : f32
    %8 = vector.broadcast %cst_6 : f32 to vector<128x64xf32>
    %9 = arith.mulf %8, %5 : vector<128x64xf32>
    %10 = arith.select %7, %5, %9 : vector<128x64xi1>, vector<128x64xf32>
    %c0_7 = arith.constant 0 : index
    %c0_8 = arith.constant 0 : index
    %11 = vector.load %arg4[%c0_7, %c0_8] : memref<128x64xf32, #tpu.memory_space<vmem>>, vector<128x64xf32>
    tpu.vector_store %arg4[%c0_7, %c0_8], %10 {strides = array<i32>} : memref<128x64xf32, #tpu.memory_space<vmem>>, vector<128x64xf32>,
    return
  }
  func.func @transform_0(%arg0: i32) -> (i32, i32) {
    %c0_i32 = arith.constant 0 : i32
    %c0_i32_0 = arith.constant 0 : i32
    return %arg0, %c0_i32 : i32, i32
  }
  func.func @transform_1(%arg0: i32) -> (i32, i32) {
    %c0_i32 = arith.constant 0 : i32
    %c0_i32_0 = arith.constant 0 : i32
    %c0_i32_1 = arith.constant 0 : i32
    return %c0_i32, %c0_i32_0 : i32, i32
  }
  func.func @transform_2(%arg0: i32) -> (i32, i32) {
    %c0_i32 = arith.constant 0 : i32
    %c0_i32_0 = arith.constant 0 : i32
    %c0_i32_1 = arith.constant 0 : i32
    return %c0_i32, %c0_i32_0 : i32, i32
  }
  func.func @transform_3(%arg0: i32) -> (i32, i32) {
    %c0_i32 = arith.constant 0 : i32
    %c0_i32_0 = arith.constant 0 : i32
    return %arg0, %c0_i32 : i32, i32
  }
}

module attributes {stable_mosaic.version = 11 : i64} {
  func.func @_mm_bias_act_kernel(%arg0: i32, %arg1: memref<72x1024xbf16, #tpu.memory_space<vmem>>, %arg2: memref<1024x64xbf16, #tpu.memory_space<vmem>>, %arg3: memref<1x64xf32, #tpu.memory_space<vmem>>, %arg4: memref<72x64xf32, #tpu.memory_space<vmem>>) attributes {dimension_semantics = [#tpu.dimension_semantics<parallel>], iteration_bounds = array<i64: 1>, scalar_prefetch = 0 : i64, scratch_operands = 0 : i64, tpu.core_type = #tpu.core_type<tc>, window_params = [{transform_indices = @transform_0, window_bounds = array<i64: 72, 1024>}, {pipeline_mode = #tpu.pipeline_mode<synchronous>, transform_indices = @transform_1, window_bounds = array<i64: 1024, 64>}, {pipeline_mode = #tpu.pipeline_mode<synchronous>, transform_indices = @transform_2, window_bounds = array<i64: 1, 64>}, {transform_indices = @transform_3, window_bounds = array<i64: 72, 64>}]} {
    %c0 = arith.constant 0 : index
    %c0_0 = arith.constant 0 : index
    %0 = vector.load %arg1[%c0, %c0_0] : memref<72x1024xbf16, #tpu.memory_space<vmem>>, vector<72x1024xbf16>
    %c0_1 = arith.constant 0 : index
    %c0_2 = arith.constant 0 : index
    %1 = vector.load %arg2[%c0_1, %c0_2] : memref<1024x64xbf16, #tpu.memory_space<vmem>>, vector<1024x64xbf16>
    %cst = arith.constant dense<0.000000e+00> : vector<72x64xf32>
    %2 = tpu.matmul %0, %1, %cst {dimension_numbers = #tpu.dot_dimension_numbers<[1], [0], [0], [1], [0, 0, 1, 1], [], []>} : vector<72x1024xbf16>, vector<1024x64xbf16>, vector<72x64xf32> -> vector<72x64xf32>
    %c0_3 = arith.constant 0 : index
    %c0_4 = arith.constant 0 : index
    %3 = vector.load %arg3[%c0_3, %c0_4] : memref<1x64xf32, #tpu.memory_space<vmem>>, vector<1x64xf32>
    %4 = vector.broadcast %3 : vector<1x64xf32> to vector<72x64xf32>
    %5 = arith.addf %2, %4 : vector<72x64xf32>
    %cst_5 = arith.constant 0.000000e+00 : f32
    %6 = vector.broadcast %cst_5 : f32 to vector<72x64xf32>
    %7 = arith.cmpf oge, %5, %6 : vector<72x64xf32>
    %cst_6 = arith.constant 0.00999999977 : f32
    %8 = vector.broadcast %cst_6 : f32 to vector<72x64xf32>
    %9 = arith.mulf %8, %5 : vector<72x64xf32>
    %10 = arith.select %7, %5, %9 : vector<72x64xi1>, vector<72x64xf32>
    %c0_7 = arith.constant 0 : index
    %c0_8 = arith.constant 0 : index
    %11 = vector.load %arg4[%c0_7, %c0_8] : memref<72x64xf32, #tpu.memory_space<vmem>>, vector<72x64xf32>
    tpu.vector_store %arg4[%c0_7, %c0_8], %10 {strides = array<i32>} : memref<72x64xf32, #tpu.memory_space<vmem>>, vector<72x64xf32>,
    return
  }
  func.func @transform_0(%arg0: i32) -> (i32, i32) {
    %c0_i32 = arith.constant 0 : i32
    %c0_i32_0 = arith.constant 0 : i32
    return %arg0, %c0_i32 : i32, i32
  }
  func.func @transform_1(%arg0: i32) -> (i32, i32) {
    %c0_i32 = arith.constant 0 : i32
    %c0_i32_0 = arith.constant 0 : i32
    %c0_i32_1 = arith.constant 0 : i32
    return %c0_i32, %c0_i32_0 : i32, i32
  }
  func.func @transform_2(%arg0: i32) -> (i32, i32) {
    %c0_i32 = arith.constant 0 : i32
    %c0_i32_0 = arith.constant 0 : i32
    %c0_i32_1 = arith.constant 0 : i32
    return %c0_i32, %c0_i32_0 : i32, i32
  }
  func.func @transform_3(%arg0: i32) -> (i32, i32) {
    %c0_i32 = arith.constant 0 : i32
    %c0_i32_0 = arith.constant 0 : i32
    return %arg0, %c0_i32 : i32, i32
  }
}

module attributes {stable_mosaic.version = 11 : i64} {
  func.func @_enc3_reparam_kernel(%arg0: i32, %arg1: memref<18x576xbf16, #tpu.memory_space<vmem>>, %arg2: memref<576x4xbf16, #tpu.memory_space<vmem>>, %arg3: memref<576x4xbf16, #tpu.memory_space<vmem>>, %arg4: memref<1x4xf32, #tpu.memory_space<vmem>>, %arg5: memref<1x4xf32, #tpu.memory_space<vmem>>, %arg6: memref<18x4xf32, #tpu.memory_space<vmem>>, %arg7: memref<18x4xf32, #tpu.memory_space<vmem>>, %arg8: memref<18x4xf32, #tpu.memory_space<vmem>>, %arg9: memref<18x4xf32, #tpu.memory_space<vmem>>) attributes {dimension_semantics = [#tpu.dimension_semantics<arbitrary>], iteration_bounds = array<i64: 1>, scalar_prefetch = 0 : i64, scratch_operands = 0 : i64, tpu.core_type = #tpu.core_type<tc>, window_params = [{pipeline_mode = #tpu.pipeline_mode<synchronous>, transform_indices = @transform_0, window_bounds = array<i64: 18, 576>}, {pipeline_mode = #tpu.pipeline_mode<synchronous>, transform_indices = @transform_1, window_bounds = array<i64: 576, 4>}, {pipeline_mode = #tpu.pipeline_mode<synchronous>, transform_indices = @transform_2, window_bounds = array<i64: 576, 4>}, {pipeline_mode = #tpu.pipeline_mode<synchronous>, transform_indices = @transform_3, window_bounds = array<i64: 1, 4>}, {pipeline_mode = #tpu.pipeline_mode<synchronous>, transform_indices = @transform_4, window_bounds = array<i64: 1, 4>}, {pipeline_mode = #tpu.pipeline_mode<synchronous>, transform_indices = @transform_5, window_bounds = array<i64: 18, 4>}, {pipeline_mode = #tpu.pipeline_mode<synchronous>, transform_indices = @transform_6, window_bounds = array<i64: 18, 4>}, {pipeline_mode = #tpu.pipeline_mode<synchronous>, transform_indices = @transform_7, window_bounds = array<i64: 18, 4>}, {pipeline_mode = #tpu.pipeline_mode<synchronous>, transform_indices = @transform_8, window_bounds = array<i64: 18, 4>}]} {
    %c0 = arith.constant 0 : index
    %c0_0 = arith.constant 0 : index
    %0 = vector.load %arg1[%c0, %c0_0] : memref<18x576xbf16, #tpu.memory_space<vmem>>, vector<18x576xbf16>
    %c0_1 = arith.constant 0 : index
    %c0_2 = arith.constant 0 : index
    %1 = vector.load %arg2[%c0_1, %c0_2] : memref<576x4xbf16, #tpu.memory_space<vmem>>, vector<576x4xbf16>
    %cst = arith.constant dense<0.000000e+00> : vector<18x4xf32>
    %2 = tpu.matmul %0, %1, %cst {dimension_numbers = #tpu.dot_dimension_numbers<[1], [0], [0], [1], [0, 0, 1, 1], [], []>} : vector<18x576xbf16>, vector<576x4xbf16>, vector<18x4xf32> -> vector<18x4xf32>
    %c0_3 = arith.constant 0 : index
    %c0_4 = arith.constant 0 : index
    %3 = vector.load %arg4[%c0_3, %c0_4] : memref<1x4xf32, #tpu.memory_space<vmem>>, vector<1x4xf32>
    %4 = vector.broadcast %3 : vector<1x4xf32> to vector<18x4xf32>
    %5 = arith.addf %2, %4 : vector<18x4xf32>
    %c0_5 = arith.constant 0 : index
    %c0_6 = arith.constant 0 : index
    %6 = vector.load %arg3[%c0_5, %c0_6] : memref<576x4xbf16, #tpu.memory_space<vmem>>, vector<576x4xbf16>
    %cst_7 = arith.constant dense<0.000000e+00> : vector<18x4xf32>
    %7 = tpu.matmul %0, %6, %cst_7 {dimension_numbers = #tpu.dot_dimension_numbers<[1], [0], [0], [1], [0, 0, 1, 1], [], []>} : vector<18x576xbf16>, vector<576x4xbf16>, vector<18x4xf32> -> vector<18x4xf32>
    %c0_8 = arith.constant 0 : index
    %c0_9 = arith.constant 0 : index
    %8 = vector.load %arg5[%c0_8, %c0_9] : memref<1x4xf32, #tpu.memory_space<vmem>>, vector<1x4xf32>
    %9 = vector.broadcast %8 : vector<1x4xf32> to vector<18x4xf32>
    %10 = arith.addf %7, %9 : vector<18x4xf32>
    %c0_10 = arith.constant 0 : index
    %c0_11 = arith.constant 0 : index
    %11 = vector.load %arg7[%c0_10, %c0_11] : memref<18x4xf32, #tpu.memory_space<vmem>>, vector<18x4xf32>
    tpu.vector_store %arg7[%c0_10, %c0_11], %5 {strides = array<i32>} : memref<18x4xf32, #tpu.memory_space<vmem>>, vector<18x4xf32>,
    %c0_12 = arith.constant 0 : index
    %c0_13 = arith.constant 0 : index
    %12 = vector.load %arg8[%c0_12, %c0_13] : memref<18x4xf32, #tpu.memory_space<vmem>>, vector<18x4xf32>
    tpu.vector_store %arg8[%c0_12, %c0_13], %10 {strides = array<i32>} : memref<18x4xf32, #tpu.memory_space<vmem>>, vector<18x4xf32>,
    %c0_14 = arith.constant 0 : index
    %c0_15 = arith.constant 0 : index
    %13 = vector.load %arg6[%c0_14, %c0_15] : memref<18x4xf32, #tpu.memory_space<vmem>>, vector<18x4xf32>
    %cst_16 = arith.constant 5.000000e-01 : f32
    %14 = vector.broadcast %cst_16 : f32 to vector<18x4xf32>
    %15 = arith.mulf %14, %10 : vector<18x4xf32>
    %16 = math.exp %15 : vector<18x4xf32>
    %17 = arith.mulf %13, %16 : vector<18x4xf32>
    %18 = arith.addf %17, %5 : vector<18x4xf32>
    %c0_17 = arith.constant 0 : index
    %c0_18 = arith.constant 0 : index
    %19 = vector.load %arg9[%c0_17, %c0_18] : memref<18x4xf32, #tpu.memory_space<vmem>>, vector<18x4xf32>
    tpu.vector_store %arg9[%c0_17, %c0_18], %18 {strides = array<i32>} : memref<18x4xf32, #tpu.memory_space<vmem>>, vector<18x4xf32>,
    return
  }
  func.func @transform_0(%arg0: i32) -> (i32, i32) {
    %c0_i32 = arith.constant 0 : i32
    %c0_i32_0 = arith.constant 0 : i32
    %c0_i32_1 = arith.constant 0 : i32
    return %c0_i32, %c0_i32_0 : i32, i32
  }
  func.func @transform_1(%arg0: i32) -> (i32, i32) {
    %c0_i32 = arith.constant 0 : i32
    %c0_i32_0 = arith.constant 0 : i32
    %c0_i32_1 = arith.constant 0 : i32
    return %c0_i32, %c0_i32_0 : i32, i32
  }
  func.func @transform_2(%arg0: i32) -> (i32, i32) {
    %c0_i32 = arith.constant 0 : i32
    %c0_i32_0 = arith.constant 0 : i32
    %c0_i32_1 = arith.constant 0 : i32
    return %c0_i32, %c0_i32_0 : i32, i32
  }
  func.func @transform_3(%arg0: i32) -> (i32, i32) {
    %c0_i32 = arith.constant 0 : i32
    %c0_i32_0 = arith.constant 0 : i32
    %c0_i32_1 = arith.constant 0 : i32
    return %c0_i32, %c0_i32_0 : i32, i32
  }
  func.func @transform_4(%arg0: i32) -> (i32, i32) {
    %c0_i32 = arith.constant 0 : i32
    %c0_i32_0 = arith.constant 0 : i32
    %c0_i32_1 = arith.constant 0 : i32
    return %c0_i32, %c0_i32_0 : i32, i32
  }
  func.func @transform_5(%arg0: i32) -> (i32, i32) {
    %c0_i32 = arith.constant 0 : i32
    %c0_i32_0 = arith.constant 0 : i32
    %c0_i32_1 = arith.constant 0 : i32
    return %c0_i32, %c0_i32_0 : i32, i32
  }
  func.func @transform_6(%arg0: i32) -> (i32, i32) {
    %c0_i32 = arith.constant 0 : i32
    %c0_i32_0 = arith.constant 0 : i32
    %c0_i32_1 = arith.constant 0 : i32
    return %c0_i32, %c0_i32_0 : i32, i32
  }
  func.func @transform_7(%arg0: i32) -> (i32, i32) {
    %c0_i32 = arith.constant 0 : i32
    %c0_i32_0 = arith.constant 0 : i32
    %c0_i32_1 = arith.constant 0 : i32
    return %c0_i32, %c0_i32_0 : i32, i32
  }
  func.func @transform_8(%arg0: i32) -> (i32, i32) {
    %c0_i32 = arith.constant 0 : i32
    %c0_i32_0 = arith.constant 0 : i32
    %c0_i32_1 = arith.constant 0 : i32
    return %c0_i32, %c0_i32_0 : i32, i32
  }
}

module attributes {stable_mosaic.version = 11 : i64} {
  func.func @_mm_kernel(%arg0: i32, %arg1: memref<18x4xbf16, #tpu.memory_space<vmem>>, %arg2: memref<4x576xbf16, #tpu.memory_space<vmem>>, %arg3: memref<18x576xf32, #tpu.memory_space<vmem>>) attributes {dimension_semantics = [#tpu.dimension_semantics<parallel>], iteration_bounds = array<i64: 1>, scalar_prefetch = 0 : i64, scratch_operands = 0 : i64, tpu.core_type = #tpu.core_type<tc>, window_params = [{transform_indices = @transform_0, window_bounds = array<i64: 18, 4>}, {pipeline_mode = #tpu.pipeline_mode<synchronous>, transform_indices = @transform_1, window_bounds = array<i64: 4, 576>}, {transform_indices = @transform_2, window_bounds = array<i64: 18, 576>}]} {
    %c0 = arith.constant 0 : index
    %c0_0 = arith.constant 0 : index
    %0 = vector.load %arg1[%c0, %c0_0] : memref<18x4xbf16, #tpu.memory_space<vmem>>, vector<18x4xbf16>
    %c0_1 = arith.constant 0 : index
    %c0_2 = arith.constant 0 : index
    %1 = vector.load %arg2[%c0_1, %c0_2] : memref<4x576xbf16, #tpu.memory_space<vmem>>, vector<4x576xbf16>
    %cst = arith.constant dense<0.000000e+00> : vector<18x576xf32>
    %2 = tpu.matmul %0, %1, %cst {dimension_numbers = #tpu.dot_dimension_numbers<[1], [0], [0], [1], [0, 0, 1, 1], [], []>} : vector<18x4xbf16>, vector<4x576xbf16>, vector<18x576xf32> -> vector<18x576xf32>
    %c0_3 = arith.constant 0 : index
    %c0_4 = arith.constant 0 : index
    %3 = vector.load %arg3[%c0_3, %c0_4] : memref<18x576xf32, #tpu.memory_space<vmem>>, vector<18x576xf32>
    tpu.vector_store %arg3[%c0_3, %c0_4], %2 {strides = array<i32>} : memref<18x576xf32, #tpu.memory_space<vmem>>, vector<18x576xf32>,
    return
  }
  func.func @transform_0(%arg0: i32) -> (i32, i32) {
    %c0_i32 = arith.constant 0 : i32
    %c0_i32_0 = arith.constant 0 : i32
    return %arg0, %c0_i32 : i32, i32
  }
  func.func @transform_1(%arg0: i32) -> (i32, i32) {
    %c0_i32 = arith.constant 0 : i32
    %c0_i32_0 = arith.constant 0 : i32
    %c0_i32_1 = arith.constant 0 : i32
    return %c0_i32, %c0_i32_0 : i32, i32
  }
  func.func @transform_2(%arg0: i32) -> (i32, i32) {
    %c0_i32 = arith.constant 0 : i32
    %c0_i32_0 = arith.constant 0 : i32
    return %arg0, %c0_i32 : i32, i32
  }
}

module attributes {stable_mosaic.version = 11 : i64} {
  func.func @_mm_kernel(%arg0: i32, %arg1: memref<98x64xbf16, #tpu.memory_space<vmem>>, %arg2: memref<64x1024xbf16, #tpu.memory_space<vmem>>, %arg3: memref<98x1024xf32, #tpu.memory_space<vmem>>) attributes {dimension_semantics = [#tpu.dimension_semantics<parallel>], iteration_bounds = array<i64: 1>, scalar_prefetch = 0 : i64, scratch_operands = 0 : i64, tpu.core_type = #tpu.core_type<tc>, window_params = [{transform_indices = @transform_0, window_bounds = array<i64: 98, 64>}, {pipeline_mode = #tpu.pipeline_mode<synchronous>, transform_indices = @transform_1, window_bounds = array<i64: 64, 1024>}, {transform_indices = @transform_2, window_bounds = array<i64: 98, 1024>}]} {
    %c0 = arith.constant 0 : index
    %c0_0 = arith.constant 0 : index
    %0 = vector.load %arg1[%c0, %c0_0] : memref<98x64xbf16, #tpu.memory_space<vmem>>, vector<98x64xbf16>
    %c0_1 = arith.constant 0 : index
    %c0_2 = arith.constant 0 : index
    %1 = vector.load %arg2[%c0_1, %c0_2] : memref<64x1024xbf16, #tpu.memory_space<vmem>>, vector<64x1024xbf16>
    %cst = arith.constant dense<0.000000e+00> : vector<98x1024xf32>
    %2 = tpu.matmul %0, %1, %cst {dimension_numbers = #tpu.dot_dimension_numbers<[1], [0], [0], [1], [0, 0, 1, 1], [], []>} : vector<98x64xbf16>, vector<64x1024xbf16>, vector<98x1024xf32> -> vector<98x1024xf32>
    %c0_3 = arith.constant 0 : index
    %c0_4 = arith.constant 0 : index
    %3 = vector.load %arg3[%c0_3, %c0_4] : memref<98x1024xf32, #tpu.memory_space<vmem>>, vector<98x1024xf32>
    tpu.vector_store %arg3[%c0_3, %c0_4], %2 {strides = array<i32>} : memref<98x1024xf32, #tpu.memory_space<vmem>>, vector<98x1024xf32>,
    return
  }
  func.func @transform_0(%arg0: i32) -> (i32, i32) {
    %c0_i32 = arith.constant 0 : i32
    %c0_i32_0 = arith.constant 0 : i32
    return %arg0, %c0_i32 : i32, i32
  }
  func.func @transform_1(%arg0: i32) -> (i32, i32) {
    %c0_i32 = arith.constant 0 : i32
    %c0_i32_0 = arith.constant 0 : i32
    %c0_i32_1 = arith.constant 0 : i32
    return %c0_i32, %c0_i32_0 : i32, i32
  }
  func.func @transform_2(%arg0: i32) -> (i32, i32) {
    %c0_i32 = arith.constant 0 : i32
    %c0_i32_0 = arith.constant 0 : i32
    return %arg0, %c0_i32 : i32, i32
  }
}

module attributes {stable_mosaic.version = 11 : i64} {
  func.func @_mm_kernel(%arg0: i32, %arg1: memref<128x64xbf16, #tpu.memory_space<vmem>>, %arg2: memref<64x16xbf16, #tpu.memory_space<vmem>>, %arg3: memref<128x16xf32, #tpu.memory_space<vmem>>) attributes {dimension_semantics = [#tpu.dimension_semantics<parallel>], iteration_bounds = array<i64: 4>, scalar_prefetch = 0 : i64, scratch_operands = 0 : i64, tpu.core_type = #tpu.core_type<tc>, window_params = [{transform_indices = @transform_0, window_bounds = array<i64: 128, 64>}, {pipeline_mode = #tpu.pipeline_mode<synchronous>, transform_indices = @transform_1, window_bounds = array<i64: 64, 16>}, {transform_indices = @transform_2, window_bounds = array<i64: 128, 16>}]} {
    %c0 = arith.constant 0 : index
    %c0_0 = arith.constant 0 : index
    %0 = vector.load %arg1[%c0, %c0_0] : memref<128x64xbf16, #tpu.memory_space<vmem>>, vector<128x64xbf16>
    %c0_1 = arith.constant 0 : index
    %c0_2 = arith.constant 0 : index
    %1 = vector.load %arg2[%c0_1, %c0_2] : memref<64x16xbf16, #tpu.memory_space<vmem>>, vector<64x16xbf16>
    %cst = arith.constant dense<0.000000e+00> : vector<128x16xf32>
    %2 = tpu.matmul %0, %1, %cst {dimension_numbers = #tpu.dot_dimension_numbers<[1], [0], [0], [1], [0, 0, 1, 1], [], []>} : vector<128x64xbf16>, vector<64x16xbf16>, vector<128x16xf32> -> vector<128x16xf32>
    %c0_3 = arith.constant 0 : index
    %c0_4 = arith.constant 0 : index
    %3 = vector.load %arg3[%c0_3, %c0_4] : memref<128x16xf32, #tpu.memory_space<vmem>>, vector<128x16xf32>
    tpu.vector_store %arg3[%c0_3, %c0_4], %2 {strides = array<i32>} : memref<128x16xf32, #tpu.memory_space<vmem>>, vector<128x16xf32>,
    return
  }
  func.func @transform_0(%arg0: i32) -> (i32, i32) {
    %c0_i32 = arith.constant 0 : i32
    %c0_i32_0 = arith.constant 0 : i32
    return %arg0, %c0_i32 : i32, i32
  }
  func.func @transform_1(%arg0: i32) -> (i32, i32) {
    %c0_i32 = arith.constant 0 : i32
    %c0_i32_0 = arith.constant 0 : i32
    %c0_i32_1 = arith.constant 0 : i32
    return %c0_i32, %c0_i32_0 : i32, i32
  }
  func.func @transform_2(%arg0: i32) -> (i32, i32) {
    %c0_i32 = arith.constant 0 : i32
    %c0_i32_0 = arith.constant 0 : i32
    return %arg0, %c0_i32 : i32, i32
  }
}

</mosaic_0001>

<llo_original>
// kernel: forward.6
$region0: #{forward.6}
  #allocation0 [shape = 'u32[]', space=smem, size = 0x4, offset = 0x4, fixed_abs, tag = 'smem constant byte address 0x4 - core index']
  #allocation1 [shape = 'u32[144,128]{1,0:T(1,128)}', space=vmem, size = 0x12000, scoped, tag = 'internal scratch']
  %s0 = inlined_call_operand.vmem [shape: bf16[450,16], index: 0, kind: input, shape index: {}]
  %s1 = inlined_call_operand.vmem [shape: bf16[16,64], index: 1, kind: input, shape index: {}]
  %s2 = inlined_call_operand.vmem [shape: f32[1,64], index: 2, kind: input, shape index: {}]
  %s3 = inlined_call_operand.vmem [shape: f32[450,64], index: 3, kind: output, shape index: {}]
  %s4 = sld [smem:[#allocation0]]
  $region93: #{forward.6} parent=0
    _
  %s6 = ssub.s32 1, %s4
  %s7 = scalar_select 0, %s6, %s4
  $region1: #{forward.6} parent=0
    #allocation2 [shape = 'u8[131072]{0}', space=vmem, size = 0x20000, scoped, tag = 'output window, operand 0']
    loop: start=0, step=1, limit=6
    $region2: #{forward.6} parent=1 // loop_pre_header
      _
    $region3: #{forward.6} parent=1 // loop_header
      %s9 = sphi 0, %s13
      %p10 = scmp.ge.s32.totalorder %s9, 6
      %s19 = sphi 0, %s21
      %s22 = sphi 0, %s19
      %s23 = sphi 0, %s22
      %s39 = sphi 0, %s23
      %s43 = sphi 0, %s43
      %s45 = sphi 0, %s43
      %s46 = sphi 0, %s45
      %s60 = sphi 0, %s46
      %s64 = sphi 0, %s64
      %s66 = sphi 0, %s64
      %s67 = sphi 0, %s66
      %s81 = sphi 0, %s67
      %s87 = sphi 0, %s89
      %s90 = sphi 0, %s87
      %s91 = sphi 0, %s90
      %s107 = sphi 0, %s91
    $region4: #{forward.6} parent=1 // loop_header_branch
      %12 = sbr.rel (%p10) target = $region8
    $region5: #{forward.6} parent=1 // loop_body
      %s14 = ssub.s32 %s9, 1
      %s15 = ssub.s32 %s9, 2
      %s16 = sadd.s32 %s9, 1
      %s17 = ssub.s32 %s9, %s16
      %p18 = scmp.eq.s32.totalorder %s17, 0
      %s20 = sadd.s32 %s19, 1
      %s21 = scalar_select %p18, %s19, %s20
      %p24 = pneg %p18
      %p25 = scmp.eq.s32.totalorder %s9, 3
      %p26 = por %p24, %p25
      %p27 = scmp.ne.s32.totalorder %s19, %s22
      %p28 = scmp.eq.s32.totalorder %s9, 0
      %p29 = por %p27, %p28
      %p30 = scmp.ne.s32.totalorder %s19, %s22
      %p31 = scmp.eq.s32.totalorder %s14, 3
      %p32 = por %p30, %p31
      %p33 = scmp.ne.s32.totalorder %s22, %s23
      %p34 = scmp.eq.s32.totalorder %s14, 0
      %p35 = por %p33, %p34
      %p36 = scmp.ne.s32.totalorder %s22, %s23
      %p37 = scmp.eq.s32.totalorder %s15, 3
      %p38 = por %p36, %p37
      %p40 = scmp.ne.s32.totalorder %s23, %s39
      %p41 = scmp.eq.s32.totalorder %s15, 0
      %p42 = por %p40, %p41
      %s44 = sadd.s32 %s43, 1
      %p47 = scmp.eq.s32.totalorder %s9, 3
      %p48 = scmp.ne.s32.totalorder %s43, %s45
      %p49 = scmp.eq.s32.totalorder %s9, 0
      %p50 = por %p48, %p49
      %p51 = scmp.ne.s32.totalorder %s43, %s45
      %p52 = scmp.eq.s32.totalorder %s14, 3
      %p53 = por %p51, %p52
      %p54 = scmp.ne.s32.totalorder %s45, %s46
      %p55 = scmp.eq.s32.totalorder %s14, 0
      %p56 = por %p54, %p55
      %p57 = scmp.ne.s32.totalorder %s45, %s46
      %p58 = scmp.eq.s32.totalorder %s15, 3
      %p59 = por %p57, %p58
      %p61 = scmp.ne.s32.totalorder %s46, %s60
      %p62 = scmp.eq.s32.totalorder %s15, 0
      %p63 = por %p61, %p62
      %s65 = sadd.s32 %s64, 1
      %p68 = scmp.eq.s32.totalorder %s9, 3
      %p69 = scmp.ne.s32.totalorder %s64, %s66
      %p70 = scmp.eq.s32.totalorder %s9, 0
      %p71 = por %p69, %p70
      %p72 = scmp.ne.s32.totalorder %s64, %s66
      %p73 = scmp.eq.s32.totalorder %s14, 3
      %p74 = por %p72, %p73
      %p75 = scmp.ne.s32.totalorder %s66, %s67
      %p76 = scmp.eq.s32.totalorder %s14, 0
      %p77 = por %p75, %p76
      %p78 = scmp.ne.s32.totalorder %s66, %s67
      %p79 = scmp.eq.s32.totalorder %s15, 3
      %p80 = por %p78, %p79
      %p82 = scmp.ne.s32.totalorder %s67, %s81
      %p83 = scmp.eq.s32.totalorder %s15, 0
      %p84 = por %p82, %p83
      %s85 = ssub.s32 %s9, %s16
      %p86 = scmp.eq.s32.totalorder %s85, 0
      %s88 = sadd.s32 %s87, 1
      %s89 = scalar_select %p86, %s87, %s88
      %p92 = pneg %p86
      %p93 = scmp.eq.s32.totalorder %s9, 3
      %p94 = por %p92, %p93
      %p95 = scmp.ne.s32.totalorder %s87, %s90
      %p96 = scmp.eq.s32.totalorder %s9, 0
      %p97 = por %p95, %p96
      %p98 = scmp.ne.s32.totalorder %s87, %s90
      %p99 = scmp.eq.s32.totalorder %s14, 3
      %p100 = por %p98, %p99
      %p101 = scmp.ne.s32.totalorder %s90, %s91
      %p102 = scmp.eq.s32.totalorder %s14, 0
      %p103 = por %p101, %p102
      %p104 = scmp.ne.s32.totalorder %s90, %s91
      %p105 = scmp.eq.s32.totalorder %s15, 3
      %p106 = por %p104, %p105
      %p108 = scmp.ne.s32.totalorder %s91, %s107
      %p109 = scmp.eq.s32.totalorder %s15, 0
      %p110 = por %p108, %p109
      %p111 = scmp.le.s32.totalorder 1, %s9
      %p112 = scmp.lt.s32.totalorder %s9, 5
      %p113 = pnand %p111, %p112
      %p114 = pneg %p113
      // Predicated region
      $region9: #{forward.6} parent=5 // pred_check
        _
      $region10: #{forward.6} parent=5 // pred_check_branch
        %116 = sbr.rel (%p113) target = $region12
      $region11: #{forward.6} parent=5 // pred_region
        %s117 = ssub.s32 %s9, 1
        // Predicated region
        $region13: #{forward.6} parent=11 // pred_check
          %p118 = pneg %p56
        $region14: #{forward.6} parent=11 // pred_check_branch
          %120 = sbr.rel (%p118) target = $region16
        $region15: #{forward.6} parent=11 // pred_region
          _
        $region16: #{forward.6} parent=11 // pred_fallthru
          _
        // Predicated region
        $region17: #{forward.6} parent=11 // pred_check
          %p121 = pneg %p77
        $region18: #{forward.6} parent=11 // pred_check_branch
          %123 = sbr.rel (%p121) target = $region20
        $region19: #{forward.6} parent=11 // pred_region
          _
        $region20: #{forward.6} parent=11 // pred_fallthru
          _
      $region12: #{forward.6} parent=5 // pred_fallthru
        _
      %p124 = scmp.lt.s32.totalorder %s9, 4
      // Predicated region
      $region21: #{forward.6} parent=5 // pred_check
        %p125 = pneg %p124
      $region22: #{forward.6} parent=5 // pred_check_branch
        %127 = sbr.rel (%p125) target = $region24
      $region23: #{forward.6} parent=5 // pred_region
        // Predicated region
        $region25: #{forward.6} parent=23 // pred_check
          %p128 = pneg %p29
        $region26: #{forward.6} parent=23 // pred_check_branch
          %130 = sbr.rel (%p128) target = $region28
        $region27: #{forward.6} parent=23 // pred_region
          %s131 = smul.u32 16, %s9
          %s132 = ssub.s32 57, %s131
          %p133 = scmp.lt.s32.totalorder %s132, 16
          %s134 = scalar_select %p133, %s132, 16
          %s135 = smul.u32 64, %s134
          %p136 = scmp.lt.s32.totalorder %s131, 56
          %s137 = scalar_select %p136, %s131, 56
          %s138 = smul.addr %s137, 4
          %s139 = scalar_lea.vmem %s0, %s138
          %s140 = smul.u32 16, %s9
          %s141 = ssub.s32 57, %s140
          %p142 = scmp.lt.s32.totalorder %s141, 16
          %s143 = scalar_select %p142, %s141, 16
          %s144 = smul.u32 64, %s143
        $region28: #{forward.6} parent=23 // pred_fallthru
          _
      $region24: #{forward.6} parent=5 // pred_fallthru
        _
      %p145 = scmp.le.s32.totalorder 1, %s9
      %p146 = scmp.lt.s32.totalorder %s9, 5
      %p147 = pnand %p145, %p146
      %p148 = pneg %p147
      // Predicated region
      $region29: #{forward.6} parent=5 // pred_check
        _
      $region30: #{forward.6} parent=5 // pred_check_branch
        %150 = sbr.rel (%p147) target = $region32
      $region31: #{forward.6} parent=5 // pred_region
        %s151 = ssub.s32 %s9, 1
        %s152 = smul.u32 16, %s14
        %s153 = ssub.s32 57, %s152
        %p154 = scmp.lt.s32.totalorder %s153, 16
        %s155 = scalar_select %p154, %s153, 16
        %s156 = smul.u32 64, %s155
        %p157 = scmp.lt.s32.totalorder %s152, 56
        %s158 = scalar_select %p157, %s152, 56
        %s159 = smul.addr %s158, 4
        %s160 = scalar_lea.vmem %s0, %s159
        %p161 = pneg %p35
        %p162 = pneg %p32
        %p163 = pneg %p56
        %p164 = pneg %p53
        %p165 = pneg %p77
        %p166 = pneg %p74
        %p167 = pneg %p103
        %p168 = pneg %p100
        %s169 = sand.u32 %s90, 1
        %s170 = sand.u32 %s90, 1
        %s171 = smul.addr %s170, 128
        %s172 = scalar_lea.vmem [#allocation2], %s171
        %s173 = smul.u32 16, %s14
        %s174 = ssub.s32 57, %s173
        %p175 = scmp.lt.s32.totalorder %s174, 16
        %s176 = scalar_select %p175, %s174, 16
        %s177 = smul.u32 64, %s176
        %p178 = scmp.lt.s32.totalorder %s173, 56
        %s179 = scalar_select %p178, %s173, 56
        %s180 = smul.addr %s179, 4
        %s181 = scalar_lea.vmem %s0, %s180
        %s182 = smul.u32 16, %s14
        %s183 = ssub.s32 57, %s182
        %p184 = scmp.lt.s32.totalorder %s183, 16
        %s185 = scalar_select %p184, %s183, 16
        %s186 = smul.u32 64, %s185
        %s187 = smul.u32 16, %s14
        %s188 = ssub.s32 57, %s187
        %p189 = scmp.lt.s32.totalorder %s188, 16
        %s190 = scalar_select %p189, %s188, 16
        %s191 = smul.u32 128, %s190
        %v193 = vld [vmem:[%s181] sm:$0xf]
        %v194 = vld [vmem:[%s181 + $0x4] sm:$0xf]
        %v195 = vld [vmem:[%s181 + $0x8] sm:$0xf]
        %v196 = vld [vmem:[%s181 + $0xc] sm:$0xf]
        %v197 = vld [vmem:[%s181 + $0x10] sm:$0xf]
        %v198 = vld [vmem:[%s181 + $0x14] sm:$0xf]
        %v199 = vld [vmem:[%s181 + $0x18] sm:$0xf]
        %v200 = vld [vmem:[%s181 + $0x1c] sm:$0xf]
        %v201 = vld [vmem:[%s181 + $0x20] sm:$0xf]
        %v202 = vld [vmem:[%s181 + $0x24] sm:$0xf]
        %v203 = vld [vmem:[%s181 + $0x28] sm:$0xf]
        %v204 = vld [vmem:[%s181 + $0x2c] sm:$0xf]
        %v205 = vld [vmem:[%s181 + $0x30] sm:$0xf]
        %v206 = vld [vmem:[%s181 + $0x34] sm:$0xf]
        %v207 = vld [vmem:[%s181 + $0x38] sm:$0xf]
        %v208 = vld [vmem:[%s181 + $0x3c] sm:$0xf]
        %v209 = vld [vmem:[%s1] sm:$0xf]
        %v210 = vld [vmem:[%s1 + $0x4] sm:$0xf]
        %v211 = vld [vmem:[%s2] sm:$0x1]
        %v213 = vlaneseq
        %v214 = vshrl.u32 %v213, 7
        %v215 = vsub.s32 0, %v214
        %v216 = vrot.slane %v211, %v215
        %v234 = vunpack.c.l.b16 %v193
        %v235 = vunpack.c.l.b16 %v194
        %v236 = vunpack.c.l.b16 %v195
        %v237 = vunpack.c.l.b16 %v196
        %v238 = vunpack.c.l.b16 %v197
        %v239 = vunpack.c.l.b16 %v198
        %v240 = vunpack.c.l.b16 %v199
        %v241 = vunpack.c.l.b16 %v200
        %v242 = vunpack.c.l.b16 %v201
        %v243 = vunpack.c.l.b16 %v202
        %v244 = vunpack.c.l.b16 %v203
        %v245 = vunpack.c.l.b16 %v204
        %v246 = vunpack.c.l.b16 %v205
        %v247 = vunpack.c.l.b16 %v206
        %v248 = vunpack.c.l.b16 %v207
        %v249 = vunpack.c.l.b16 %v208
        %v250 = vpack.c.b16 %v235, %v234
        %v251 = vpack.c.b16 %v237, %v236
        %v252 = vpack.c.b16 %v239, %v238
        %v253 = vpack.c.b16 %v241, %v240
        %v254 = vpack.c.b16 %v243, %v242
        %v255 = vpack.c.b16 %v245, %v244
        %v256 = vpack.c.b16 %v247, %v246
        %v257 = vpack.c.b16 %v249, %v248
        %v260 = vunpack.c.l.b16 %v209
        %v261 = vunpack.c.l.b16 %v210
        %v262 = vpack.c.b16 %v261, %v260
        %vm264 = vcmask 130048
        %v266 = vsel %vm264, %v250, 0
        %v269 = vsel %vm264, %v251, 0
        %v272 = vsel %vm264, %v252, 0
        %v275 = vsel %vm264, %v253, 0
        %v278 = vsel %vm264, %v254, 0
        %v281 = vsel %vm264, %v255, 0
        %v284 = vsel %vm264, %v256, 0
        %v287 = vsel %vm264, %v257, 0
        %289 = vmatprep.subr.bf16.mxu0 0
        %290 = vmatpush1.bf16.msra.mxu0 0
        %291 = vmatprep.subr.bf16.mxu0 0
        %292 = vmatpush1.bf16.msra.mxu0 0
        %293 = vmatprep.subr.bf16.mxu0 0
        %294 = vmatpush1.bf16.msra.mxu0 0
        %295 = vmatprep.subr.bf16.mxu0 0
        %296 = vmatpush1.bf16.msra.mxu0 0
        %297 = vmatprep.subr.bf16.mxu0 0
        %298 = vmatpush1.bf16.msra.mxu0 0
        %299 = vmatprep.subr.bf16.mxu0 0
        %300 = vmatpush1.bf16.msra.mxu0 0
        %301 = vmatprep.subr.bf16.mxu0 0
        %302 = vmatpush1.bf16.msra.mxu0 0
        %303 = vmatprep.subr.bf16.mxu0 0
        %304 = vmatpush1.bf16.msra.mxu0 %v262
        %305 = vmatprep.subr.bf16.mxu0 0
        %306 = vmatpush2.bf16.msra.mxu0 0
        %307 = vmatprep.subr.bf16.mxu0 0
        %308 = vmatpush2.bf16.msra.mxu0 0
        %309 = vmatprep.subr.bf16.mxu0 0
        %310 = vmatpush2.bf16.msra.mxu0 0
        %311 = vmatprep.subr.bf16.mxu0 0
        %312 = vmatpush2.bf16.msra.mxu0 0
        %313 = vmatprep.subr.bf16.mxu0 0
        %314 = vmatpush2.bf16.msra.mxu0 0
        %315 = vmatprep.subr.bf16.mxu0 0
        %316 = vmatpush2.bf16.msra.mxu0 0
        %317 = vmatprep.subr.bf16.mxu0 0
        %318 = vmatpush2.bf16.msra.mxu0 0
        %319 = vmatprep.subr.bf16.mxu0 0
        %320 = vmatpush2.bf16.msra.mxu0 0
        %321 = vmatprep.mubr.bf16.mxu0 0
        %322 = vmatmul.mubr.bf16.gmra.mxu0 %v266
        %v323 = vpop.f32.mrf.mxu0
        %v324 = vadd.f32 %v216, %v323
        %v325 = vpop.f32.mrf.mxu0
        %v326 = vpop.f32.mrf.mxu0
        %v327 = vadd.f32 %v216, %v326
        %v328 = vpop.f32.mrf.mxu0
        %329 = vmatprep.mubr.bf16.mxu0 0
        %330 = vmatmul.mubr.bf16.gmra.mxu0 %v269
        %v331 = vpop.f32.mrf.mxu0
        %v332 = vadd.f32 %v216, %v331
        %v333 = vpop.f32.mrf.mxu0
        %v334 = vpop.f32.mrf.mxu0
        %v335 = vadd.f32 %v216, %v334
        %v336 = vpop.f32.mrf.mxu0
        %337 = vmatprep.mubr.bf16.mxu0 0
        %338 = vmatmul.mubr.bf16.gmra.mxu0 %v272
        %v339 = vpop.f32.mrf.mxu0
        %v340 = vadd.f32 %v216, %v339
        %v341 = vpop.f32.mrf.mxu0
        %v342 = vpop.f32.mrf.mxu0
        %v343 = vadd.f32 %v216, %v342
        %v344 = vpop.f32.mrf.mxu0
        %345 = vmatprep.mubr.bf16.mxu0 0
        %346 = vmatmul.mubr.bf16.gmra.mxu0 %v275
        %v347 = vpop.f32.mrf.mxu0
        %v348 = vadd.f32 %v216, %v347
        %v349 = vpop.f32.mrf.mxu0
        %v350 = vpop.f32.mrf.mxu0
        %v351 = vadd.f32 %v216, %v350
        %v352 = vpop.f32.mrf.mxu0
        %353 = vmatprep.mubr.bf16.mxu0 0
        %354 = vmatmul.mubr.bf16.gmra.mxu0 %v278
        %v355 = vpop.f32.mrf.mxu0
        %v356 = vadd.f32 %v216, %v355
        %v357 = vpop.f32.mrf.mxu0
        %v358 = vpop.f32.mrf.mxu0
        %v359 = vadd.f32 %v216, %v358
        %v360 = vpop.f32.mrf.mxu0
        %361 = vmatprep.mubr.bf16.mxu0 0
        %362 = vmatmul.mubr.bf16.gmra.mxu0 %v281
        %v363 = vpop.f32.mrf.mxu0
        %v364 = vadd.f32 %v216, %v363
        %v365 = vpop.f32.mrf.mxu0
        %v366 = vpop.f32.mrf.mxu0
        %v367 = vadd.f32 %v216, %v366
        %v368 = vpop.f32.mrf.mxu0
        %369 = vmatprep.mubr.bf16.mxu0 0
        %370 = vmatmul.mubr.bf16.gmra.mxu0 %v284
        %v371 = vpop.f32.mrf.mxu0
        %v372 = vadd.f32 %v216, %v371
        %v373 = vpop.f32.mrf.mxu0
        %v374 = vpop.f32.mrf.mxu0
        %v375 = vadd.f32 %v216, %v374
        %v376 = vpop.f32.mrf.mxu0
        %377 = vmatprep.mubr.bf16.mxu0 0
        %378 = vmatmul.mubr.bf16.gmra.mxu0 %v287
        %v379 = vpop.f32.mrf.mxu0
        %v380 = vadd.f32 %v216, %v379
        %v381 = vpop.f32.mrf.mxu0
        %v382 = vpop.f32.mrf.mxu0
        %v383 = vadd.f32 %v216, %v382
        %v384 = vpop.f32.mrf.mxu0
        %385 = vdwg.mxu0
        %vm386 = vcmp.ge.f32.partialorder %v324, 0.0
        %vm387 = vcmp.ge.f32.partialorder %v327, 0.0
        %vm388 = vcmp.ge.f32.partialorder %v332, 0.0
        %vm389 = vcmp.ge.f32.partialorder %v335, 0.0
        %vm390 = vcmp.ge.f32.partialorder %v340, 0.0
        %vm391 = vcmp.ge.f32.partialorder %v343, 0.0
        %vm392 = vcmp.ge.f32.partialorder %v348, 0.0
        %vm393 = vcmp.ge.f32.partialorder %v351, 0.0
        %vm394 = vcmp.ge.f32.partialorder %v356, 0.0
        %vm395 = vcmp.ge.f32.partialorder %v359, 0.0
        %vm396 = vcmp.ge.f32.partialorder %v364, 0.0
        %vm397 = vcmp.ge.f32.partialorder %v367, 0.0
        %vm398 = vcmp.ge.f32.partialorder %v372, 0.0
        %vm399 = vcmp.ge.f32.partialorder %v375, 0.0
        %vm400 = vcmp.ge.f32.partialorder %v380, 0.0
        %vm401 = vcmp.ge.f32.partialorder %v383, 0.0
        %v402 = vmul.f32 %v324, 0.01
        %v403 = vmul.f32 %v327, 0.01
        %v404 = vmul.f32 %v332, 0.01
        %v405 = vmul.f32 %v335, 0.01
        %v406 = vmul.f32 %v340, 0.01
        %v407 = vmul.f32 %v343, 0.01
        %v408 = vmul.f32 %v348, 0.01
        %v409 = vmul.f32 %v351, 0.01
        %v410 = vmul.f32 %v356, 0.01
        %v411 = vmul.f32 %v359, 0.01
        %v412 = vmul.f32 %v364, 0.01
        %v413 = vmul.f32 %v367, 0.01
        %v414 = vmul.f32 %v372, 0.01
        %v415 = vmul.f32 %v375, 0.01
        %v416 = vmul.f32 %v380, 0.01
        %v417 = vmul.f32 %v383, 0.01
        %v418 = vsel %vm386, %v324, %v402
        %v419 = vsel %vm387, %v327, %v403
        %v420 = vsel %vm388, %v332, %v404
        %v421 = vsel %vm389, %v335, %v405
        %v422 = vsel %vm390, %v340, %v406
        %v423 = vsel %vm391, %v343, %v407
        %v424 = vsel %vm392, %v348, %v408
        %v425 = vsel %vm393, %v351, %v409
        %v426 = vsel %vm394, %v356, %v410
        %v427 = vsel %vm395, %v359, %v411
        %v428 = vsel %vm396, %v364, %v412
        %v429 = vsel %vm397, %v367, %v413
        %v430 = vsel %vm398, %v372, %v414
        %v431 = vsel %vm399, %v375, %v415
        %v432 = vsel %vm400, %v380, %v416
        %v433 = vsel %vm401, %v383, %v417
        %vm434 = vcmask 523264
        %435 = vst.msk [vmem:[%s172] sm:$0xff] %vm434, %v418
        %436 = vst.msk [vmem:[%s172 + $0x8] sm:$0xff] %vm434, %v419
        %437 = vst.msk [vmem:[%s172 + $0x10] sm:$0xff] %vm434, %v420
        %438 = vst.msk [vmem:[%s172 + $0x18] sm:$0xff] %vm434, %v421
        %439 = vst.msk [vmem:[%s172 + $0x20] sm:$0xff] %vm434, %v422
        %440 = vst.msk [vmem:[%s172 + $0x28] sm:$0xff] %vm434, %v423
        %441 = vst.msk [vmem:[%s172 + $0x30] sm:$0xff] %vm434, %v424
        %442 = vst.msk [vmem:[%s172 + $0x38] sm:$0xff] %vm434, %v425
        %443 = vst.msk [vmem:[%s172 + $0x40] sm:$0xff] %vm434, %v426
        %444 = vst.msk [vmem:[%s172 + $0x48] sm:$0xff] %vm434, %v427
        %445 = vst.msk [vmem:[%s172 + $0x50] sm:$0xff] %vm434, %v428
        %446 = vst.msk [vmem:[%s172 + $0x58] sm:$0xff] %vm434, %v429
        %447 = vst.msk [vmem:[%s172 + $0x60] sm:$0xff] %vm434, %v430
        %448 = vst.msk [vmem:[%s172 + $0x68] sm:$0xff] %vm434, %v431
        %449 = vst.msk [vmem:[%s172 + $0x70] sm:$0xff] %vm434, %v432
        %450 = vst.msk [vmem:[%s172 + $0x78] sm:$0xff] %vm434, %v433
        %s451 = sand.u32 %s90, 1
        %s452 = sand.u32 %s90, 1
        %s453 = smul.addr %s452, 128
        %s454 = scalar_lea.vmem [#allocation2], %s453
        // Predicated region
        $region33: #{forward.6} parent=31 // pred_check
          %p455 = pneg %p100
        $region34: #{forward.6} parent=31 // pred_check_branch
          %457 = sbr.rel (%p455) target = $region36
        $region35: #{forward.6} parent=31 // pred_region
          %s458 = smul.u32 16, %s14
          %s459 = ssub.s32 57, %s458
          %p460 = scmp.lt.s32.totalorder %s459, 16
          %s461 = scalar_select %p460, %s459, 16
          %s462 = smul.u32 128, %s461
          %p463 = scmp.ne.s32.totalorder 0, %s462
          %s464 = smul.addr %s458, 8
          %s465 = scalar_lea.vmem %s3, %s464
          // Predicated region
          $region37: #{forward.6} parent=35 // pred_check
            %p466 = pneg %p463
          $region38: #{forward.6} parent=35 // pred_check_branch
            %468 = sbr.rel (%p466) target = $region40
          $region39: #{forward.6} parent=35 // pred_region
            // Predicated region
            $region41: #{forward.6} parent=39 // pred_check
              _
            $region42: #{forward.6} parent=39 // pred_check_branch
              %470 = sbr.rel (0) target = $region44
            $region43: #{forward.6} parent=39 // pred_region
              // Predicated region
              $region63: #{forward.6} parent=43 // pred_check
                _
              $region64: #{forward.6} parent=43 // pred_check_branch
                %550 = sbr.rel (0) target = $region66
              $region65: #{forward.6} parent=43 // pred_region
                %s551 = sshrl.u32 %s461, 4
                // While loop
                $region67: #{forward.6} parent=65 // loop_pre_header
                  _
                $region68: #{forward.6} parent=65 // loop_header
                  %s553 = sphi 0, %s555
                  %p554 = scmp.ge.s32.totalorder %s553, %s551
                  %s558 = sphi 0, %s595
                  %s559 = sphi %s454, %s598
                  %s560 = sphi %s465, %s599
                $region69: #{forward.6} parent=65 // loop_header_branch
                  %557 = sbr.rel (%p554) target = $region73
                $region70: #{forward.6} parent=65 // loop_body
                  %v561 = vld [vmem:[%s559] sm:$0xff]
                  %562 = vst [vmem:[%s560] sm:$0xff] %v561
                  %v563 = vld [vmem:[%s559 + $0x8] sm:$0xff]
                  %564 = vst [vmem:[%s560 + $0x8] sm:$0xff] %v563
                  %v565 = vld [vmem:[%s559 + $0x10] sm:$0xff]
                  %566 = vst [vmem:[%s560 + $0x10] sm:$0xff] %v565
                  %v567 = vld [vmem:[%s559 + $0x18] sm:$0xff]
                  %568 = vst [vmem:[%s560 + $0x18] sm:$0xff] %v567
                  %v569 = vld [vmem:[%s559 + $0x20] sm:$0xff]
                  %570 = vst [vmem:[%s560 + $0x20] sm:$0xff] %v569
                  %v571 = vld [vmem:[%s559 + $0x28] sm:$0xff]
                  %572 = vst [vmem:[%s560 + $0x28] sm:$0xff] %v571
                  %v573 = vld [vmem:[%s559 + $0x30] sm:$0xff]
                  %574 = vst [vmem:[%s560 + $0x30] sm:$0xff] %v573
                  %v575 = vld [vmem:[%s559 + $0x38] sm:$0xff]
                  %576 = vst [vmem:[%s560 + $0x38] sm:$0xff] %v575
                  %v577 = vld [vmem:[%s559 + $0x40] sm:$0xff]
                  %578 = vst [vmem:[%s560 + $0x40] sm:$0xff] %v577
                  %v579 = vld [vmem:[%s559 + $0x48] sm:$0xff]
                  %580 = vst [vmem:[%s560 + $0x48] sm:$0xff] %v579
                  %v581 = vld [vmem:[%s559 + $0x50] sm:$0xff]
                  %582 = vst [vmem:[%s560 + $0x50] sm:$0xff] %v581
                  %v583 = vld [vmem:[%s559 + $0x58] sm:$0xff]
                  %584 = vst [vmem:[%s560 + $0x58] sm:$0xff] %v583
                  %v585 = vld [vmem:[%s559 + $0x60] sm:$0xff]
                  %586 = vst [vmem:[%s560 + $0x60] sm:$0xff] %v585
                  %v587 = vld [vmem:[%s559 + $0x68] sm:$0xff]
                  %588 = vst [vmem:[%s560 + $0x68] sm:$0xff] %v587
                  %v589 = vld [vmem:[%s559 + $0x70] sm:$0xff]
                  %590 = vst [vmem:[%s560 + $0x70] sm:$0xff] %v589
                  %v591 = vld [vmem:[%s559 + $0x78] sm:$0xff]
                  %592 = vst [vmem:[%s560 + $0x78] sm:$0xff] %v591
                  %s593 = sadd.s32 1, %s558
                  %p594 = scmp.ge.s32.totalorder %s593, %s551
                  %s595 = scalar_select %p594, 0, %s593
                  %s596 = smul.u32 %s595, 128
                  %s597 = smul.u32 %s595, 128
                  %s598 = scalar_lea.vmem %s454, %s596 [#allocation2]
                  %s599 = scalar_lea.vmem %s465, %s597
                $region71: #{forward.6} parent=65 // loop_footer
                  %s555 = sadd.s32 %s553, 1
                $region72: #{forward.6} parent=65 // loop_footer_branch
                  %552 = sbr.rel target = $region68
                $region73: #{forward.6} parent=65 // loop_exit
                  _
                %s600 = sshrl.u32 %s461, 4
                %s601 = sand.u32 %s461, 15
                %s602 = smul.u32 %s600, 16
                %s603 = smul.u32 8, %s602
                %s604 = scalar_lea.vmem %s454, %s603 [#allocation2]
                %s605 = smul.u32 8, %s602
                %s606 = scalar_lea.vmem %s465, %s605
                // While loop
                $region74: #{forward.6} parent=65 // loop_pre_header
                  _
                $region75: #{forward.6} parent=65 // loop_header
                  %s608 = sphi 0, %s610
                  %p609 = scmp.ge.s32.totalorder %s608, %s601
                  %s613 = sphi 0, %s620
                  %s614 = sphi %s604, %s623
                  %s615 = sphi %s606, %s624
                $region76: #{forward.6} parent=65 // loop_header_branch
                  %612 = sbr.rel (%p609) target = $region80
                $region77: #{forward.6} parent=65 // loop_body
                  %v616 = vld [vmem:[%s614] sm:$0xff]
                  %617 = vst [vmem:[%s615] sm:$0xff] %v616
                  %s618 = sadd.s32 1, %s613
                  %p619 = scmp.ge.s32.totalorder %s618, %s601
                  %s620 = scalar_select %p619, 0, %s618
                  %s621 = smul.u32 %s620, 8
                  %s622 = smul.u32 %s620, 8
                  %s623 = scalar_lea.vmem %s604, %s621 [#allocation2]
                  %s624 = scalar_lea.vmem %s606, %s622
                $region78: #{forward.6} parent=65 // loop_footer
                  %s610 = sadd.s32 %s608, 1
                $region79: #{forward.6} parent=65 // loop_footer_branch
                  %607 = sbr.rel target = $region75
                $region80: #{forward.6} parent=65 // loop_exit
                  _
              $region66: #{forward.6} parent=43 // pred_fallthru
                _
              // Predicated region
              $region81: #{forward.6} parent=43 // pred_check
                _
              $region82: #{forward.6} parent=43 // pred_check_branch
                %626 = sbr.rel target = $region84
              $region83: #{forward.6} parent=43 // pred_region
                _
              $region84: #{forward.6} parent=43 // pred_fallthru
                _
            $region44: #{forward.6} parent=39 // pred_fallthru
              _
            // Predicated region
            $region45: #{forward.6} parent=39 // pred_check
              _
            $region46: #{forward.6} parent=39 // pred_check_branch
              %472 = sbr.rel target = $region48
            $region47: #{forward.6} parent=39 // pred_region
              %s474 = ssub.s32 256, 1
              %s475 = sshrl.u32 %s461, 4
              // While loop
              $region49: #{forward.6} parent=47 // loop_pre_header
                _
              $region50: #{forward.6} parent=47 // loop_header
                %s477 = sphi 0, %s479
                %p478 = scmp.ge.s32.totalorder %s477, %s475
                %s482 = sphi 0, %s519
                %s483 = sphi %s454, %s522
                %s484 = sphi %s465, %s523
              $region51: #{forward.6} parent=47 // loop_header_branch
                %481 = sbr.rel (%p478) target = $region55
              $region52: #{forward.6} parent=47 // loop_body
                %v485 = vld [vmem:[%s483] sm:%s474]
                %486 = vst [vmem:[%s484] sm:%s474] %v485
                %v487 = vld [vmem:[%s483 + $0x8] sm:%s474]
                %488 = vst [vmem:[%s484 + $0x8] sm:%s474] %v487
                %v489 = vld [vmem:[%s483 + $0x10] sm:%s474]
                %490 = vst [vmem:[%s484 + $0x10] sm:%s474] %v489
                %v491 = vld [vmem:[%s483 + $0x18] sm:%s474]
                %492 = vst [vmem:[%s484 + $0x18] sm:%s474] %v491
                %v493 = vld [vmem:[%s483 + $0x20] sm:%s474]
                %494 = vst [vmem:[%s484 + $0x20] sm:%s474] %v493
                %v495 = vld [vmem:[%s483 + $0x28] sm:%s474]
                %496 = vst [vmem:[%s484 + $0x28] sm:%s474] %v495
                %v497 = vld [vmem:[%s483 + $0x30] sm:%s474]
                %498 = vst [vmem:[%s484 + $0x30] sm:%s474] %v497
                %v499 = vld [vmem:[%s483 + $0x38] sm:%s474]
                %500 = vst [vmem:[%s484 + $0x38] sm:%s474] %v499
                %v501 = vld [vmem:[%s483 + $0x40] sm:%s474]
                %502 = vst [vmem:[%s484 + $0x40] sm:%s474] %v501
                %v503 = vld [vmem:[%s483 + $0x48] sm:%s474]
                %504 = vst [vmem:[%s484 + $0x48] sm:%s474] %v503
                %v505 = vld [vmem:[%s483 + $0x50] sm:%s474]
                %506 = vst [vmem:[%s484 + $0x50] sm:%s474] %v505
                %v507 = vld [vmem:[%s483 + $0x58] sm:%s474]
                %508 = vst [vmem:[%s484 + $0x58] sm:%s474] %v507
                %v509 = vld [vmem:[%s483 + $0x60] sm:%s474]
                %510 = vst [vmem:[%s484 + $0x60] sm:%s474] %v509
                %v511 = vld [vmem:[%s483 + $0x68] sm:%s474]
                %512 = vst [vmem:[%s484 + $0x68] sm:%s474] %v511
                %v513 = vld [vmem:[%s483 + $0x70] sm:%s474]
                %514 = vst [vmem:[%s484 + $0x70] sm:%s474] %v513
                %v515 = vld [vmem:[%s483 + $0x78] sm:%s474]
                %516 = vst [vmem:[%s484 + $0x78] sm:%s474] %v515
                %s517 = sadd.s32 1, %s482
                %p518 = scmp.ge.s32.totalorder %s517, %s475
                %s519 = scalar_select %p518, 0, %s517
                %s520 = smul.u32 %s519, 128
                %s521 = smul.u32 %s519, 128
                %s522 = scalar_lea.vmem %s454, %s520 [#allocation2]
                %s523 = scalar_lea.vmem %s465, %s521
              $region53: #{forward.6} parent=47 // loop_footer
                %s479 = sadd.s32 %s477, 1
              $region54: #{forward.6} parent=47 // loop_footer_branch
                %476 = sbr.rel target = $region50
              $region55: #{forward.6} parent=47 // loop_exit
                _
              %s524 = sshrl.u32 %s461, 4
              %s525 = sand.u32 %s461, 15
              %s526 = smul.u32 %s524, 16
              %s527 = smul.u32 8, %s526
              %s528 = scalar_lea.vmem %s454, %s527 [#allocation2]
              %s529 = smul.u32 8, %s526
              %s530 = scalar_lea.vmem %s465, %s529
              // While loop
              $region56: #{forward.6} parent=47 // loop_pre_header
                _
              $region57: #{forward.6} parent=47 // loop_header
                %s532 = sphi 0, %s534
                %p533 = scmp.ge.s32.totalorder %s532, %s525
                %s537 = sphi 0, %s544
                %s538 = sphi %s528, %s547
                %s539 = sphi %s530, %s548
              $region58: #{forward.6} parent=47 // loop_header_branch
                %536 = sbr.rel (%p533) target = $region62
              $region59: #{forward.6} parent=47 // loop_body
                %v540 = vld [vmem:[%s538] sm:%s474]
                %541 = vst [vmem:[%s539] sm:%s474] %v540
                %s542 = sadd.s32 1, %s537
                %p543 = scmp.ge.s32.totalorder %s542, %s525
                %s544 = scalar_select %p543, 0, %s542
                %s545 = smul.u32 %s544, 8
                %s546 = smul.u32 %s544, 8
                %s547 = scalar_lea.vmem %s528, %s545 [#allocation2]
                %s548 = scalar_lea.vmem %s530, %s546
              $region60: #{forward.6} parent=47 // loop_footer
                %s534 = sadd.s32 %s532, 1
              $region61: #{forward.6} parent=47 // loop_footer_branch
                %531 = sbr.rel target = $region57
              $region62: #{forward.6} parent=47 // loop_exit
                _
            $region48: #{forward.6} parent=39 // pred_fallthru
              _
          $region40: #{forward.6} parent=35 // pred_fallthru
            _
          %627 = vnop
        $region36: #{forward.6} parent=31 // pred_fallthru
          _
      $region32: #{forward.6} parent=5 // pred_fallthru
        _
      %p628 = scmp.le.s32.totalorder 2, %s9
      // Predicated region
      $region85: #{forward.6} parent=5 // pred_check
        %p629 = pneg %p628
      $region86: #{forward.6} parent=5 // pred_check_branch
        %631 = sbr.rel (%p629) target = $region88
      $region87: #{forward.6} parent=5 // pred_region
        %s632 = ssub.s32 %s9, 2
        // Predicated region
        $region89: #{forward.6} parent=87 // pred_check
          %p633 = pneg %p106
        $region90: #{forward.6} parent=87 // pred_check_branch
          %635 = sbr.rel (%p633) target = $region92
        $region91: #{forward.6} parent=87 // pred_region
          %s636 = sand.u32 %s91, 1
          %s637 = sand.u32 %s91, 1
          %s638 = smul.addr %s637, 128
          %s639 = scalar_lea.vmem [#allocation2], %s638
        $region92: #{forward.6} parent=87 // pred_fallthru
          _
      $region88: #{forward.6} parent=5 // pred_fallthru
        _
    $region6: #{forward.6} parent=1 // loop_footer
      %s13 = sadd.s32 1, %s9
    $region7: #{forward.6} parent=1 // loop_footer_branch
      %8 = sbr.rel target = $region3
    $region8: #{forward.6} parent=1 // loop_exit
      _

// kernel: forward.7
$region0: #{forward.7}
  #allocation0 [shape = 'u32[]', space=smem, size = 0x4, offset = 0x4, fixed_abs, tag = 'smem constant byte address 0x4 - core index']
  #allocation1 [shape = 'u32[144,128]{1,0:T(1,128)}', space=vmem, size = 0x12000, scoped, tag = 'internal scratch']
  %s0 = inlined_call_operand.vmem [shape: bf16[72,1024], index: 0, kind: input, shape index: {}]
  %s1 = inlined_call_operand.vmem [shape: bf16[1024,64], index: 1, kind: input, shape index: {}]
  %s2 = inlined_call_operand.vmem [shape: f32[1,64], index: 2, kind: input, shape index: {}]
  %s3 = inlined_call_operand.vmem [shape: f32[72,64], index: 3, kind: output, shape index: {}]
  %s4 = sld [smem:[#allocation0]]
  $region22: #{forward.7} parent=0
    _
  %s6 = ssub.s32 1, %s4
  %s7 = scalar_select 0, %s6, %s4
  // Predicated region
  $region2: #{forward.7} parent=0 // pred_check
    _
  $region3: #{forward.7} parent=0 // pred_check_branch
    %9 = sbr.rel (0) target = $region5
  $region4: #{forward.7} parent=0 // pred_region
    _
  $region5: #{forward.7} parent=0 // pred_fallthru
    _
  // Predicated region
  $region6: #{forward.7} parent=0 // pred_check
    _
  $region7: #{forward.7} parent=0 // pred_check_branch
    %11 = sbr.rel (0) target = $region9
  $region8: #{forward.7} parent=0 // pred_region
    _
  $region9: #{forward.7} parent=0 // pred_fallthru
    _
  // Predicated region
  $region10: #{forward.7} parent=0 // pred_check
    _
  $region11: #{forward.7} parent=0 // pred_check_branch
    %13 = sbr.rel (0) target = $region13
  $region12: #{forward.7} parent=0 // pred_region
    _
  $region13: #{forward.7} parent=0 // pred_fallthru
    _
  %v15 = vld [vmem:[%s0] sm:$0xff]
  %v16 = vld [vmem:[%s0 + $0x8] sm:$0xff]
  %v17 = vld [vmem:[%s0 + $0x10] sm:$0xff]
  %v18 = vld [vmem:[%s0 + $0x18] sm:$0xff]
  %v19 = vld [vmem:[%s0 + $0x20] sm:$0xff]
  %v20 = vld [vmem:[%s0 + $0x28] sm:$0xff]
  %v21 = vld [vmem:[%s0 + $0x30] sm:$0xff]
  %v22 = vld [vmem:[%s0 + $0x38] sm:$0xff]
  %v23 = vld [vmem:[%s0 + $0x40] sm:$0xff]
  %v24 = vld [vmem:[%s0 + $0x48] sm:$0xff]
  %v25 = vld [vmem:[%s0 + $0x50] sm:$0xff]
  %v26 = vld [vmem:[%s0 + $0x58] sm:$0xff]
  %v27 = vld [vmem:[%s0 + $0x60] sm:$0xff]
  %v28 = vld [vmem:[%s0 + $0x68] sm:$0xff]
  %v29 = vld [vmem:[%s0 + $0x70] sm:$0xff]
  %v30 = vld [vmem:[%s0 + $0x78] sm:$0xff]
  %v31 = vld [vmem:[%s0 + $0x80] sm:$0xff]
  %v32 = vld [vmem:[%s0 + $0x88] sm:$0xff]
  %v33 = vld [vmem:[%s0 + $0x90] sm:$0xff]
  %v34 = vld [vmem:[%s0 + $0x98] sm:$0xff]
  %v35 = vld [vmem:[%s0 + $0xa0] sm:$0xff]
  %v36 = vld [vmem:[%s0 + $0xa8] sm:$0xff]
  %v37 = vld [vmem:[%s0 + $0xb0] sm:$0xff]
  %v38 = vld [vmem:[%s0 + $0xb8] sm:$0xff]
  %v39 = vld [vmem:[%s0 + $0xc0] sm:$0xff]
  %v40 = vld [vmem:[%s0 + $0xc8] sm:$0xff]
  %v41 = vld [vmem:[%s0 + $0xd0] sm:$0xff]
  %v42 = vld [vmem:[%s0 + $0xd8] sm:$0xff]
  %v43 = vld [vmem:[%s0 + $0xe0] sm:$0xff]
  %v44 = vld [vmem:[%s0 + $0xe8] sm:$0xff]
  %v45 = vld [vmem:[%s0 + $0xf0] sm:$0xff]
  %v46 = vld [vmem:[%s0 + $0xf8] sm:$0xff]
  %v47 = vld [vmem:[%s0 + $0x100] sm:$0xff]
  %v48 = vld [vmem:[%s0 + $0x108] sm:$0xff]
  %v49 = vld [vmem:[%s0 + $0x110] sm:$0xff]
  %v50 = vld [vmem:[%s0 + $0x118] sm:$0xff]
  %v51 = vld [vmem:[%s1] sm:$0xf]
  %v52 = vld [vmem:[%s1 + $0x4] sm:$0xf]
  %v53 = vld [vmem:[%s1 + $0x8] sm:$0xf]
  %v54 = vld [vmem:[%s1 + $0xc] sm:$0xf]
  %v55 = vld [vmem:[%s1 + $0x10] sm:$0xf]
  %v56 = vld [vmem:[%s1 + $0x14] sm:$0xf]
  %v57 = vld [vmem:[%s1 + $0x18] sm:$0xf]
  %v58 = vld [vmem:[%s1 + $0x1c] sm:$0xf]
  %v59 = vld [vmem:[%s1 + $0x20] sm:$0xf]
  %v60 = vld [vmem:[%s1 + $0x24] sm:$0xf]
  %v61 = vld [vmem:[%s1 + $0x28] sm:$0xf]
  %v62 = vld [vmem:[%s1 + $0x2c] sm:$0xf]
  %v63 = vld [vmem:[%s1 + $0x30] sm:$0xf]
  %v64 = vld [vmem:[%s1 + $0x34] sm:$0xf]
  %v65 = vld [vmem:[%s1 + $0x38] sm:$0xf]
  %v66 = vld [vmem:[%s1 + $0x3c] sm:$0xf]
  %v67 = vld [vmem:[%s1 + $0x40] sm:$0xf]
  %v68 = vld [vmem:[%s1 + $0x44] sm:$0xf]
  %v69 = vld [vmem:[%s1 + $0x48] sm:$0xf]
  %v70 = vld [vmem:[%s1 + $0x4c] sm:$0xf]
  %v71 = vld [vmem:[%s1 + $0x50] sm:$0xf]
  %v72 = vld [vmem:[%s1 + $0x54] sm:$0xf]
  %v73 = vld [vmem:[%s1 + $0x58] sm:$0xf]
  %v74 = vld [vmem:[%s1 + $0x5c] sm:$0xf]
  %v75 = vld [vmem:[%s1 + $0x60] sm:$0xf]
  %v76 = vld [vmem:[%s1 + $0x64] sm:$0xf]
  %v77 = vld [vmem:[%s1 + $0x68] sm:$0xf]
  %v78 = vld [vmem:[%s1 + $0x6c] sm:$0xf]
  %v79 = vld [vmem:[%s1 + $0x70] sm:$0xf]
  %v80 = vld [vmem:[%s1 + $0x74] sm:$0xf]
  %v81 = vld [vmem:[%s1 + $0x78] sm:$0xf]
  %v82 = vld [vmem:[%s1 + $0x7c] sm:$0xf]
  %v83 = vld [vmem:[%s1 + $0x80] sm:$0xf]
  %v84 = vld [vmem:[%s1 + $0x84] sm:$0xf]
  %v85 = vld [vmem:[%s1 + $0x88] sm:$0xf]
  %v86 = vld [vmem:[%s1 + $0x8c] sm:$0xf]
  %v87 = vld [vmem:[%s1 + $0x90] sm:$0xf]
  %v88 = vld [vmem:[%s1 + $0x94] sm:$0xf]
  %v89 = vld [vmem:[%s1 + $0x98] sm:$0xf]
  %v90 = vld [vmem:[%s1 + $0x9c] sm:$0xf]
  %v91 = vld [vmem:[%s1 + $0xa0] sm:$0xf]
  %v92 = vld [vmem:[%s1 + $0xa4] sm:$0xf]
  %v93 = vld [vmem:[%s1 + $0xa8] sm:$0xf]
  %v94 = vld [vmem:[%s1 + $0xac] sm:$0xf]
  %v95 = vld [vmem:[%s1 + $0xb0] sm:$0xf]
  %v96 = vld [vmem:[%s1 + $0xb4] sm:$0xf]
  %v97 = vld [vmem:[%s1 + $0xb8] sm:$0xf]
  %v98 = vld [vmem:[%s1 + $0xbc] sm:$0xf]
  %v99 = vld [vmem:[%s1 + $0xc0] sm:$0xf]
  %v100 = vld [vmem:[%s1 + $0xc4] sm:$0xf]
  %v101 = vld [vmem:[%s1 + $0xc8] sm:$0xf]
  %v102 = vld [vmem:[%s1 + $0xcc] sm:$0xf]
  %v103 = vld [vmem:[%s1 + $0xd0] sm:$0xf]
  %v104 = vld [vmem:[%s1 + $0xd4] sm:$0xf]
  %v105 = vld [vmem:[%s1 + $0xd8] sm:$0xf]
  %v106 = vld [vmem:[%s1 + $0xdc] sm:$0xf]
  %v107 = vld [vmem:[%s1 + $0xe0] sm:$0xf]
  %v108 = vld [vmem:[%s1 + $0xe4] sm:$0xf]
  %v109 = vld [vmem:[%s1 + $0xe8] sm:$0xf]
  %v110 = vld [vmem:[%s1 + $0xec] sm:$0xf]
  %v111 = vld [vmem:[%s1 + $0xf0] sm:$0xf]
  %v112 = vld [vmem:[%s1 + $0xf4] sm:$0xf]
  %v113 = vld [vmem:[%s1 + $0xf8] sm:$0xf]
  %v114 = vld [vmem:[%s1 + $0xfc] sm:$0xf]
  %v115 = vld [vmem:[%s1 + $0x100] sm:$0xf]
  %v116 = vld [vmem:[%s1 + $0x104] sm:$0xf]
  %v117 = vld [vmem:[%s1 + $0x108] sm:$0xf]
  %v118 = vld [vmem:[%s1 + $0x10c] sm:$0xf]
  %v119 = vld [vmem:[%s1 + $0x110] sm:$0xf]
  %v120 = vld [vmem:[%s1 + $0x114] sm:$0xf]
  %v121 = vld [vmem:[%s1 + $0x118] sm:$0xf]
  %v122 = vld [vmem:[%s1 + $0x11c] sm:$0xf]
  %v123 = vld [vmem:[%s1 + $0x120] sm:$0xf]
  %v124 = vld [vmem:[%s1 + $0x124] sm:$0xf]
  %v125 = vld [vmem:[%s1 + $0x128] sm:$0xf]
  %v126 = vld [vmem:[%s1 + $0x12c] sm:$0xf]
  %v127 = vld [vmem:[%s1 + $0x130] sm:$0xf]
  %v128 = vld [vmem:[%s1 + $0x134] sm:$0xf]
  %v129 = vld [vmem:[%s1 + $0x138] sm:$0xf]
  %v130 = vld [vmem:[%s1 + $0x13c] sm:$0xf]
  %v131 = vld [vmem:[%s1 + $0x140] sm:$0xf]
  %v132 = vld [vmem:[%s1 + $0x144] sm:$0xf]
  %v133 = vld [vmem:[%s1 + $0x148] sm:$0xf]
  %v134 = vld [vmem:[%s1 + $0x14c] sm:$0xf]
  %v135 = vld [vmem:[%s1 + $0x150] sm:$0xf]
  %v136 = vld [vmem:[%s1 + $0x154] sm:$0xf]
  %v137 = vld [vmem:[%s1 + $0x158] sm:$0xf]
  %v138 = vld [vmem:[%s1 + $0x15c] sm:$0xf]
  %v139 = vld [vmem:[%s1 + $0x160] sm:$0xf]
  %v140 = vld [vmem:[%s1 + $0x164] sm:$0xf]
  %v141 = vld [vmem:[%s1 + $0x168] sm:$0xf]
  %v142 = vld [vmem:[%s1 + $0x16c] sm:$0xf]
  %v143 = vld [vmem:[%s1 + $0x170] sm:$0xf]
  %v144 = vld [vmem:[%s1 + $0x174] sm:$0xf]
  %v145 = vld [vmem:[%s1 + $0x178] sm:$0xf]
  %v146 = vld [vmem:[%s1 + $0x17c] sm:$0xf]
  %v147 = vld [vmem:[%s1 + $0x180] sm:$0xf]
  %v148 = vld [vmem:[%s1 + $0x184] sm:$0xf]
  %v149 = vld [vmem:[%s1 + $0x188] sm:$0xf]
  %v150 = vld [vmem:[%s1 + $0x18c] sm:$0xf]
  %v151 = vld [vmem:[%s1 + $0x190] sm:$0xf]
  %v152 = vld [vmem:[%s1 + $0x194] sm:$0xf]
  %v153 = vld [vmem:[%s1 + $0x198] sm:$0xf]
  %v154 = vld [vmem:[%s1 + $0x19c] sm:$0xf]
  %v155 = vld [vmem:[%s1 + $0x1a0] sm:$0xf]
  %v156 = vld [vmem:[%s1 + $0x1a4] sm:$0xf]
  %v157 = vld [vmem:[%s1 + $0x1a8] sm:$0xf]
  %v158 = vld [vmem:[%s1 + $0x1ac] sm:$0xf]
  %v159 = vld [vmem:[%s1 + $0x1b0] sm:$0xf]
  %v160 = vld [vmem:[%s1 + $0x1b4] sm:$0xf]
  %v161 = vld [vmem:[%s1 + $0x1b8] sm:$0xf]
  %v162 = vld [vmem:[%s1 + $0x1bc] sm:$0xf]
  %v163 = vld [vmem:[%s1 + $0x1c0] sm:$0xf]
  %v164 = vld [vmem:[%s1 + $0x1c4] sm:$0xf]
  %v165 = vld [vmem:[%s1 + $0x1c8] sm:$0xf]
  %v166 = vld [vmem:[%s1 + $0x1cc] sm:$0xf]
  %v167 = vld [vmem:[%s1 + $0x1d0] sm:$0xf]
  %v168 = vld [vmem:[%s1 + $0x1d4] sm:$0xf]
  %v169 = vld [vmem:[%s1 + $0x1d8] sm:$0xf]
  %v170 = vld [vmem:[%s1 + $0x1dc] sm:$0xf]
  %v171 = vld [vmem:[%s1 + $0x1e0] sm:$0xf]
  %v172 = vld [vmem:[%s1 + $0x1e4] sm:$0xf]
  %v173 = vld [vmem:[%s1 + $0x1e8] sm:$0xf]
  %v174 = vld [vmem:[%s1 + $0x1ec] sm:$0xf]
  %v175 = vld [vmem:[%s1 + $0x1f0] sm:$0xf]
  %v176 = vld [vmem:[%s1 + $0x1f4] sm:$0xf]
  %v177 = vld [vmem:[%s1 + $0x1f8] sm:$0xf]
  %v178 = vld [vmem:[%s1 + $0x1fc] sm:$0xf]
  %v179 = vld [vmem:[%s2] sm:$0x1]
  %v181 = vlaneseq
  %v182 = vshrl.u32 %v181, 7
  %v183 = vsub.s32 0, %v182
  %v184 = vrot.slane %v179, %v183
  %v222 = vunpack.c.l.b16 %v15
  %v223 = vunpack.c.h.b16 %v15
  %v224 = vunpack.c.l.b16 %v16
  %v225 = vunpack.c.h.b16 %v16
  %v226 = vunpack.c.l.b16 %v17
  %v227 = vunpack.c.h.b16 %v17
  %v228 = vunpack.c.l.b16 %v18
  %v229 = vunpack.c.h.b16 %v18
  %v230 = vunpack.c.l.b16 %v19
  %v231 = vunpack.c.h.b16 %v19
  %v232 = vunpack.c.l.b16 %v20
  %v233 = vunpack.c.h.b16 %v20
  %v234 = vunpack.c.l.b16 %v21
  %v235 = vunpack.c.h.b16 %v21
  %v236 = vunpack.c.l.b16 %v22
  %v237 = vunpack.c.h.b16 %v22
  %v238 = vunpack.c.l.b16 %v23
  %v239 = vunpack.c.h.b16 %v23
  %v240 = vunpack.c.l.b16 %v24
  %v241 = vunpack.c.h.b16 %v24
  %v242 = vunpack.c.l.b16 %v25
  %v243 = vunpack.c.h.b16 %v25
  %v244 = vunpack.c.l.b16 %v26
  %v245 = vunpack.c.h.b16 %v26
  %v246 = vunpack.c.l.b16 %v27
  %v247 = vunpack.c.h.b16 %v27
  %v248 = vunpack.c.l.b16 %v28
  %v249 = vunpack.c.h.b16 %v28
  %v250 = vunpack.c.l.b16 %v29
  %v251 = vunpack.c.h.b16 %v29
  %v252 = vunpack.c.l.b16 %v30
  %v253 = vunpack.c.h.b16 %v30
  %v254 = vunpack.c.l.b16 %v31
  %v255 = vunpack.c.h.b16 %v31
  %v256 = vunpack.c.l.b16 %v32
  %v257 = vunpack.c.h.b16 %v32
  %v258 = vunpack.c.l.b16 %v33
  %v259 = vunpack.c.h.b16 %v33
  %v260 = vunpack.c.l.b16 %v34
  %v261 = vunpack.c.h.b16 %v34
  %v262 = vunpack.c.l.b16 %v35
  %v263 = vunpack.c.h.b16 %v35
  %v264 = vunpack.c.l.b16 %v36
  %v265 = vunpack.c.h.b16 %v36
  %v266 = vunpack.c.l.b16 %v37
  %v267 = vunpack.c.h.b16 %v37
  %v268 = vunpack.c.l.b16 %v38
  %v269 = vunpack.c.h.b16 %v38
  %v270 = vunpack.c.l.b16 %v39
  %v271 = vunpack.c.h.b16 %v39
  %v272 = vunpack.c.l.b16 %v40
  %v273 = vunpack.c.h.b16 %v40
  %v274 = vunpack.c.l.b16 %v41
  %v275 = vunpack.c.h.b16 %v41
  %v276 = vunpack.c.l.b16 %v42
  %v277 = vunpack.c.h.b16 %v42
  %v278 = vunpack.c.l.b16 %v43
  %v279 = vunpack.c.h.b16 %v43
  %v280 = vunpack.c.l.b16 %v44
  %v281 = vunpack.c.h.b16 %v44
  %v282 = vunpack.c.l.b16 %v45
  %v283 = vunpack.c.h.b16 %v45
  %v284 = vunpack.c.l.b16 %v46
  %v285 = vunpack.c.h.b16 %v46
  %v286 = vunpack.c.l.b16 %v47
  %v287 = vunpack.c.h.b16 %v47
  %v288 = vunpack.c.l.b16 %v48
  %v289 = vunpack.c.h.b16 %v48
  %v290 = vunpack.c.l.b16 %v49
  %v291 = vunpack.c.h.b16 %v49
  %v292 = vunpack.c.l.b16 %v50
  %v293 = vunpack.c.h.b16 %v50
  %v294 = vpack.c.b16 %v230, %v222
  %v295 = vpack.c.b16 %v231, %v223
  %v296 = vpack.c.b16 %v232, %v224
  %v297 = vpack.c.b16 %v233, %v225
  %v298 = vpack.c.b16 %v234, %v226
  %v299 = vpack.c.b16 %v235, %v227
  %v300 = vpack.c.b16 %v236, %v228
  %v301 = vpack.c.b16 %v237, %v229
  %v302 = vpack.c.b16 %v246, %v238
  %v303 = vpack.c.b16 %v247, %v239
  %v304 = vpack.c.b16 %v248, %v240
  %v305 = vpack.c.b16 %v249, %v241
  %v306 = vpack.c.b16 %v250, %v242
  %v307 = vpack.c.b16 %v251, %v243
  %v308 = vpack.c.b16 %v252, %v244
  %v309 = vpack.c.b16 %v253, %v245
  %v310 = vpack.c.b16 %v262, %v254
  %v311 = vpack.c.b16 %v263, %v255
  %v312 = vpack.c.b16 %v264, %v256
  %v313 = vpack.c.b16 %v265, %v257
  %v314 = vpack.c.b16 %v266, %v258
  %v315 = vpack.c.b16 %v267, %v259
  %v316 = vpack.c.b16 %v268, %v260
  %v317 = vpack.c.b16 %v269, %v261
  %v318 = vpack.c.b16 %v278, %v270
  %v319 = vpack.c.b16 %v279, %v271
  %v320 = vpack.c.b16 %v280, %v272
  %v321 = vpack.c.b16 %v281, %v273
  %v322 = vpack.c.b16 %v282, %v274
  %v323 = vpack.c.b16 %v283, %v275
  %v324 = vpack.c.b16 %v284, %v276
  %v325 = vpack.c.b16 %v285, %v277
  %v326 = vpack.c.b16 %v286, %v286
  %v327 = vpack.c.b16 %v287, %v287
  %v328 = vpack.c.b16 %v288, %v288
  %v329 = vpack.c.b16 %v289, %v289
  %v330 = vpack.c.b16 %v290, %v290
  %v331 = vpack.c.b16 %v291, %v291
  %v332 = vpack.c.b16 %v292, %v292
  %v333 = vpack.c.b16 %v293, %v293
  %v502 = vunpack.c.l.b16 %v51
  %v503 = vunpack.c.l.b16 %v52
  %v504 = vunpack.c.l.b16 %v53
  %v505 = vunpack.c.l.b16 %v54
  %v506 = vunpack.c.l.b16 %v55
  %v507 = vunpack.c.l.b16 %v56
  %v508 = vunpack.c.l.b16 %v57
  %v509 = vunpack.c.l.b16 %v58
  %v510 = vunpack.c.l.b16 %v59
  %v511 = vunpack.c.l.b16 %v60
  %v512 = vunpack.c.l.b16 %v61
  %v513 = vunpack.c.l.b16 %v62
  %v514 = vunpack.c.l.b16 %v63
  %v515 = vunpack.c.l.b16 %v64
  %v516 = vunpack.c.l.b16 %v65
  %v517 = vunpack.c.l.b16 %v66
  %v518 = vunpack.c.l.b16 %v67
  %v519 = vunpack.c.l.b16 %v68
  %v520 = vunpack.c.l.b16 %v69
  %v521 = vunpack.c.l.b16 %v70
  %v522 = vunpack.c.l.b16 %v71
  %v523 = vunpack.c.l.b16 %v72
  %v524 = vunpack.c.l.b16 %v73
  %v525 = vunpack.c.l.b16 %v74
  %v526 = vunpack.c.l.b16 %v75
  %v527 = vunpack.c.l.b16 %v76
  %v528 = vunpack.c.l.b16 %v77
  %v529 = vunpack.c.l.b16 %v78
  %v530 = vunpack.c.l.b16 %v79
  %v531 = vunpack.c.l.b16 %v80
  %v532 = vunpack.c.l.b16 %v81
  %v533 = vunpack.c.l.b16 %v82
  %v534 = vunpack.c.l.b16 %v83
  %v535 = vunpack.c.l.b16 %v84
  %v536 = vunpack.c.l.b16 %v85
  %v537 = vunpack.c.l.b16 %v86
  %v538 = vunpack.c.l.b16 %v87
  %v539 = vunpack.c.l.b16 %v88
  %v540 = vunpack.c.l.b16 %v89
  %v541 = vunpack.c.l.b16 %v90
  %v542 = vunpack.c.l.b16 %v91
  %v543 = vunpack.c.l.b16 %v92
  %v544 = vunpack.c.l.b16 %v93
  %v545 = vunpack.c.l.b16 %v94
  %v546 = vunpack.c.l.b16 %v95
  %v547 = vunpack.c.l.b16 %v96
  %v548 = vunpack.c.l.b16 %v97
  %v549 = vunpack.c.l.b16 %v98
  %v550 = vunpack.c.l.b16 %v99
  %v551 = vunpack.c.l.b16 %v100
  %v552 = vunpack.c.l.b16 %v101
  %v553 = vunpack.c.l.b16 %v102
  %v554 = vunpack.c.l.b16 %v103
  %v555 = vunpack.c.l.b16 %v104
  %v556 = vunpack.c.l.b16 %v105
  %v557 = vunpack.c.l.b16 %v106
  %v558 = vunpack.c.l.b16 %v107
  %v559 = vunpack.c.l.b16 %v108
  %v560 = vunpack.c.l.b16 %v109
  %v561 = vunpack.c.l.b16 %v110
  %v562 = vunpack.c.l.b16 %v111
  %v563 = vunpack.c.l.b16 %v112
  %v564 = vunpack.c.l.b16 %v113
  %v565 = vunpack.c.l.b16 %v114
  %v566 = vunpack.c.l.b16 %v115
  %v567 = vunpack.c.l.b16 %v116
  %v568 = vunpack.c.l.b16 %v117
  %v569 = vunpack.c.l.b16 %v118
  %v570 = vunpack.c.l.b16 %v119
  %v571 = vunpack.c.l.b16 %v120
  %v572 = vunpack.c.l.b16 %v121
  %v573 = vunpack.c.l.b16 %v122
  %v574 = vunpack.c.l.b16 %v123
  %v575 = vunpack.c.l.b16 %v124
  %v576 = vunpack.c.l.b16 %v125
  %v577 = vunpack.c.l.b16 %v126
  %v578 = vunpack.c.l.b16 %v127
  %v579 = vunpack.c.l.b16 %v128
  %v580 = vunpack.c.l.b16 %v129
  %v581 = vunpack.c.l.b16 %v130
  %v582 = vunpack.c.l.b16 %v131
  %v583 = vunpack.c.l.b16 %v132
  %v584 = vunpack.c.l.b16 %v133
  %v585 = vunpack.c.l.b16 %v134
  %v586 = vunpack.c.l.b16 %v135
  %v587 = vunpack.c.l.b16 %v136
  %v588 = vunpack.c.l.b16 %v137
  %v589 = vunpack.c.l.b16 %v138
  %v590 = vunpack.c.l.b16 %v139
  %v591 = vunpack.c.l.b16 %v140
  %v592 = vunpack.c.l.b16 %v141
  %v593 = vunpack.c.l.b16 %v142
  %v594 = vunpack.c.l.b16 %v143
  %v595 = vunpack.c.l.b16 %v144
  %v596 = vunpack.c.l.b16 %v145
  %v597 = vunpack.c.l.b16 %v146
  %v598 = vunpack.c.l.b16 %v147
  %v599 = vunpack.c.l.b16 %v148
  %v600 = vunpack.c.l.b16 %v149
  %v601 = vunpack.c.l.b16 %v150
  %v602 = vunpack.c.l.b16 %v151
  %v603 = vunpack.c.l.b16 %v152
  %v604 = vunpack.c.l.b16 %v153
  %v605 = vunpack.c.l.b16 %v154
  %v606 = vunpack.c.l.b16 %v155
  %v607 = vunpack.c.l.b16 %v156
  %v608 = vunpack.c.l.b16 %v157
  %v609 = vunpack.c.l.b16 %v158
  %v610 = vunpack.c.l.b16 %v159
  %v611 = vunpack.c.l.b16 %v160
  %v612 = vunpack.c.l.b16 %v161
  %v613 = vunpack.c.l.b16 %v162
  %v614 = vunpack.c.l.b16 %v163
  %v615 = vunpack.c.l.b16 %v164
  %v616 = vunpack.c.l.b16 %v165
  %v617 = vunpack.c.l.b16 %v166
  %v618 = vunpack.c.l.b16 %v167
  %v619 = vunpack.c.l.b16 %v168
  %v620 = vunpack.c.l.b16 %v169
  %v621 = vunpack.c.l.b16 %v170
  %v622 = vunpack.c.l.b16 %v171
  %v623 = vunpack.c.l.b16 %v172
  %v624 = vunpack.c.l.b16 %v173
  %v625 = vunpack.c.l.b16 %v174
  %v626 = vunpack.c.l.b16 %v175
  %v627 = vunpack.c.l.b16 %v176
  %v628 = vunpack.c.l.b16 %v177
  %v629 = vunpack.c.l.b16 %v178
  %v630 = vpack.c.b16 %v503, %v502
  %v631 = vpack.c.b16 %v505, %v504
  %v632 = vpack.c.b16 %v507, %v506
  %v633 = vpack.c.b16 %v509, %v508
  %v634 = vpack.c.b16 %v511, %v510
  %v635 = vpack.c.b16 %v513, %v512
  %v636 = vpack.c.b16 %v515, %v514
  %v637 = vpack.c.b16 %v517, %v516
  %v638 = vpack.c.b16 %v519, %v518
  %v639 = vpack.c.b16 %v521, %v520
  %v640 = vpack.c.b16 %v523, %v522
  %v641 = vpack.c.b16 %v525, %v524
  %v642 = vpack.c.b16 %v527, %v526
  %v643 = vpack.c.b16 %v529, %v528
  %v644 = vpack.c.b16 %v531, %v530
  %v645 = vpack.c.b16 %v533, %v532
  %v646 = vpack.c.b16 %v535, %v534
  %v647 = vpack.c.b16 %v537, %v536
  %v648 = vpack.c.b16 %v539, %v538
  %v649 = vpack.c.b16 %v541, %v540
  %v650 = vpack.c.b16 %v543, %v542
  %v651 = vpack.c.b16 %v545, %v544
  %v652 = vpack.c.b16 %v547, %v546
  %v653 = vpack.c.b16 %v549, %v548
  %v654 = vpack.c.b16 %v551, %v550
  %v655 = vpack.c.b16 %v553, %v552
  %v656 = vpack.c.b16 %v555, %v554
  %v657 = vpack.c.b16 %v557, %v556
  %v658 = vpack.c.b16 %v559, %v558
  %v659 = vpack.c.b16 %v561, %v560
  %v660 = vpack.c.b16 %v563, %v562
  %v661 = vpack.c.b16 %v565, %v564
  %v662 = vpack.c.b16 %v567, %v566
  %v663 = vpack.c.b16 %v569, %v568
  %v664 = vpack.c.b16 %v571, %v570
  %v665 = vpack.c.b16 %v573, %v572
  %v666 = vpack.c.b16 %v575, %v574
  %v667 = vpack.c.b16 %v577, %v576
  %v668 = vpack.c.b16 %v579, %v578
  %v669 = vpack.c.b16 %v581, %v580
  %v670 = vpack.c.b16 %v583, %v582
  %v671 = vpack.c.b16 %v585, %v584
  %v672 = vpack.c.b16 %v587, %v586
  %v673 = vpack.c.b16 %v589, %v588
  %v674 = vpack.c.b16 %v591, %v590
  %v675 = vpack.c.b16 %v593, %v592
  %v676 = vpack.c.b16 %v595, %v594
  %v677 = vpack.c.b16 %v597, %v596
  %v678 = vpack.c.b16 %v599, %v598
  %v679 = vpack.c.b16 %v601, %v600
  %v680 = vpack.c.b16 %v603, %v602
  %v681 = vpack.c.b16 %v605, %v604
  %v682 = vpack.c.b16 %v607, %v606
  %v683 = vpack.c.b16 %v609, %v608
  %v684 = vpack.c.b16 %v611, %v610
  %v685 = vpack.c.b16 %v613, %v612
  %v686 = vpack.c.b16 %v615, %v614
  %v687 = vpack.c.b16 %v617, %v616
  %v688 = vpack.c.b16 %v619, %v618
  %v689 = vpack.c.b16 %v621, %v620
  %v690 = vpack.c.b16 %v623, %v622
  %v691 = vpack.c.b16 %v625, %v624
  %v692 = vpack.c.b16 %v627, %v626
  %v693 = vpack.c.b16 %v629, %v628
  %758 = vmatprep.subr.bf16.mxu0 0
  %759 = vmatpush1.bf16.msra.mxu0 %v637
  %760 = vmatprep.subr.bf16.mxu0 0
  %761 = vmatpush1.bf16.msra.mxu0 %v636
  %762 = vmatprep.subr.bf16.mxu0 0
  %763 = vmatpush1.bf16.msra.mxu0 %v635
  %764 = vmatprep.subr.bf16.mxu0 0
  %765 = vmatpush1.bf16.msra.mxu0 %v634
  %766 = vmatprep.subr.bf16.mxu0 0
  %767 = vmatpush1.bf16.msra.mxu0 %v633
  %768 = vmatprep.subr.bf16.mxu0 0
  %769 = vmatpush1.bf16.msra.mxu0 %v632
  %770 = vmatprep.subr.bf16.mxu0 0
  %771 = vmatpush1.bf16.msra.mxu0 %v631
  %772 = vmatprep.subr.bf16.mxu0 0
  %773 = vmatpush1.bf16.msra.mxu0 %v630
  %774 = vmatprep.subr.bf16.mxu0 0
  %775 = vmatpush2.bf16.msra.mxu0 %v645
  %776 = vmatprep.subr.bf16.mxu0 0
  %777 = vmatpush2.bf16.msra.mxu0 %v644
  %778 = vmatprep.subr.bf16.mxu0 0
  %779 = vmatpush2.bf16.msra.mxu0 %v643
  %780 = vmatprep.subr.bf16.mxu0 0
  %781 = vmatpush2.bf16.msra.mxu0 %v642
  %782 = vmatprep.subr.bf16.mxu0 0
  %783 = vmatpush2.bf16.msra.mxu0 %v641
  %784 = vmatprep.subr.bf16.mxu0 0
  %785 = vmatpush2.bf16.msra.mxu0 %v640
  %786 = vmatprep.subr.bf16.mxu0 0
  %787 = vmatpush2.bf16.msra.mxu0 %v639
  %788 = vmatprep.subr.bf16.mxu0 0
  %789 = vmatpush2.bf16.msra.mxu0 %v638
  %790 = vmatprep.mubr.bf16.mxu0 %v295
  %791 = vmatmul.mubr.bf16.gmra.mxu0 %v294
  %v792 = vpop.f32.mrf.mxu0
  %v793 = vadd.f32 %v184, %v792
  %v794 = vpop.f32.mrf.mxu0
  %v795 = vpop.f32.mrf.mxu0
  %v796 = vadd.f32 %v184, %v795
  %v797 = vpop.f32.mrf.mxu0
  %798 = vmatprep.mubr.bf16.mxu0 %v303
  %799 = vmatmul.mubr.bf16.gmra.mxu0 %v302
  %v800 = vpop.f32.mrf.mxu0
  %v801 = vadd.f32 %v184, %v800
  %v802 = vpop.f32.mrf.mxu0
  %v803 = vpop.f32.mrf.mxu0
  %v804 = vadd.f32 %v184, %v803
  %v805 = vpop.f32.mrf.mxu0
  %806 = vmatprep.mubr.bf16.mxu0 %v311
  %807 = vmatmul.mubr.bf16.gmra.mxu0 %v310
  %v808 = vpop.f32.mrf.mxu0
  %v809 = vadd.f32 %v184, %v808
  %v810 = vpop.f32.mrf.mxu0
  %v811 = vpop.f32.mrf.mxu0
  %v812 = vadd.f32 %v184, %v811
  %v813 = vpop.f32.mrf.mxu0
  %814 = vmatprep.mubr.bf16.mxu0 %v319
  %815 = vmatmul.mubr.bf16.gmra.mxu0 %v318
  %v816 = vpop.f32.mrf.mxu0
  %v817 = vadd.f32 %v184, %v816
  %v818 = vpop.f32.mrf.mxu0
  %v819 = vpop.f32.mrf.mxu0
  %v820 = vadd.f32 %v184, %v819
  %v821 = vpop.f32.mrf.mxu0
  %822 = vmatprep.mubr.bf16.mxu0 %v327
  %823 = vmatmul.mubr.bf16.gmra.mxu0 %v326
  %v824 = vpop.f32.mrf.mxu0
  %v825 = vadd.f32 %v184, %v824
  %v826 = vpop.f32.mrf.mxu0
  %v827 = vpop.f32.mrf.mxu0
  %v828 = vpop.f32.mrf.mxu0
  %829 = vdwg.mxu0
  %830 = vmatprep.subr.bf16.mxu0 0
  %831 = vmatpush1.bf16.msra.mxu0 %v653
  %832 = vmatprep.subr.bf16.mxu0 0
  %833 = vmatpush1.bf16.msra.mxu0 %v652
  %834 = vmatprep.subr.bf16.mxu0 0
  %835 = vmatpush1.bf16.msra.mxu0 %v651
  %836 = vmatprep.subr.bf16.mxu0 0
  %837 = vmatpush1.bf16.msra.mxu0 %v650
  %838 = vmatprep.subr.bf16.mxu0 0
  %839 = vmatpush1.bf16.msra.mxu0 %v649
  %840 = vmatprep.subr.bf16.mxu0 0
  %841 = vmatpush1.bf16.msra.mxu0 %v648
  %842 = vmatprep.subr.bf16.mxu0 0
  %843 = vmatpush1.bf16.msra.mxu0 %v647
  %844 = vmatprep.subr.bf16.mxu0 0
  %845 = vmatpush1.bf16.msra.mxu0 %v646
  %846 = vmatprep.subr.bf16.mxu0 0
  %847 = vmatpush2.bf16.msra.mxu0 %v661
  %848 = vmatprep.subr.bf16.mxu0 0
  %849 = vmatpush2.bf16.msra.mxu0 %v660
  %850 = vmatprep.subr.bf16.mxu0 0
  %851 = vmatpush2.bf16.msra.mxu0 %v659
  %852 = vmatprep.subr.bf16.mxu0 0
  %853 = vmatpush2.bf16.msra.mxu0 %v658
  %854 = vmatprep.subr.bf16.mxu0 0
  %855 = vmatpush2.bf16.msra.mxu0 %v657
  %856 = vmatprep.subr.bf16.mxu0 0
  %857 = vmatpush2.bf16.msra.mxu0 %v656
  %858 = vmatprep.subr.bf16.mxu0 0
  %859 = vmatpush2.bf16.msra.mxu0 %v655
  %860 = vmatprep.subr.bf16.mxu0 0
  %861 = vmatpush2.bf16.msra.mxu0 %v654
  %862 = vmatprep.mubr.bf16.mxu0 %v297
  %863 = vmatmul.mubr.bf16.gmra.mxu0 %v296
  %v864 = vpop.f32.mrf.mxu0
  %v865 = vadd.f32 %v793, %v864
  %v866 = vpop.f32.mrf.mxu0
  %v867 = vpop.f32.mrf.mxu0
  %v868 = vadd.f32 %v796, %v867
  %v869 = vpop.f32.mrf.mxu0
  %870 = vmatprep.mubr.bf16.mxu0 %v305
  %871 = vmatmul.mubr.bf16.gmra.mxu0 %v304
  %v872 = vpop.f32.mrf.mxu0
  %v873 = vadd.f32 %v801, %v872
  %v874 = vpop.f32.mrf.mxu0
  %v875 = vpop.f32.mrf.mxu0
  %v876 = vadd.f32 %v804, %v875
  %v877 = vpop.f32.mrf.mxu0
  %878 = vmatprep.mubr.bf16.mxu0 %v313
  %879 = vmatmul.mubr.bf16.gmra.mxu0 %v312
  %v880 = vpop.f32.mrf.mxu0
  %v881 = vadd.f32 %v809, %v880
  %v882 = vpop.f32.mrf.mxu0
  %v883 = vpop.f32.mrf.mxu0
  %v884 = vadd.f32 %v812, %v883
  %v885 = vpop.f32.mrf.mxu0
  %886 = vmatprep.mubr.bf16.mxu0 %v321
  %887 = vmatmul.mubr.bf16.gmra.mxu0 %v320
  %v888 = vpop.f32.mrf.mxu0
  %v889 = vadd.f32 %v817, %v888
  %v890 = vpop.f32.mrf.mxu0
  %v891 = vpop.f32.mrf.mxu0
  %v892 = vadd.f32 %v820, %v891
  %v893 = vpop.f32.mrf.mxu0
  %894 = vmatprep.mubr.bf16.mxu0 %v329
  %895 = vmatmul.mubr.bf16.gmra.mxu0 %v328
  %v896 = vpop.f32.mrf.mxu0
  %v897 = vadd.f32 %v825, %v896
  %v898 = vpop.f32.mrf.mxu0
  %v899 = vpop.f32.mrf.mxu0
  %v900 = vpop.f32.mrf.mxu0
  %901 = vdwg.mxu0
  %902 = vmatprep.subr.bf16.mxu0 0
  %903 = vmatpush1.bf16.msra.mxu0 %v669
  %904 = vmatprep.subr.bf16.mxu0 0
  %905 = vmatpush1.bf16.msra.mxu0 %v668
  %906 = vmatprep.subr.bf16.mxu0 0
  %907 = vmatpush1.bf16.msra.mxu0 %v667
  %908 = vmatprep.subr.bf16.mxu0 0
  %909 = vmatpush1.bf16.msra.mxu0 %v666
  %910 = vmatprep.subr.bf16.mxu0 0
  %911 = vmatpush1.bf16.msra.mxu0 %v665
  %912 = vmatprep.subr.bf16.mxu0 0
  %913 = vmatpush1.bf16.msra.mxu0 %v664
  %914 = vmatprep.subr.bf16.mxu0 0
  %915 = vmatpush1.bf16.msra.mxu0 %v663
  %916 = vmatprep.subr.bf16.mxu0 0
  %917 = vmatpush1.bf16.msra.mxu0 %v662
  %918 = vmatprep.subr.bf16.mxu0 0
  %919 = vmatpush2.bf16.msra.mxu0 %v677
  %920 = vmatprep.subr.bf16.mxu0 0
  %921 = vmatpush2.bf16.msra.mxu0 %v676
  %922 = vmatprep.subr.bf16.mxu0 0
  %923 = vmatpush2.bf16.msra.mxu0 %v675
  %924 = vmatprep.subr.bf16.mxu0 0
  %925 = vmatpush2.bf16.msra.mxu0 %v674
  %926 = vmatprep.subr.bf16.mxu0 0
  %927 = vmatpush2.bf16.msra.mxu0 %v673
  %928 = vmatprep.subr.bf16.mxu0 0
  %929 = vmatpush2.bf16.msra.mxu0 %v672
  %930 = vmatprep.subr.bf16.mxu0 0
  %931 = vmatpush2.bf16.msra.mxu0 %v671
  %932 = vmatprep.subr.bf16.mxu0 0
  %933 = vmatpush2.bf16.msra.mxu0 %v670
  %934 = vmatprep.mubr.bf16.mxu0 %v299
  %935 = vmatmul.mubr.bf16.gmra.mxu0 %v298
  %v936 = vpop.f32.mrf.mxu0
  %v937 = vadd.f32 %v865, %v936
  %v938 = vpop.f32.mrf.mxu0
  %v939 = vpop.f32.mrf.mxu0
  %v940 = vadd.f32 %v868, %v939
  %v941 = vpop.f32.mrf.mxu0
  %942 = vmatprep.mubr.bf16.mxu0 %v307
  %943 = vmatmul.mubr.bf16.gmra.mxu0 %v306
  %v944 = vpop.f32.mrf.mxu0
  %v945 = vadd.f32 %v873, %v944
  %v946 = vpop.f32.mrf.mxu0
  %v947 = vpop.f32.mrf.mxu0
  %v948 = vadd.f32 %v876, %v947
  %v949 = vpop.f32.mrf.mxu0
  %950 = vmatprep.mubr.bf16.mxu0 %v315
  %951 = vmatmul.mubr.bf16.gmra.mxu0 %v314
  %v952 = vpop.f32.mrf.mxu0
  %v953 = vadd.f32 %v881, %v952
  %v954 = vpop.f32.mrf.mxu0
  %v955 = vpop.f32.mrf.mxu0
  %v956 = vadd.f32 %v884, %v955
  %v957 = vpop.f32.mrf.mxu0
  %958 = vmatprep.mubr.bf16.mxu0 %v323
  %959 = vmatmul.mubr.bf16.gmra.mxu0 %v322
  %v960 = vpop.f32.mrf.mxu0
  %v961 = vadd.f32 %v889, %v960
  %v962 = vpop.f32.mrf.mxu0
  %v963 = vpop.f32.mrf.mxu0
  %v964 = vadd.f32 %v892, %v963
  %v965 = vpop.f32.mrf.mxu0
  %966 = vmatprep.mubr.bf16.mxu0 %v331
  %967 = vmatmul.mubr.bf16.gmra.mxu0 %v330
  %v968 = vpop.f32.mrf.mxu0
  %v969 = vadd.f32 %v897, %v968
  %v970 = vpop.f32.mrf.mxu0
  %v971 = vpop.f32.mrf.mxu0
  %v972 = vpop.f32.mrf.mxu0
  %973 = vdwg.mxu0
  %974 = vmatprep.subr.bf16.mxu0 0
  %975 = vmatpush1.bf16.msra.mxu0 %v685
  %976 = vmatprep.subr.bf16.mxu0 0
  %977 = vmatpush1.bf16.msra.mxu0 %v684
  %978 = vmatprep.subr.bf16.mxu0 0
  %979 = vmatpush1.bf16.msra.mxu0 %v683
  %980 = vmatprep.subr.bf16.mxu0 0
  %981 = vmatpush1.bf16.msra.mxu0 %v682
  %982 = vmatprep.subr.bf16.mxu0 0
  %983 = vmatpush1.bf16.msra.mxu0 %v681
  %984 = vmatprep.subr.bf16.mxu0 0
  %985 = vmatpush1.bf16.msra.mxu0 %v680
  %986 = vmatprep.subr.bf16.mxu0 0
  %987 = vmatpush1.bf16.msra.mxu0 %v679
  %988 = vmatprep.subr.bf16.mxu0 0
  %989 = vmatpush1.bf16.msra.mxu0 %v678
  %990 = vmatprep.subr.bf16.mxu0 0
  %991 = vmatpush2.bf16.msra.mxu0 %v693
  %992 = vmatprep.subr.bf16.mxu0 0
  %993 = vmatpush2.bf16.msra.mxu0 %v692
  %994 = vmatprep.subr.bf16.mxu0 0
  %995 = vmatpush2.bf16.msra.mxu0 %v691
  %996 = vmatprep.subr.bf16.mxu0 0
  %997 = vmatpush2.bf16.msra.mxu0 %v690
  %998 = vmatprep.subr.bf16.mxu0 0
  %999 = vmatpush2.bf16.msra.mxu0 %v689
  %1000 = vmatprep.subr.bf16.mxu0 0
  %1001 = vmatpush2.bf16.msra.mxu0 %v688
  %1002 = vmatprep.subr.bf16.mxu0 0
  %1003 = vmatpush2.bf16.msra.mxu0 %v687
  %1004 = vmatprep.subr.bf16.mxu0 0
  %1005 = vmatpush2.bf16.msra.mxu0 %v686
  %1006 = vmatprep.mubr.bf16.mxu0 %v301
  %1007 = vmatmul.mubr.bf16.gmra.mxu0 %v300
  %v1008 = vpop.f32.mrf.mxu0
  %v1009 = vadd.f32 %v937, %v1008
  %v1010 = vpop.f32.mrf.mxu0
  %v1011 = vpop.f32.mrf.mxu0
  %v1012 = vadd.f32 %v940, %v1011
  %v1013 = vpop.f32.mrf.mxu0
  %1014 = vmatprep.mubr.bf16.mxu0 %v309
  %1015 = vmatmul.mubr.bf16.gmra.mxu0 %v308
  %v1016 = vpop.f32.mrf.mxu0
  %v1017 = vadd.f32 %v945, %v1016
  %v1018 = vpop.f32.mrf.mxu0
  %v1019 = vpop.f32.mrf.mxu0
  %v1020 = vadd.f32 %v948, %v1019
  %v1021 = vpop.f32.mrf.mxu0
  %1022 = vmatprep.mubr.bf16.mxu0 %v317
  %1023 = vmatmul.mubr.bf16.gmra.mxu0 %v316
  %v1024 = vpop.f32.mrf.mxu0
  %v1025 = vadd.f32 %v953, %v1024
  %v1026 = vpop.f32.mrf.mxu0
  %v1027 = vpop.f32.mrf.mxu0
  %v1028 = vadd.f32 %v956, %v1027
  %v1029 = vpop.f32.mrf.mxu0
  %1030 = vmatprep.mubr.bf16.mxu0 %v325
  %1031 = vmatmul.mubr.bf16.gmra.mxu0 %v324
  %v1032 = vpop.f32.mrf.mxu0
  %v1033 = vadd.f32 %v961, %v1032
  %v1034 = vpop.f32.mrf.mxu0
  %v1035 = vpop.f32.mrf.mxu0
  %v1036 = vadd.f32 %v964, %v1035
  %v1037 = vpop.f32.mrf.mxu0
  %1038 = vmatprep.mubr.bf16.mxu0 %v333
  %1039 = vmatmul.mubr.bf16.gmra.mxu0 %v332
  %v1040 = vpop.f32.mrf.mxu0
  %v1041 = vadd.f32 %v969, %v1040
  %v1042 = vpop.f32.mrf.mxu0
  %v1043 = vpop.f32.mrf.mxu0
  %v1044 = vpop.f32.mrf.mxu0
  %1045 = vdwg.mxu0
  %vm1046 = vcmp.ge.f32.partialorder %v1009, 0.0
  %vm1047 = vcmp.ge.f32.partialorder %v1012, 0.0
  %vm1048 = vcmp.ge.f32.partialorder %v1017, 0.0
  %vm1049 = vcmp.ge.f32.partialorder %v1020, 0.0
  %vm1050 = vcmp.ge.f32.partialorder %v1025, 0.0
  %vm1051 = vcmp.ge.f32.partialorder %v1028, 0.0
  %vm1052 = vcmp.ge.f32.partialorder %v1033, 0.0
  %vm1053 = vcmp.ge.f32.partialorder %v1036, 0.0
  %vm1054 = vcmp.ge.f32.partialorder %v1041, 0.0
  %v1055 = vmul.f32 %v1009, 0.01
  %v1056 = vmul.f32 %v1012, 0.01
  %v1057 = vmul.f32 %v1017, 0.01
  %v1058 = vmul.f32 %v1020, 0.01
  %v1059 = vmul.f32 %v1025, 0.01
  %v1060 = vmul.f32 %v1028, 0.01
  %v1061 = vmul.f32 %v1033, 0.01
  %v1062 = vmul.f32 %v1036, 0.01
  %v1063 = vmul.f32 %v1041, 0.01
  %v1064 = vsel %vm1046, %v1009, %v1055
  %v1065 = vsel %vm1047, %v1012, %v1056
  %v1066 = vsel %vm1048, %v1017, %v1057
  %v1067 = vsel %vm1049, %v1020, %v1058
  %v1068 = vsel %vm1050, %v1025, %v1059
  %v1069 = vsel %vm1051, %v1028, %v1060
  %v1070 = vsel %vm1052, %v1033, %v1061
  %v1071 = vsel %vm1053, %v1036, %v1062
  %v1072 = vsel %vm1054, %v1041, %v1063
  %vm1073 = vcmask 523264
  %1074 = vst.msk [vmem:[%s3] sm:$0xff] %vm1073, %v1064
  %1075 = vst.msk [vmem:[%s3 + $0x8] sm:$0xff] %vm1073, %v1065
  %1076 = vst.msk [vmem:[%s3 + $0x10] sm:$0xff] %vm1073, %v1066
  %1077 = vst.msk [vmem:[%s3 + $0x18] sm:$0xff] %vm1073, %v1067
  %1078 = vst.msk [vmem:[%s3 + $0x20] sm:$0xff] %vm1073, %v1068
  %1079 = vst.msk [vmem:[%s3 + $0x28] sm:$0xff] %vm1073, %v1069
  %1080 = vst.msk [vmem:[%s3 + $0x30] sm:$0xff] %vm1073, %v1070
  %1081 = vst.msk [vmem:[%s3 + $0x38] sm:$0xff] %vm1073, %v1071
  %1082 = vst.msk [vmem:[%s3 + $0x40] sm:$0xff] %vm1073, %v1072
  // Predicated region
  $region14: #{forward.7} parent=0 // pred_check
    _
  $region15: #{forward.7} parent=0 // pred_check_branch
    %1084 = sbr.rel (0) target = $region17
  $region16: #{forward.7} parent=0 // pred_region
    _
  $region17: #{forward.7} parent=0 // pred_fallthru
    _
  // Predicated region
  $region18: #{forward.7} parent=0 // pred_check
    _
  $region19: #{forward.7} parent=0 // pred_check_branch
    %1086 = sbr.rel (0) target = $region21
  $region20: #{forward.7} parent=0 // pred_region
    _
  $region21: #{forward.7} parent=0 // pred_fallthru
    _

// kernel: forward.9
$region0: #{forward.9}
  #allocation0 [shape = 'u32[]', space=smem, size = 0x4, offset = 0x4, fixed_abs, tag = 'smem constant byte address 0x4 - core index']
  #allocation1 [shape = 'u32[144,128]{1,0:T(1,128)}', space=vmem, size = 0x12000, scoped, tag = 'internal scratch']
  %s0 = inlined_call_operand.vmem [shape: bf16[18,4], index: 0, kind: input, shape index: {}]
  %s1 = inlined_call_operand.vmem [shape: bf16[4,576], index: 1, kind: input, shape index: {}]
  %s2 = inlined_call_operand.vmem [shape: f32[18,576], index: 2, kind: output, shape index: {}]
  %s3 = sld [smem:[#allocation0]]
  $region18: #{forward.9} parent=0
    _
  %s5 = ssub.s32 1, %s3
  %s6 = scalar_select 0, %s5, %s3
  // Predicated region
  $region2: #{forward.9} parent=0 // pred_check
    _
  $region3: #{forward.9} parent=0 // pred_check_branch
    %8 = sbr.rel (0) target = $region5
  $region4: #{forward.9} parent=0 // pred_region
    _
  $region5: #{forward.9} parent=0 // pred_fallthru
    _
  // Predicated region
  $region6: #{forward.9} parent=0 // pred_check
    _
  $region7: #{forward.9} parent=0 // pred_check_branch
    %10 = sbr.rel (0) target = $region9
  $region8: #{forward.9} parent=0 // pred_region
    _
  $region9: #{forward.9} parent=0 // pred_fallthru
    _
  %v12 = vld [vmem:[%s0] sm:$0xf]
  %v13 = vld [vmem:[%s0 + $0x4] sm:$0xf]
  %v14 = vld [vmem:[%s0 + $0x8] sm:$0x1]
  %v15 = vld [vmem:[%s1] sm:$0xff]
  %v16 = vld [vmem:[%s1 + $0x8] sm:$0x3]
  %v20 = vunpack.c.l.b16 %v12
  %v21 = vunpack.c.l.b16 %v13
  %v22 = vunpack.c.l.b16 %v14
  %v23 = vpack.c.b16 %v21, %v20
  %v24 = vpack.c.b16 %v22, %v22
  %v27 = vcombine.high %v15, %v15
  %v29 = vunpack.c.l.s4 1983009808
  %v30 = vunpack.c.0.s8 %v29
  %v31 = vlaneseq
  %v32 = vshrl.u32 %v31, 7
  %v33 = vsub.s32 %v30, %v32
  %v34 = vrot.slane %v15, %v33
  %v36 = vunpack.c.l.s4 1983009808
  %v37 = vunpack.c.0.s8 %v36
  %v38 = vlaneseq
  %v39 = vshrl.u32 %v38, 7
  %v40 = vsub.s32 %v37, %v39
  %v41 = vrot.slane %v27, %v40
  %v42 = vcombine.high %v34, %v34
  %v43 = vcombine.high %v41, %v41
  %v45 = vunpack.c.l.s4 1983009808
  %v46 = vunpack.c.0.s8 %v45
  %v47 = vlaneseq
  %v48 = vshrl.u32 %v47, 7
  %v49 = vsub.s32 %v46, %v48
  %v50 = vrot.slane %v16, %v49
  %vm51 = vcmask 31744
  %v53 = vsel %vm51, %v23, 0
  %v56 = vsel %vm51, %v24, 0
  %vm58 = vcmask 1041408
  %v60 = vsel %vm58, %v34, 0
  %v63 = vsel %vm58, %v42, 0
  %v66 = vsel %vm58, %v41, 0
  %v69 = vsel %vm58, %v43, 0
  %v72 = vsel %vm58, %v50, 0
  %74 = vmatprep.subr.bf16.mxu0 0
  %75 = vmatpush1.bf16.msra.mxu0 0
  %76 = vmatprep.subr.bf16.mxu0 0
  %77 = vmatpush1.bf16.msra.mxu0 0
  %78 = vmatprep.subr.bf16.mxu0 0
  %79 = vmatpush1.bf16.msra.mxu0 0
  %80 = vmatprep.subr.bf16.mxu0 0
  %81 = vmatpush1.bf16.msra.mxu0 0
  %82 = vmatprep.subr.bf16.mxu0 0
  %83 = vmatpush1.bf16.msra.mxu0 0
  %84 = vmatprep.subr.bf16.mxu0 0
  %85 = vmatpush1.bf16.msra.mxu0 0
  %86 = vmatprep.subr.bf16.mxu0 0
  %87 = vmatpush1.bf16.msra.mxu0 0
  %88 = vmatprep.subr.bf16.mxu0 %v63
  %89 = vmatpush1.bf16.msra.mxu0 %v60
  %90 = vmatprep.subr.bf16.mxu0 0
  %91 = vmatpush2.bf16.msra.mxu0 0
  %92 = vmatprep.subr.bf16.mxu0 0
  %93 = vmatpush2.bf16.msra.mxu0 0
  %94 = vmatprep.subr.bf16.mxu0 0
  %95 = vmatpush2.bf16.msra.mxu0 0
  %96 = vmatprep.subr.bf16.mxu0 0
  %97 = vmatpush2.bf16.msra.mxu0 0
  %98 = vmatprep.subr.bf16.mxu0 0
  %99 = vmatpush2.bf16.msra.mxu0 0
  %100 = vmatprep.subr.bf16.mxu0 0
  %101 = vmatpush2.bf16.msra.mxu0 0
  %102 = vmatprep.subr.bf16.mxu0 0
  %103 = vmatpush2.bf16.msra.mxu0 0
  %104 = vmatprep.subr.bf16.mxu0 0
  %105 = vmatpush2.bf16.msra.mxu0 0
  %106 = vmatprep.mubr.bf16.mxu0 0
  %107 = vmatmul.mubr.bf16.gmra.mxu0 %v53
  %v108 = vpop.f32.mrf.mxu0
  %v109 = vadd.f32 0.0, %v108
  %v110 = vpop.f32.mrf.mxu0
  %v111 = vadd.f32 0.0, %v110
  %v112 = vpop.f32.mrf.mxu0
  %v113 = vadd.f32 0.0, %v112
  %v114 = vpop.f32.mrf.mxu0
  %v115 = vadd.f32 0.0, %v114
  %116 = vmatprep.mubr.bf16.mxu0 0
  %117 = vmatmul.mubr.bf16.gmra.mxu0 %v56
  %v118 = vpop.f32.mrf.mxu0
  %v119 = vadd.f32 0.0, %v118
  %v120 = vpop.f32.mrf.mxu0
  %v121 = vadd.f32 0.0, %v120
  %v122 = vpop.f32.mrf.mxu0
  %v123 = vpop.f32.mrf.mxu0
  %124 = vdwg.mxu0
  %125 = vmatprep.subr.bf16.mxu0 0
  %126 = vmatpush1.bf16.msra.mxu0 0
  %127 = vmatprep.subr.bf16.mxu0 0
  %128 = vmatpush1.bf16.msra.mxu0 0
  %129 = vmatprep.subr.bf16.mxu0 0
  %130 = vmatpush1.bf16.msra.mxu0 0
  %131 = vmatprep.subr.bf16.mxu0 0
  %132 = vmatpush1.bf16.msra.mxu0 0
  %133 = vmatprep.subr.bf16.mxu0 0
  %134 = vmatpush1.bf16.msra.mxu0 0
  %135 = vmatprep.subr.bf16.mxu0 0
  %136 = vmatpush1.bf16.msra.mxu0 0
  %137 = vmatprep.subr.bf16.mxu0 0
  %138 = vmatpush1.bf16.msra.mxu0 0
  %139 = vmatprep.subr.bf16.mxu0 %v69
  %140 = vmatpush1.bf16.msra.mxu0 %v66
  %141 = vmatprep.subr.bf16.mxu0 0
  %142 = vmatpush2.bf16.msra.mxu0 0
  %143 = vmatprep.subr.bf16.mxu0 0
  %144 = vmatpush2.bf16.msra.mxu0 0
  %145 = vmatprep.subr.bf16.mxu0 0
  %146 = vmatpush2.bf16.msra.mxu0 0
  %147 = vmatprep.subr.bf16.mxu0 0
  %148 = vmatpush2.bf16.msra.mxu0 0
  %149 = vmatprep.subr.bf16.mxu0 0
  %150 = vmatpush2.bf16.msra.mxu0 0
  %151 = vmatprep.subr.bf16.mxu0 0
  %152 = vmatpush2.bf16.msra.mxu0 0
  %153 = vmatprep.subr.bf16.mxu0 0
  %154 = vmatpush2.bf16.msra.mxu0 0
  %155 = vmatprep.subr.bf16.mxu0 0
  %156 = vmatpush2.bf16.msra.mxu0 0
  %157 = vmatprep.mubr.bf16.mxu0 0
  %158 = vmatmul.mubr.bf16.gmra.mxu0 %v53
  %v159 = vpop.f32.mrf.mxu0
  %v160 = vadd.f32 0.0, %v159
  %v161 = vpop.f32.mrf.mxu0
  %v162 = vadd.f32 0.0, %v161
  %v163 = vpop.f32.mrf.mxu0
  %v164 = vadd.f32 0.0, %v163
  %v165 = vpop.f32.mrf.mxu0
  %v166 = vadd.f32 0.0, %v165
  %167 = vmatprep.mubr.bf16.mxu0 0
  %168 = vmatmul.mubr.bf16.gmra.mxu0 %v56
  %v169 = vpop.f32.mrf.mxu0
  %v170 = vadd.f32 0.0, %v169
  %v171 = vpop.f32.mrf.mxu0
  %v172 = vadd.f32 0.0, %v171
  %v173 = vpop.f32.mrf.mxu0
  %v174 = vpop.f32.mrf.mxu0
  %175 = vdwg.mxu0
  %176 = vmatprep.subr.bf16.mxu0 0
  %177 = vmatpush1.bf16.msra.mxu0 0
  %178 = vmatprep.subr.bf16.mxu0 0
  %179 = vmatpush1.bf16.msra.mxu0 0
  %180 = vmatprep.subr.bf16.mxu0 0
  %181 = vmatpush1.bf16.msra.mxu0 0
  %182 = vmatprep.subr.bf16.mxu0 0
  %183 = vmatpush1.bf16.msra.mxu0 0
  %184 = vmatprep.subr.bf16.mxu0 0
  %185 = vmatpush1.bf16.msra.mxu0 0
  %186 = vmatprep.subr.bf16.mxu0 0
  %187 = vmatpush1.bf16.msra.mxu0 0
  %188 = vmatprep.subr.bf16.mxu0 0
  %189 = vmatpush1.bf16.msra.mxu0 0
  %190 = vmatprep.subr.bf16.mxu0 0
  %191 = vmatpush1.bf16.msra.mxu0 %v72
  %192 = vmatprep.subr.bf16.mxu0 0
  %193 = vmatpush2.bf16.msra.mxu0 0
  %194 = vmatprep.subr.bf16.mxu0 0
  %195 = vmatpush2.bf16.msra.mxu0 0
  %196 = vmatprep.subr.bf16.mxu0 0
  %197 = vmatpush2.bf16.msra.mxu0 0
  %198 = vmatprep.subr.bf16.mxu0 0
  %199 = vmatpush2.bf16.msra.mxu0 0
  %200 = vmatprep.subr.bf16.mxu0 0
  %201 = vmatpush2.bf16.msra.mxu0 0
  %202 = vmatprep.subr.bf16.mxu0 0
  %203 = vmatpush2.bf16.msra.mxu0 0
  %204 = vmatprep.subr.bf16.mxu0 0
  %205 = vmatpush2.bf16.msra.mxu0 0
  %206 = vmatprep.subr.bf16.mxu0 0
  %207 = vmatpush2.bf16.msra.mxu0 0
  %208 = vmatprep.mubr.bf16.mxu0 0
  %209 = vmatmul.mubr.bf16.gmra.mxu0 %v53
  %v210 = vpop.f32.mrf.mxu0
  %v211 = vadd.f32 0.0, %v210
  %v212 = vpop.f32.mrf.mxu0
  %v213 = vpop.f32.mrf.mxu0
  %v214 = vadd.f32 0.0, %v213
  %v215 = vpop.f32.mrf.mxu0
  %216 = vmatprep.mubr.bf16.mxu0 0
  %217 = vmatmul.mubr.bf16.gmra.mxu0 %v56
  %v218 = vpop.f32.mrf.mxu0
  %v219 = vadd.f32 0.0, %v218
  %v220 = vpop.f32.mrf.mxu0
  %v221 = vpop.f32.mrf.mxu0
  %v222 = vpop.f32.mrf.mxu0
  %223 = vdwg.mxu0
  %224 = vst [vmem:[%s2] sm:$0xff] %v109
  %225 = vst [vmem:[%s2 + $0x8] sm:$0xff] %v111
  %226 = vst [vmem:[%s2 + $0x10] sm:$0xff] %v160
  %227 = vst [vmem:[%s2 + $0x18] sm:$0xff] %v162
  %vm228 = vcmask 523264
  %229 = vst.msk [vmem:[%s2 + $0x20] sm:$0xff] %vm228, %v211
  %230 = vst [vmem:[%s2 + $0x28] sm:$0xff] %v113
  %231 = vst [vmem:[%s2 + $0x30] sm:$0xff] %v115
  %232 = vst [vmem:[%s2 + $0x38] sm:$0xff] %v164
  %233 = vst [vmem:[%s2 + $0x40] sm:$0xff] %v166
  %234 = vst.msk [vmem:[%s2 + $0x48] sm:$0xff] %vm228, %v214
  %235 = vst [vmem:[%s2 + $0x50] sm:$0x3] %v119
  %236 = vst [vmem:[%s2 + $0x58] sm:$0x3] %v121
  %237 = vst [vmem:[%s2 + $0x60] sm:$0x3] %v170
  %238 = vst [vmem:[%s2 + $0x68] sm:$0x3] %v172
  %vm239 = vcmask 517120
  %240 = vst.msk [vmem:[%s2 + $0x70] sm:$0x3] %vm239, %v219
  // Predicated region
  $region10: #{forward.9} parent=0 // pred_check
    _
  $region11: #{forward.9} parent=0 // pred_check_branch
    %242 = sbr.rel (0) target = $region13
  $region12: #{forward.9} parent=0 // pred_region
    _
  $region13: #{forward.9} parent=0 // pred_fallthru
    _
  // Predicated region
  $region14: #{forward.9} parent=0 // pred_check
    _
  $region15: #{forward.9} parent=0 // pred_check_branch
    %244 = sbr.rel (0) target = $region17
  $region16: #{forward.9} parent=0 // pred_region
    _
  $region17: #{forward.9} parent=0 // pred_fallthru
    _

// kernel: forward.8
$region0: #{forward.8}
  #allocation0 [shape = 'u32[]', space=smem, size = 0x4, offset = 0x4, fixed_abs, tag = 'smem constant byte address 0x4 - core index']
  #allocation1 [shape = 'u32[144,128]{1,0:T(1,128)}', space=vmem, size = 0x12000, scoped, tag = 'internal scratch']
  %s0 = inlined_call_operand.vmem [shape: bf16[18,576], index: 0, kind: input, shape index: {}]
  %s1 = inlined_call_operand.vmem [shape: bf16[576,4], index: 1, kind: input, shape index: {}]
  %s2 = inlined_call_operand.vmem [shape: bf16[576,4], index: 2, kind: input, shape index: {}]
  %s3 = inlined_call_operand.vmem [shape: f32[1,4], index: 3, kind: input, shape index: {}]
  %s4 = inlined_call_operand.vmem [shape: f32[1,4], index: 4, kind: input, shape index: {}]
  %s5 = inlined_call_operand.vmem [shape: f32[18,4], index: 5, kind: input, shape index: {}]
  %s6 = inlined_call_operand.vmem [shape: f32[18,4], index: 6, kind: output, shape index: {0}]
  %s7 = inlined_call_operand.vmem [shape: f32[18,4], index: 7, kind: output, shape index: {1}]
  %s8 = inlined_call_operand.vmem [shape: f32[18,4], index: 8, kind: output, shape index: {2}]
  %9 = xla_tuple %s6, %s7, %s8
  %s10 = sld [smem:[#allocation0]]
  $region50: #{forward.8} parent=0
    _
  %s12 = ssub.s32 1, %s10
  %s13 = scalar_select 0, %s12, %s10
  // Predicated region
  $region2: #{forward.8} parent=0 // pred_check
    _
  $region3: #{forward.8} parent=0 // pred_check_branch
    %15 = sbr.rel (0) target = $region5
  $region4: #{forward.8} parent=0 // pred_region
    _
  $region5: #{forward.8} parent=0 // pred_fallthru
    _
  // Predicated region
  $region6: #{forward.8} parent=0 // pred_check
    _
  $region7: #{forward.8} parent=0 // pred_check_branch
    %17 = sbr.rel (0) target = $region9
  $region8: #{forward.8} parent=0 // pred_region
    _
  $region9: #{forward.8} parent=0 // pred_fallthru
    _
  // Predicated region
  $region10: #{forward.8} parent=0 // pred_check
    _
  $region11: #{forward.8} parent=0 // pred_check_branch
    %19 = sbr.rel (0) target = $region13
  $region12: #{forward.8} parent=0 // pred_region
    _
  $region13: #{forward.8} parent=0 // pred_fallthru
    _
  // Predicated region
  $region14: #{forward.8} parent=0 // pred_check
    _
  $region15: #{forward.8} parent=0 // pred_check_branch
    %21 = sbr.rel (0) target = $region17
  $region16: #{forward.8} parent=0 // pred_region
    _
  $region17: #{forward.8} parent=0 // pred_fallthru
    _
  // Predicated region
  $region18: #{forward.8} parent=0 // pred_check
    _
  $region19: #{forward.8} parent=0 // pred_check_branch
    %23 = sbr.rel (0) target = $region21
  $region20: #{forward.8} parent=0 // pred_region
    _
  $region21: #{forward.8} parent=0 // pred_fallthru
    _
  // Predicated region
  $region22: #{forward.8} parent=0 // pred_check
    _
  $region23: #{forward.8} parent=0 // pred_check_branch
    %25 = sbr.rel (0) target = $region25
  $region24: #{forward.8} parent=0 // pred_region
    _
  $region25: #{forward.8} parent=0 // pred_fallthru
    _
  %v27 = vld [vmem:[%s0] sm:$0xff]
  %v28 = vld [vmem:[%s0 + $0x8] sm:$0xff]
  %v29 = vld [vmem:[%s0 + $0x10] sm:$0xf]
  %v30 = vld [vmem:[%s0 + $0x14] sm:$0xff]
  %v31 = vld [vmem:[%s0 + $0x1c] sm:$0xff]
  %v32 = vld [vmem:[%s0 + $0x24] sm:$0xf]
  %v33 = vld [vmem:[%s0 + $0x28] sm:$0x11]
  %v34 = vld [vmem:[%s0 + $0x30] sm:$0x11]
  %v35 = vld [vmem:[%s0 + $0x38] sm:$0x1]
  %v36 = vld [vmem:[%s1] sm:$0xf]
  %v37 = vld [vmem:[%s1 + $0x4] sm:$0xf]
  %v38 = vld [vmem:[%s1 + $0x8] sm:$0xf]
  %v39 = vld [vmem:[%s1 + $0xc] sm:$0xf]
  %v40 = vld [vmem:[%s1 + $0x10] sm:$0xf]
  %v41 = vld [vmem:[%s1 + $0x14] sm:$0xf]
  %v42 = vld [vmem:[%s1 + $0x18] sm:$0xf]
  %v43 = vld [vmem:[%s1 + $0x1c] sm:$0xf]
  %v44 = vld [vmem:[%s1 + $0x20] sm:$0xf]
  %v45 = vld [vmem:[%s1 + $0x24] sm:$0xf]
  %v46 = vld [vmem:[%s1 + $0x28] sm:$0xf]
  %v47 = vld [vmem:[%s1 + $0x2c] sm:$0xf]
  %v48 = vld [vmem:[%s1 + $0x30] sm:$0xf]
  %v49 = vld [vmem:[%s1 + $0x34] sm:$0xf]
  %v50 = vld [vmem:[%s1 + $0x38] sm:$0xf]
  %v51 = vld [vmem:[%s1 + $0x3c] sm:$0xf]
  %v52 = vld [vmem:[%s1 + $0x40] sm:$0xf]
  %v53 = vld [vmem:[%s1 + $0x44] sm:$0xf]
  %v54 = vld [vmem:[%s1 + $0x48] sm:$0xf]
  %v55 = vld [vmem:[%s1 + $0x4c] sm:$0xf]
  %v56 = vld [vmem:[%s1 + $0x50] sm:$0xf]
  %v57 = vld [vmem:[%s1 + $0x54] sm:$0xf]
  %v58 = vld [vmem:[%s1 + $0x58] sm:$0xf]
  %v59 = vld [vmem:[%s1 + $0x5c] sm:$0xf]
  %v60 = vld [vmem:[%s1 + $0x60] sm:$0xf]
  %v61 = vld [vmem:[%s1 + $0x64] sm:$0xf]
  %v62 = vld [vmem:[%s1 + $0x68] sm:$0xf]
  %v63 = vld [vmem:[%s1 + $0x6c] sm:$0xf]
  %v64 = vld [vmem:[%s1 + $0x70] sm:$0xf]
  %v65 = vld [vmem:[%s1 + $0x74] sm:$0xf]
  %v66 = vld [vmem:[%s1 + $0x78] sm:$0xf]
  %v67 = vld [vmem:[%s1 + $0x7c] sm:$0xf]
  %v68 = vld [vmem:[%s1 + $0x80] sm:$0xf]
  %v69 = vld [vmem:[%s1 + $0x84] sm:$0xf]
  %v70 = vld [vmem:[%s1 + $0x88] sm:$0xf]
  %v71 = vld [vmem:[%s1 + $0x8c] sm:$0xf]
  %v72 = vld [vmem:[%s1 + $0x90] sm:$0xf]
  %v73 = vld [vmem:[%s1 + $0x94] sm:$0xf]
  %v74 = vld [vmem:[%s1 + $0x98] sm:$0xf]
  %v75 = vld [vmem:[%s1 + $0x9c] sm:$0xf]
  %v76 = vld [vmem:[%s1 + $0xa0] sm:$0xf]
  %v77 = vld [vmem:[%s1 + $0xa4] sm:$0xf]
  %v78 = vld [vmem:[%s1 + $0xa8] sm:$0xf]
  %v79 = vld [vmem:[%s1 + $0xac] sm:$0xf]
  %v80 = vld [vmem:[%s1 + $0xb0] sm:$0xf]
  %v81 = vld [vmem:[%s1 + $0xb4] sm:$0xf]
  %v82 = vld [vmem:[%s1 + $0xb8] sm:$0xf]
  %v83 = vld [vmem:[%s1 + $0xbc] sm:$0xf]
  %v84 = vld [vmem:[%s1 + $0xc0] sm:$0xf]
  %v85 = vld [vmem:[%s1 + $0xc4] sm:$0xf]
  %v86 = vld [vmem:[%s1 + $0xc8] sm:$0xf]
  %v87 = vld [vmem:[%s1 + $0xcc] sm:$0xf]
  %v88 = vld [vmem:[%s1 + $0xd0] sm:$0xf]
  %v89 = vld [vmem:[%s1 + $0xd4] sm:$0xf]
  %v90 = vld [vmem:[%s1 + $0xd8] sm:$0xf]
  %v91 = vld [vmem:[%s1 + $0xdc] sm:$0xf]
  %v92 = vld [vmem:[%s1 + $0xe0] sm:$0xf]
  %v93 = vld [vmem:[%s1 + $0xe4] sm:$0xf]
  %v94 = vld [vmem:[%s1 + $0xe8] sm:$0xf]
  %v95 = vld [vmem:[%s1 + $0xec] sm:$0xf]
  %v96 = vld [vmem:[%s1 + $0xf0] sm:$0xf]
  %v97 = vld [vmem:[%s1 + $0xf4] sm:$0xf]
  %v98 = vld [vmem:[%s1 + $0xf8] sm:$0xf]
  %v99 = vld [vmem:[%s1 + $0xfc] sm:$0xf]
  %v100 = vld [vmem:[%s1 + $0x100] sm:$0xf]
  %v101 = vld [vmem:[%s1 + $0x104] sm:$0xf]
  %v102 = vld [vmem:[%s1 + $0x108] sm:$0xf]
  %v103 = vld [vmem:[%s1 + $0x10c] sm:$0xf]
  %v104 = vld [vmem:[%s1 + $0x110] sm:$0xf]
  %v105 = vld [vmem:[%s1 + $0x114] sm:$0xf]
  %v106 = vld [vmem:[%s1 + $0x118] sm:$0xf]
  %v107 = vld [vmem:[%s1 + $0x11c] sm:$0xf]
  %v108 = vld [vmem:[%s3] sm:$0x1]
  %v110 = vlaneseq
  %v111 = vshrl.u32 %v110, 7
  %v112 = vsub.s32 0, %v111
  %v113 = vrot.slane %v108, %v112
  %v124 = vunpack.c.l.b16 %v27
  %v125 = vunpack.c.h.b16 %v27
  %v126 = vunpack.c.l.b16 %v28
  %v127 = vunpack.c.h.b16 %v28
  %v128 = vunpack.c.l.b16 %v29
  %v129 = vunpack.c.l.b16 %v30
  %v130 = vunpack.c.h.b16 %v30
  %v131 = vunpack.c.l.b16 %v31
  %v132 = vunpack.c.h.b16 %v31
  %v133 = vunpack.c.l.b16 %v32
  %v134 = vunpack.c.l.b16 %v33
  %v135 = vunpack.c.h.b16 %v33
  %v136 = vunpack.c.l.b16 %v34
  %v137 = vunpack.c.h.b16 %v34
  %v138 = vunpack.c.l.b16 %v35
  %v139 = vpack.c.b16 %v129, %v124
  %v140 = vpack.c.b16 %v130, %v125
  %v141 = vpack.c.b16 %v131, %v126
  %v142 = vpack.c.b16 %v132, %v127
  %v143 = vpack.c.b16 %v133, %v128
  %v144 = vpack.c.b16 %v134, %v134
  %v145 = vpack.c.b16 %v135, %v135
  %v146 = vpack.c.b16 %v136, %v136
  %v147 = vpack.c.b16 %v137, %v137
  %v148 = vpack.c.b16 %v138, %v138
  %v229 = vunpack.c.l.b16 %v36
  %v230 = vunpack.c.l.b16 %v37
  %v231 = vunpack.c.l.b16 %v38
  %v232 = vunpack.c.l.b16 %v39
  %v233 = vunpack.c.l.b16 %v40
  %v234 = vunpack.c.l.b16 %v41
  %v235 = vunpack.c.l.b16 %v42
  %v236 = vunpack.c.l.b16 %v43
  %v237 = vunpack.c.l.b16 %v44
  %v238 = vunpack.c.l.b16 %v45
  %v239 = vunpack.c.l.b16 %v46
  %v240 = vunpack.c.l.b16 %v47
  %v241 = vunpack.c.l.b16 %v48
  %v242 = vunpack.c.l.b16 %v49
  %v243 = vunpack.c.l.b16 %v50
  %v244 = vunpack.c.l.b16 %v51
  %v245 = vunpack.c.l.b16 %v52
  %v246 = vunpack.c.l.b16 %v53
  %v247 = vunpack.c.l.b16 %v54
  %v248 = vunpack.c.l.b16 %v55
  %v249 = vunpack.c.l.b16 %v56
  %v250 = vunpack.c.l.b16 %v57
  %v251 = vunpack.c.l.b16 %v58
  %v252 = vunpack.c.l.b16 %v59
  %v253 = vunpack.c.l.b16 %v60
  %v254 = vunpack.c.l.b16 %v61
  %v255 = vunpack.c.l.b16 %v62
  %v256 = vunpack.c.l.b16 %v63
  %v257 = vunpack.c.l.b16 %v64
  %v258 = vunpack.c.l.b16 %v65
  %v259 = vunpack.c.l.b16 %v66
  %v260 = vunpack.c.l.b16 %v67
  %v261 = vunpack.c.l.b16 %v68
  %v262 = vunpack.c.l.b16 %v69
  %v263 = vunpack.c.l.b16 %v70
  %v264 = vunpack.c.l.b16 %v71
  %v265 = vunpack.c.l.b16 %v72
  %v266 = vunpack.c.l.b16 %v73
  %v267 = vunpack.c.l.b16 %v74
  %v268 = vunpack.c.l.b16 %v75
  %v269 = vunpack.c.l.b16 %v76
  %v270 = vunpack.c.l.b16 %v77
  %v271 = vunpack.c.l.b16 %v78
  %v272 = vunpack.c.l.b16 %v79
  %v273 = vunpack.c.l.b16 %v80
  %v274 = vunpack.c.l.b16 %v81
  %v275 = vunpack.c.l.b16 %v82
  %v276 = vunpack.c.l.b16 %v83
  %v277 = vunpack.c.l.b16 %v84
  %v278 = vunpack.c.l.b16 %v85
  %v279 = vunpack.c.l.b16 %v86
  %v280 = vunpack.c.l.b16 %v87
  %v281 = vunpack.c.l.b16 %v88
  %v282 = vunpack.c.l.b16 %v89
  %v283 = vunpack.c.l.b16 %v90
  %v284 = vunpack.c.l.b16 %v91
  %v285 = vunpack.c.l.b16 %v92
  %v286 = vunpack.c.l.b16 %v93
  %v287 = vunpack.c.l.b16 %v94
  %v288 = vunpack.c.l.b16 %v95
  %v289 = vunpack.c.l.b16 %v96
  %v290 = vunpack.c.l.b16 %v97
  %v291 = vunpack.c.l.b16 %v98
  %v292 = vunpack.c.l.b16 %v99
  %v293 = vunpack.c.l.b16 %v100
  %v294 = vunpack.c.l.b16 %v101
  %v295 = vunpack.c.l.b16 %v102
  %v296 = vunpack.c.l.b16 %v103
  %v297 = vunpack.c.l.b16 %v104
  %v298 = vunpack.c.l.b16 %v105
  %v299 = vunpack.c.l.b16 %v106
  %v300 = vunpack.c.l.b16 %v107
  %v301 = vpack.c.b16 %v230, %v229
  %v302 = vpack.c.b16 %v232, %v231
  %v303 = vpack.c.b16 %v234, %v233
  %v304 = vpack.c.b16 %v236, %v235
  %v305 = vpack.c.b16 %v238, %v237
  %v306 = vpack.c.b16 %v240, %v239
  %v307 = vpack.c.b16 %v242, %v241
  %v308 = vpack.c.b16 %v244, %v243
  %v309 = vpack.c.b16 %v246, %v245
  %v310 = vpack.c.b16 %v248, %v247
  %v311 = vpack.c.b16 %v250, %v249
  %v312 = vpack.c.b16 %v252, %v251
  %v313 = vpack.c.b16 %v254, %v253
  %v314 = vpack.c.b16 %v256, %v255
  %v315 = vpack.c.b16 %v258, %v257
  %v316 = vpack.c.b16 %v260, %v259
  %v317 = vpack.c.b16 %v262, %v261
  %v318 = vpack.c.b16 %v264, %v263
  %v319 = vpack.c.b16 %v266, %v265
  %v320 = vpack.c.b16 %v268, %v267
  %v321 = vpack.c.b16 %v270, %v269
  %v322 = vpack.c.b16 %v272, %v271
  %v323 = vpack.c.b16 %v274, %v273
  %v324 = vpack.c.b16 %v276, %v275
  %v325 = vpack.c.b16 %v278, %v277
  %v326 = vpack.c.b16 %v280, %v279
  %v327 = vpack.c.b16 %v282, %v281
  %v328 = vpack.c.b16 %v284, %v283
  %v329 = vpack.c.b16 %v286, %v285
  %v330 = vpack.c.b16 %v288, %v287
  %v331 = vpack.c.b16 %v290, %v289
  %v332 = vpack.c.b16 %v292, %v291
  %v333 = vpack.c.b16 %v294, %v293
  %v334 = vpack.c.b16 %v296, %v295
  %v335 = vpack.c.b16 %v298, %v297
  %v336 = vpack.c.b16 %v300, %v299
  %vm373 = vcmask 523264
  %v375 = vsel %vm373, %v143, 0
  %v378 = vsel %vm373, %v148, 0
  %380 = vmatprep.subr.bf16.mxu0 0
  %381 = vmatpush1.bf16.msra.mxu0 %v308
  %382 = vmatprep.subr.bf16.mxu0 0
  %383 = vmatpush1.bf16.msra.mxu0 %v307
  %384 = vmatprep.subr.bf16.mxu0 0
  %385 = vmatpush1.bf16.msra.mxu0 %v306
  %386 = vmatprep.subr.bf16.mxu0 0
  %387 = vmatpush1.bf16.msra.mxu0 %v305
  %388 = vmatprep.subr.bf16.mxu0 0
  %389 = vmatpush1.bf16.msra.mxu0 %v304
  %390 = vmatprep.subr.bf16.mxu0 0
  %391 = vmatpush1.bf16.msra.mxu0 %v303
  %392 = vmatprep.subr.bf16.mxu0 0
  %393 = vmatpush1.bf16.msra.mxu0 %v302
  %394 = vmatprep.subr.bf16.mxu0 0
  %395 = vmatpush1.bf16.msra.mxu0 %v301
  %396 = vmatprep.subr.bf16.mxu0 0
  %397 = vmatpush2.bf16.msra.mxu0 %v316
  %398 = vmatprep.subr.bf16.mxu0 0
  %399 = vmatpush2.bf16.msra.mxu0 %v315
  %400 = vmatprep.subr.bf16.mxu0 0
  %401 = vmatpush2.bf16.msra.mxu0 %v314
  %402 = vmatprep.subr.bf16.mxu0 0
  %403 = vmatpush2.bf16.msra.mxu0 %v313
  %404 = vmatprep.subr.bf16.mxu0 0
  %405 = vmatpush2.bf16.msra.mxu0 %v312
  %406 = vmatprep.subr.bf16.mxu0 0
  %407 = vmatpush2.bf16.msra.mxu0 %v311
  %408 = vmatprep.subr.bf16.mxu0 0
  %409 = vmatpush2.bf16.msra.mxu0 %v310
  %410 = vmatprep.subr.bf16.mxu0 0
  %411 = vmatpush2.bf16.msra.mxu0 %v309
  %412 = vmatprep.mubr.bf16.mxu0 %v140
  %413 = vmatmul.mubr.bf16.gmra.mxu0 %v139
  %v414 = vpop.f32.mrf.mxu0
  %v415 = vadd.f32 %v113, %v414
  %v416 = vpop.f32.mrf.mxu0
  %v417 = vpop.f32.mrf.mxu0
  %v418 = vadd.f32 %v113, %v417
  %v419 = vpop.f32.mrf.mxu0
  %420 = vmatprep.mubr.bf16.mxu0 %v145
  %421 = vmatmul.mubr.bf16.gmra.mxu0 %v144
  %v422 = vpop.f32.mrf.mxu0
  %v423 = vadd.f32 %v113, %v422
  %v424 = vpop.f32.mrf.mxu0
  %v425 = vpop.f32.mrf.mxu0
  %v426 = vpop.f32.mrf.mxu0
  %427 = vdwg.mxu0
  %428 = vmatprep.subr.bf16.mxu0 0
  %429 = vmatpush1.bf16.msra.mxu0 %v324
  %430 = vmatprep.subr.bf16.mxu0 0
  %431 = vmatpush1.bf16.msra.mxu0 %v323
  %432 = vmatprep.subr.bf16.mxu0 0
  %433 = vmatpush1.bf16.msra.mxu0 %v322
  %434 = vmatprep.subr.bf16.mxu0 0
  %435 = vmatpush1.bf16.msra.mxu0 %v321
  %436 = vmatprep.subr.bf16.mxu0 0
  %437 = vmatpush1.bf16.msra.mxu0 %v320
  %438 = vmatprep.subr.bf16.mxu0 0
  %439 = vmatpush1.bf16.msra.mxu0 %v319
  %440 = vmatprep.subr.bf16.mxu0 0
  %441 = vmatpush1.bf16.msra.mxu0 %v318
  %442 = vmatprep.subr.bf16.mxu0 0
  %443 = vmatpush1.bf16.msra.mxu0 %v317
  %444 = vmatprep.subr.bf16.mxu0 0
  %445 = vmatpush2.bf16.msra.mxu0 %v332
  %446 = vmatprep.subr.bf16.mxu0 0
  %447 = vmatpush2.bf16.msra.mxu0 %v331
  %448 = vmatprep.subr.bf16.mxu0 0
  %449 = vmatpush2.bf16.msra.mxu0 %v330
  %450 = vmatprep.subr.bf16.mxu0 0
  %451 = vmatpush2.bf16.msra.mxu0 %v329
  %452 = vmatprep.subr.bf16.mxu0 0
  %453 = vmatpush2.bf16.msra.mxu0 %v328
  %454 = vmatprep.subr.bf16.mxu0 0
  %455 = vmatpush2.bf16.msra.mxu0 %v327
  %456 = vmatprep.subr.bf16.mxu0 0
  %457 = vmatpush2.bf16.msra.mxu0 %v326
  %458 = vmatprep.subr.bf16.mxu0 0
  %459 = vmatpush2.bf16.msra.mxu0 %v325
  %460 = vmatprep.mubr.bf16.mxu0 %v142
  %461 = vmatmul.mubr.bf16.gmra.mxu0 %v141
  %v462 = vpop.f32.mrf.mxu0
  %v463 = vadd.f32 %v415, %v462
  %v464 = vpop.f32.mrf.mxu0
  %v465 = vpop.f32.mrf.mxu0
  %v466 = vadd.f32 %v418, %v465
  %v467 = vpop.f32.mrf.mxu0
  %468 = vmatprep.mubr.bf16.mxu0 %v147
  %469 = vmatmul.mubr.bf16.gmra.mxu0 %v146
  %v470 = vpop.f32.mrf.mxu0
  %v471 = vadd.f32 %v423, %v470
  %v472 = vpop.f32.mrf.mxu0
  %v473 = vpop.f32.mrf.mxu0
  %v474 = vpop.f32.mrf.mxu0
  %475 = vdwg.mxu0
  %476 = vmatprep.subr.bf16.mxu0 0
  %477 = vmatpush1.bf16.msra.mxu0 0
  %478 = vmatprep.subr.bf16.mxu0 0
  %479 = vmatpush1.bf16.msra.mxu0 0
  %480 = vmatprep.subr.bf16.mxu0 0
  %481 = vmatpush1.bf16.msra.mxu0 0
  %482 = vmatprep.subr.bf16.mxu0 0
  %483 = vmatpush1.bf16.msra.mxu0 0
  %484 = vmatprep.subr.bf16.mxu0 0
  %485 = vmatpush1.bf16.msra.mxu0 %v336
  %486 = vmatprep.subr.bf16.mxu0 0
  %487 = vmatpush1.bf16.msra.mxu0 %v335
  %488 = vmatprep.subr.bf16.mxu0 0
  %489 = vmatpush1.bf16.msra.mxu0 %v334
  %490 = vmatprep.subr.bf16.mxu0 0
  %491 = vmatpush1.bf16.msra.mxu0 %v333
  %492 = vmatprep.subr.bf16.mxu0 0
  %493 = vmatpush2.bf16.msra.mxu0 0
  %494 = vmatprep.subr.bf16.mxu0 0
  %495 = vmatpush2.bf16.msra.mxu0 0
  %496 = vmatprep.subr.bf16.mxu0 0
  %497 = vmatpush2.bf16.msra.mxu0 0
  %498 = vmatprep.subr.bf16.mxu0 0
  %499 = vmatpush2.bf16.msra.mxu0 0
  %500 = vmatprep.subr.bf16.mxu0 0
  %501 = vmatpush2.bf16.msra.mxu0 0
  %502 = vmatprep.subr.bf16.mxu0 0
  %503 = vmatpush2.bf16.msra.mxu0 0
  %504 = vmatprep.subr.bf16.mxu0 0
  %505 = vmatpush2.bf16.msra.mxu0 0
  %506 = vmatprep.subr.bf16.mxu0 0
  %507 = vmatpush2.bf16.msra.mxu0 0
  %508 = vmatprep.mubr.bf16.mxu0 0
  %509 = vmatmul.mubr.bf16.gmra.mxu0 %v375
  %v510 = vpop.f32.mrf.mxu0
  %v511 = vadd.f32 %v463, %v510
  %v512 = vpop.f32.mrf.mxu0
  %v513 = vpop.f32.mrf.mxu0
  %v514 = vadd.f32 %v466, %v513
  %v515 = vpop.f32.mrf.mxu0
  %516 = vmatprep.mubr.bf16.mxu0 0
  %517 = vmatmul.mubr.bf16.gmra.mxu0 %v378
  %v518 = vpop.f32.mrf.mxu0
  %v519 = vadd.f32 %v471, %v518
  %v520 = vpop.f32.mrf.mxu0
  %v521 = vpop.f32.mrf.mxu0
  %v522 = vpop.f32.mrf.mxu0
  %523 = vdwg.mxu0
  %v524 = vld [vmem:[%s2] sm:$0xf]
  %v525 = vld [vmem:[%s2 + $0x4] sm:$0xf]
  %v526 = vld [vmem:[%s2 + $0x8] sm:$0xf]
  %v527 = vld [vmem:[%s2 + $0xc] sm:$0xf]
  %v528 = vld [vmem:[%s2 + $0x10] sm:$0xf]
  %v529 = vld [vmem:[%s2 + $0x14] sm:$0xf]
  %v530 = vld [vmem:[%s2 + $0x18] sm:$0xf]
  %v531 = vld [vmem:[%s2 + $0x1c] sm:$0xf]
  %v532 = vld [vmem:[%s2 + $0x20] sm:$0xf]
  %v533 = vld [vmem:[%s2 + $0x24] sm:$0xf]
  %v534 = vld [vmem:[%s2 + $0x28] sm:$0xf]
  %v535 = vld [vmem:[%s2 + $0x2c] sm:$0xf]
  %v536 = vld [vmem:[%s2 + $0x30] sm:$0xf]
  %v537 = vld [vmem:[%s2 + $0x34] sm:$0xf]
  %v538 = vld [vmem:[%s2 + $0x38] sm:$0xf]
  %v539 = vld [vmem:[%s2 + $0x3c] sm:$0xf]
  %v540 = vld [vmem:[%s2 + $0x40] sm:$0xf]
  %v541 = vld [vmem:[%s2 + $0x44] sm:$0xf]
  %v542 = vld [vmem:[%s2 + $0x48] sm:$0xf]
  %v543 = vld [vmem:[%s2 + $0x4c] sm:$0xf]
  %v544 = vld [vmem:[%s2 + $0x50] sm:$0xf]
  %v545 = vld [vmem:[%s2 + $0x54] sm:$0xf]
  %v546 = vld [vmem:[%s2 + $0x58] sm:$0xf]
  %v547 = vld [vmem:[%s2 + $0x5c] sm:$0xf]
  %v548 = vld [vmem:[%s2 + $0x60] sm:$0xf]
  %v549 = vld [vmem:[%s2 + $0x64] sm:$0xf]
  %v550 = vld [vmem:[%s2 + $0x68] sm:$0xf]
  %v551 = vld [vmem:[%s2 + $0x6c] sm:$0xf]
  %v552 = vld [vmem:[%s2 + $0x70] sm:$0xf]
  %v553 = vld [vmem:[%s2 + $0x74] sm:$0xf]
  %v554 = vld [vmem:[%s2 + $0x78] sm:$0xf]
  %v555 = vld [vmem:[%s2 + $0x7c] sm:$0xf]
  %v556 = vld [vmem:[%s2 + $0x80] sm:$0xf]
  %v557 = vld [vmem:[%s2 + $0x84] sm:$0xf]
  %v558 = vld [vmem:[%s2 + $0x88] sm:$0xf]
  %v559 = vld [vmem:[%s2 + $0x8c] sm:$0xf]
  %v560 = vld [vmem:[%s2 + $0x90] sm:$0xf]
  %v561 = vld [vmem:[%s2 + $0x94] sm:$0xf]
  %v562 = vld [vmem:[%s2 + $0x98] sm:$0xf]
  %v563 = vld [vmem:[%s2 + $0x9c] sm:$0xf]
  %v564 = vld [vmem:[%s2 + $0xa0] sm:$0xf]
  %v565 = vld [vmem:[%s2 + $0xa4] sm:$0xf]
  %v566 = vld [vmem:[%s2 + $0xa8] sm:$0xf]
  %v567 = vld [vmem:[%s2 + $0xac] sm:$0xf]
  %v568 = vld [vmem:[%s2 + $0xb0] sm:$0xf]
  %v569 = vld [vmem:[%s2 + $0xb4] sm:$0xf]
  %v570 = vld [vmem:[%s2 + $0xb8] sm:$0xf]
  %v571 = vld [vmem:[%s2 + $0xbc] sm:$0xf]
  %v572 = vld [vmem:[%s2 + $0xc0] sm:$0xf]
  %v573 = vld [vmem:[%s2 + $0xc4] sm:$0xf]
  %v574 = vld [vmem:[%s2 + $0xc8] sm:$0xf]
  %v575 = vld [vmem:[%s2 + $0xcc] sm:$0xf]
  %v576 = vld [vmem:[%s2 + $0xd0] sm:$0xf]
  %v577 = vld [vmem:[%s2 + $0xd4] sm:$0xf]
  %v578 = vld [vmem:[%s2 + $0xd8] sm:$0xf]
  %v579 = vld [vmem:[%s2 + $0xdc] sm:$0xf]
  %v580 = vld [vmem:[%s2 + $0xe0] sm:$0xf]
  %v581 = vld [vmem:[%s2 + $0xe4] sm:$0xf]
  %v582 = vld [vmem:[%s2 + $0xe8] sm:$0xf]
  %v583 = vld [vmem:[%s2 + $0xec] sm:$0xf]
  %v584 = vld [vmem:[%s2 + $0xf0] sm:$0xf]
  %v585 = vld [vmem:[%s2 + $0xf4] sm:$0xf]
  %v586 = vld [vmem:[%s2 + $0xf8] sm:$0xf]
  %v587 = vld [vmem:[%s2 + $0xfc] sm:$0xf]
  %v588 = vld [vmem:[%s2 + $0x100] sm:$0xf]
  %v589 = vld [vmem:[%s2 + $0x104] sm:$0xf]
  %v590 = vld [vmem:[%s2 + $0x108] sm:$0xf]
  %v591 = vld [vmem:[%s2 + $0x10c] sm:$0xf]
  %v592 = vld [vmem:[%s2 + $0x110] sm:$0xf]
  %v593 = vld [vmem:[%s2 + $0x114] sm:$0xf]
  %v594 = vld [vmem:[%s2 + $0x118] sm:$0xf]
  %v595 = vld [vmem:[%s2 + $0x11c] sm:$0xf]
  %v596 = vld [vmem:[%s4] sm:$0x1]
  %v598 = vlaneseq
  %v599 = vshrl.u32 %v598, 7
  %v600 = vsub.s32 0, %v599
  %v601 = vrot.slane %v596, %v600
  %v675 = vunpack.c.l.b16 %v524
  %v676 = vunpack.c.l.b16 %v525
  %v677 = vunpack.c.l.b16 %v526
  %v678 = vunpack.c.l.b16 %v527
  %v679 = vunpack.c.l.b16 %v528
  %v680 = vunpack.c.l.b16 %v529
  %v681 = vunpack.c.l.b16 %v530
  %v682 = vunpack.c.l.b16 %v531
  %v683 = vunpack.c.l.b16 %v532
  %v684 = vunpack.c.l.b16 %v533
  %v685 = vunpack.c.l.b16 %v534
  %v686 = vunpack.c.l.b16 %v535
  %v687 = vunpack.c.l.b16 %v536
  %v688 = vunpack.c.l.b16 %v537
  %v689 = vunpack.c.l.b16 %v538
  %v690 = vunpack.c.l.b16 %v539
  %v691 = vunpack.c.l.b16 %v540
  %v692 = vunpack.c.l.b16 %v541
  %v693 = vunpack.c.l.b16 %v542
  %v694 = vunpack.c.l.b16 %v543
  %v695 = vunpack.c.l.b16 %v544
  %v696 = vunpack.c.l.b16 %v545
  %v697 = vunpack.c.l.b16 %v546
  %v698 = vunpack.c.l.b16 %v547
  %v699 = vunpack.c.l.b16 %v548
  %v700 = vunpack.c.l.b16 %v549
  %v701 = vunpack.c.l.b16 %v550
  %v702 = vunpack.c.l.b16 %v551
  %v703 = vunpack.c.l.b16 %v552
  %v704 = vunpack.c.l.b16 %v553
  %v705 = vunpack.c.l.b16 %v554
  %v706 = vunpack.c.l.b16 %v555
  %v707 = vunpack.c.l.b16 %v556
  %v708 = vunpack.c.l.b16 %v557
  %v709 = vunpack.c.l.b16 %v558
  %v710 = vunpack.c.l.b16 %v559
  %v711 = vunpack.c.l.b16 %v560
  %v712 = vunpack.c.l.b16 %v561
  %v713 = vunpack.c.l.b16 %v562
  %v714 = vunpack.c.l.b16 %v563
  %v715 = vunpack.c.l.b16 %v564
  %v716 = vunpack.c.l.b16 %v565
  %v717 = vunpack.c.l.b16 %v566
  %v718 = vunpack.c.l.b16 %v567
  %v719 = vunpack.c.l.b16 %v568
  %v720 = vunpack.c.l.b16 %v569
  %v721 = vunpack.c.l.b16 %v570
  %v722 = vunpack.c.l.b16 %v571
  %v723 = vunpack.c.l.b16 %v572
  %v724 = vunpack.c.l.b16 %v573
  %v725 = vunpack.c.l.b16 %v574
  %v726 = vunpack.c.l.b16 %v575
  %v727 = vunpack.c.l.b16 %v576
  %v728 = vunpack.c.l.b16 %v577
  %v729 = vunpack.c.l.b16 %v578
  %v730 = vunpack.c.l.b16 %v579
  %v731 = vunpack.c.l.b16 %v580
  %v732 = vunpack.c.l.b16 %v581
  %v733 = vunpack.c.l.b16 %v582
  %v734 = vunpack.c.l.b16 %v583
  %v735 = vunpack.c.l.b16 %v584
  %v736 = vunpack.c.l.b16 %v585
  %v737 = vunpack.c.l.b16 %v586
  %v738 = vunpack.c.l.b16 %v587
  %v739 = vunpack.c.l.b16 %v588
  %v740 = vunpack.c.l.b16 %v589
  %v741 = vunpack.c.l.b16 %v590
  %v742 = vunpack.c.l.b16 %v591
  %v743 = vunpack.c.l.b16 %v592
  %v744 = vunpack.c.l.b16 %v593
  %v745 = vunpack.c.l.b16 %v594
  %v746 = vunpack.c.l.b16 %v595
  %v747 = vpack.c.b16 %v676, %v675
  %v748 = vpack.c.b16 %v678, %v677
  %v749 = vpack.c.b16 %v680, %v679
  %v750 = vpack.c.b16 %v682, %v681
  %v751 = vpack.c.b16 %v684, %v683
  %v752 = vpack.c.b16 %v686, %v685
  %v753 = vpack.c.b16 %v688, %v687
  %v754 = vpack.c.b16 %v690, %v689
  %v755 = vpack.c.b16 %v692, %v691
  %v756 = vpack.c.b16 %v694, %v693
  %v757 = vpack.c.b16 %v696, %v695
  %v758 = vpack.c.b16 %v698, %v697
  %v759 = vpack.c.b16 %v700, %v699
  %v760 = vpack.c.b16 %v702, %v701
  %v761 = vpack.c.b16 %v704, %v703
  %v762 = vpack.c.b16 %v706, %v705
  %v763 = vpack.c.b16 %v708, %v707
  %v764 = vpack.c.b16 %v710, %v709
  %v765 = vpack.c.b16 %v712, %v711
  %v766 = vpack.c.b16 %v714, %v713
  %v767 = vpack.c.b16 %v716, %v715
  %v768 = vpack.c.b16 %v718, %v717
  %v769 = vpack.c.b16 %v720, %v719
  %v770 = vpack.c.b16 %v722, %v721
  %v771 = vpack.c.b16 %v724, %v723
  %v772 = vpack.c.b16 %v726, %v725
  %v773 = vpack.c.b16 %v728, %v727
  %v774 = vpack.c.b16 %v730, %v729
  %v775 = vpack.c.b16 %v732, %v731
  %v776 = vpack.c.b16 %v734, %v733
  %v777 = vpack.c.b16 %v736, %v735
  %v778 = vpack.c.b16 %v738, %v737
  %v779 = vpack.c.b16 %v740, %v739
  %v780 = vpack.c.b16 %v742, %v741
  %v781 = vpack.c.b16 %v744, %v743
  %v782 = vpack.c.b16 %v746, %v745
  %819 = vmatprep.subr.bf16.mxu0 0
  %820 = vmatpush1.bf16.msra.mxu0 %v754
  %821 = vmatprep.subr.bf16.mxu0 0
  %822 = vmatpush1.bf16.msra.mxu0 %v753
  %823 = vmatprep.subr.bf16.mxu0 0
  %824 = vmatpush1.bf16.msra.mxu0 %v752
  %825 = vmatprep.subr.bf16.mxu0 0
  %826 = vmatpush1.bf16.msra.mxu0 %v751
  %827 = vmatprep.subr.bf16.mxu0 0
  %828 = vmatpush1.bf16.msra.mxu0 %v750
  %829 = vmatprep.subr.bf16.mxu0 0
  %830 = vmatpush1.bf16.msra.mxu0 %v749
  %831 = vmatprep.subr.bf16.mxu0 0
  %832 = vmatpush1.bf16.msra.mxu0 %v748
  %833 = vmatprep.subr.bf16.mxu0 0
  %834 = vmatpush1.bf16.msra.mxu0 %v747
  %835 = vmatprep.subr.bf16.mxu0 0
  %836 = vmatpush2.bf16.msra.mxu0 %v762
  %837 = vmatprep.subr.bf16.mxu0 0
  %838 = vmatpush2.bf16.msra.mxu0 %v761
  %839 = vmatprep.subr.bf16.mxu0 0
  %840 = vmatpush2.bf16.msra.mxu0 %v760
  %841 = vmatprep.subr.bf16.mxu0 0
  %842 = vmatpush2.bf16.msra.mxu0 %v759
  %843 = vmatprep.subr.bf16.mxu0 0
  %844 = vmatpush2.bf16.msra.mxu0 %v758
  %845 = vmatprep.subr.bf16.mxu0 0
  %846 = vmatpush2.bf16.msra.mxu0 %v757
  %847 = vmatprep.subr.bf16.mxu0 0
  %848 = vmatpush2.bf16.msra.mxu0 %v756
  %849 = vmatprep.subr.bf16.mxu0 0
  %850 = vmatpush2.bf16.msra.mxu0 %v755
  %851 = vmatprep.mubr.bf16.mxu0 %v140
  %852 = vmatmul.mubr.bf16.gmra.mxu0 %v139
  %v853 = vpop.f32.mrf.mxu0
  %v854 = vadd.f32 %v601, %v853
  %v855 = vpop.f32.mrf.mxu0
  %v856 = vpop.f32.mrf.mxu0
  %v857 = vadd.f32 %v601, %v856
  %v858 = vpop.f32.mrf.mxu0
  %859 = vmatprep.mubr.bf16.mxu0 %v145
  %860 = vmatmul.mubr.bf16.gmra.mxu0 %v144
  %v861 = vpop.f32.mrf.mxu0
  %v862 = vadd.f32 %v601, %v861
  %v863 = vpop.f32.mrf.mxu0
  %v864 = vpop.f32.mrf.mxu0
  %v865 = vpop.f32.mrf.mxu0
  %866 = vdwg.mxu0
  %867 = vmatprep.subr.bf16.mxu0 0
  %868 = vmatpush1.bf16.msra.mxu0 %v770
  %869 = vmatprep.subr.bf16.mxu0 0
  %870 = vmatpush1.bf16.msra.mxu0 %v769
  %871 = vmatprep.subr.bf16.mxu0 0
  %872 = vmatpush1.bf16.msra.mxu0 %v768
  %873 = vmatprep.subr.bf16.mxu0 0
  %874 = vmatpush1.bf16.msra.mxu0 %v767
  %875 = vmatprep.subr.bf16.mxu0 0
  %876 = vmatpush1.bf16.msra.mxu0 %v766
  %877 = vmatprep.subr.bf16.mxu0 0
  %878 = vmatpush1.bf16.msra.mxu0 %v765
  %879 = vmatprep.subr.bf16.mxu0 0
  %880 = vmatpush1.bf16.msra.mxu0 %v764
  %881 = vmatprep.subr.bf16.mxu0 0
  %882 = vmatpush1.bf16.msra.mxu0 %v763
  %883 = vmatprep.subr.bf16.mxu0 0
  %884 = vmatpush2.bf16.msra.mxu0 %v778
  %885 = vmatprep.subr.bf16.mxu0 0
  %886 = vmatpush2.bf16.msra.mxu0 %v777
  %887 = vmatprep.subr.bf16.mxu0 0
  %888 = vmatpush2.bf16.msra.mxu0 %v776
  %889 = vmatprep.subr.bf16.mxu0 0
  %890 = vmatpush2.bf16.msra.mxu0 %v775
  %891 = vmatprep.subr.bf16.mxu0 0
  %892 = vmatpush2.bf16.msra.mxu0 %v774
  %893 = vmatprep.subr.bf16.mxu0 0
  %894 = vmatpush2.bf16.msra.mxu0 %v773
  %895 = vmatprep.subr.bf16.mxu0 0
  %896 = vmatpush2.bf16.msra.mxu0 %v772
  %897 = vmatprep.subr.bf16.mxu0 0
  %898 = vmatpush2.bf16.msra.mxu0 %v771
  %899 = vmatprep.mubr.bf16.mxu0 %v142
  %900 = vmatmul.mubr.bf16.gmra.mxu0 %v141
  %v901 = vpop.f32.mrf.mxu0
  %v902 = vadd.f32 %v854, %v901
  %v903 = vpop.f32.mrf.mxu0
  %v904 = vpop.f32.mrf.mxu0
  %v905 = vadd.f32 %v857, %v904
  %v906 = vpop.f32.mrf.mxu0
  %907 = vmatprep.mubr.bf16.mxu0 %v147
  %908 = vmatmul.mubr.bf16.gmra.mxu0 %v146
  %v909 = vpop.f32.mrf.mxu0
  %v910 = vadd.f32 %v862, %v909
  %v911 = vpop.f32.mrf.mxu0
  %v912 = vpop.f32.mrf.mxu0
  %v913 = vpop.f32.mrf.mxu0
  %914 = vdwg.mxu0
  %915 = vmatprep.subr.bf16.mxu0 0
  %916 = vmatpush1.bf16.msra.mxu0 0
  %917 = vmatprep.subr.bf16.mxu0 0
  %918 = vmatpush1.bf16.msra.mxu0 0
  %919 = vmatprep.subr.bf16.mxu0 0
  %920 = vmatpush1.bf16.msra.mxu0 0
  %921 = vmatprep.subr.bf16.mxu0 0
  %922 = vmatpush1.bf16.msra.mxu0 0
  %923 = vmatprep.subr.bf16.mxu0 0
  %924 = vmatpush1.bf16.msra.mxu0 %v782
  %925 = vmatprep.subr.bf16.mxu0 0
  %926 = vmatpush1.bf16.msra.mxu0 %v781
  %927 = vmatprep.subr.bf16.mxu0 0
  %928 = vmatpush1.bf16.msra.mxu0 %v780
  %929 = vmatprep.subr.bf16.mxu0 0
  %930 = vmatpush1.bf16.msra.mxu0 %v779
  %931 = vmatprep.subr.bf16.mxu0 0
  %932 = vmatpush2.bf16.msra.mxu0 0
  %933 = vmatprep.subr.bf16.mxu0 0
  %934 = vmatpush2.bf16.msra.mxu0 0
  %935 = vmatprep.subr.bf16.mxu0 0
  %936 = vmatpush2.bf16.msra.mxu0 0
  %937 = vmatprep.subr.bf16.mxu0 0
  %938 = vmatpush2.bf16.msra.mxu0 0
  %939 = vmatprep.subr.bf16.mxu0 0
  %940 = vmatpush2.bf16.msra.mxu0 0
  %941 = vmatprep.subr.bf16.mxu0 0
  %942 = vmatpush2.bf16.msra.mxu0 0
  %943 = vmatprep.subr.bf16.mxu0 0
  %944 = vmatpush2.bf16.msra.mxu0 0
  %945 = vmatprep.subr.bf16.mxu0 0
  %946 = vmatpush2.bf16.msra.mxu0 0
  %947 = vmatprep.mubr.bf16.mxu0 0
  %948 = vmatmul.mubr.bf16.gmra.mxu0 %v375
  %v949 = vpop.f32.mrf.mxu0
  %v950 = vadd.f32 %v902, %v949
  %v951 = vpop.f32.mrf.mxu0
  %v952 = vpop.f32.mrf.mxu0
  %v953 = vadd.f32 %v905, %v952
  %v954 = vpop.f32.mrf.mxu0
  %955 = vmatprep.mubr.bf16.mxu0 0
  %956 = vmatmul.mubr.bf16.gmra.mxu0 %v378
  %v957 = vpop.f32.mrf.mxu0
  %v958 = vadd.f32 %v910, %v957
  %v959 = vpop.f32.mrf.mxu0
  %v960 = vpop.f32.mrf.mxu0
  %v961 = vpop.f32.mrf.mxu0
  %962 = vdwg.mxu0
  %vm963 = vcmask 31744
  %964 = vst.msk [vmem:[%s6] sm:$0xff] %vm963, %v511
  %965 = vst.msk [vmem:[%s6 + $0x8] sm:$0xff] %vm963, %v514
  %vm966 = vcmask 25600
  %967 = vst.msk [vmem:[%s6 + $0x10] sm:$0x3] %vm966, %v519
  %968 = vst.msk [vmem:[%s7] sm:$0xff] %vm963, %v950
  %969 = vst.msk [vmem:[%s7 + $0x8] sm:$0xff] %vm963, %v953
  %970 = vst.msk [vmem:[%s7 + $0x10] sm:$0x3] %vm966, %v958
  %v971 = vld [vmem:[%s5] sm:$0xff]
  %v972 = vld [vmem:[%s5 + $0x8] sm:$0xff]
  %v973 = vld [vmem:[%s5 + $0x10] sm:$0x3]
  %v974 = vmul.f32 %v950, 0.5
  %v975 = vmul.f32 %v953, 0.5
  %v976 = vmul.f32 %v958, 0.5
  %v977 = vmul.f32 %v974, 1.442695
  %v978 = vpow.pop %v977
  %v979 = vmul.f32 %v975, 1.442695
  %v980 = vpow.pop %v979
  %v981 = vmul.f32 %v976, 1.442695
  %v982 = vpow.pop %v981
  %v983 = vmul.f32 %v971, %v978
  %v984 = vmul.f32 %v972, %v980
  %v985 = vmul.f32 %v973, %v982
  %v986 = vadd.f32 %v983, %v511
  %v987 = vadd.f32 %v984, %v514
  %v988 = vadd.f32 %v985, %v519
  %989 = vst.msk [vmem:[%s8] sm:$0xff] %vm963, %v986
  %990 = vst.msk [vmem:[%s8 + $0x8] sm:$0xff] %vm963, %v987
  %991 = vst.msk [vmem:[%s8 + $0x10] sm:$0x3] %vm966, %v988
  // Predicated region
  $region26: #{forward.8} parent=0 // pred_check
    _
  $region27: #{forward.8} parent=0 // pred_check_branch
    %993 = sbr.rel (0) target = $region29
  $region28: #{forward.8} parent=0 // pred_region
    _
  $region29: #{forward.8} parent=0 // pred_fallthru
    _
  // Predicated region
  $region30: #{forward.8} parent=0 // pred_check
    _
  $region31: #{forward.8} parent=0 // pred_check_branch
    %995 = sbr.rel (0) target = $region33
  $region32: #{forward.8} parent=0 // pred_region
    _
  $region33: #{forward.8} parent=0 // pred_fallthru
    _
  // Predicated region
  $region34: #{forward.8} parent=0 // pred_check
    _
  $region35: #{forward.8} parent=0 // pred_check_branch
    %997 = sbr.rel (0) target = $region37
  $region36: #{forward.8} parent=0 // pred_region
    _
  $region37: #{forward.8} parent=0 // pred_fallthru
    _
  // Predicated region
  $region38: #{forward.8} parent=0 // pred_check
    _
  $region39: #{forward.8} parent=0 // pred_check_branch
    %999 = sbr.rel (0) target = $region41
  $region40: #{forward.8} parent=0 // pred_region
    _
  $region41: #{forward.8} parent=0 // pred_fallthru
    _
  // Predicated region
  $region42: #{forward.8} parent=0 // pred_check
    _
  $region43: #{forward.8} parent=0 // pred_check_branch
    %1001 = sbr.rel (0) target = $region45
  $region44: #{forward.8} parent=0 // pred_region
    _
  $region45: #{forward.8} parent=0 // pred_fallthru
    _
  // Predicated region
  $region46: #{forward.8} parent=0 // pred_check
    _
  $region47: #{forward.8} parent=0 // pred_check_branch
    %1003 = sbr.rel (0) target = $region49
  $region48: #{forward.8} parent=0 // pred_region
    _
  $region49: #{forward.8} parent=0 // pred_fallthru
    _

// kernel: forward.10
$region0: #{forward.10}
  #allocation0 [shape = 'u32[]', space=smem, size = 0x4, offset = 0x4, fixed_abs, tag = 'smem constant byte address 0x4 - core index']
  #allocation1 [shape = 'u32[144,128]{1,0:T(1,128)}', space=vmem, size = 0x12000, scoped, tag = 'internal scratch']
  %s0 = inlined_call_operand.vmem [shape: bf16[98,64], index: 0, kind: input, shape index: {}]
  %s1 = inlined_call_operand.vmem [shape: bf16[64,1024], index: 1, kind: input, shape index: {}]
  %s2 = inlined_call_operand.vmem [shape: f32[98,1024], index: 2, kind: output, shape index: {}]
  %s3 = sld [smem:[#allocation0]]
  $region18: #{forward.10} parent=0
    _
  %s5 = ssub.s32 1, %s3
  %s6 = scalar_select 0, %s5, %s3
  // Predicated region
  $region2: #{forward.10} parent=0 // pred_check
    _
  $region3: #{forward.10} parent=0 // pred_check_branch
    %8 = sbr.rel (0) target = $region5
  $region4: #{forward.10} parent=0 // pred_region
    _
  $region5: #{forward.10} parent=0 // pred_fallthru
    _
  // Predicated region
  $region6: #{forward.10} parent=0 // pred_check
    _
  $region7: #{forward.10} parent=0 // pred_check_branch
    %10 = sbr.rel (0) target = $region9
  $region8: #{forward.10} parent=0 // pred_region
    _
  $region9: #{forward.10} parent=0 // pred_fallthru
    _
  %v12 = vld [vmem:[%s0] sm:$0xf]
  %v13 = vld [vmem:[%s0 + $0x4] sm:$0xf]
  %v14 = vld [vmem:[%s0 + $0x8] sm:$0xf]
  %v15 = vld [vmem:[%s0 + $0xc] sm:$0xf]
  %v16 = vld [vmem:[%s0 + $0x10] sm:$0xf]
  %v17 = vld [vmem:[%s0 + $0x14] sm:$0xf]
  %v18 = vld [vmem:[%s0 + $0x18] sm:$0xf]
  %v19 = vld [vmem:[%s0 + $0x1c] sm:$0xf]
  %v20 = vld [vmem:[%s0 + $0x20] sm:$0xf]
  %v21 = vld [vmem:[%s0 + $0x24] sm:$0xf]
  %v22 = vld [vmem:[%s0 + $0x28] sm:$0xf]
  %v23 = vld [vmem:[%s0 + $0x2c] sm:$0xf]
  %v24 = vld [vmem:[%s0 + $0x30] sm:$0x1]
  %v25 = vld [vmem:[%s1] sm:$0xff]
  %v26 = vld [vmem:[%s1 + $0x8] sm:$0xff]
  %v27 = vld [vmem:[%s1 + $0x10] sm:$0xff]
  %v28 = vld [vmem:[%s1 + $0x18] sm:$0xff]
  %v29 = vld [vmem:[%s1 + $0x20] sm:$0xff]
  %v30 = vld [vmem:[%s1 + $0x28] sm:$0xff]
  %v31 = vld [vmem:[%s1 + $0x30] sm:$0xff]
  %v32 = vld [vmem:[%s1 + $0x38] sm:$0xff]
  %v33 = vld [vmem:[%s1 + $0x40] sm:$0xff]
  %v34 = vld [vmem:[%s1 + $0x48] sm:$0xff]
  %v35 = vld [vmem:[%s1 + $0x50] sm:$0xff]
  %v36 = vld [vmem:[%s1 + $0x58] sm:$0xff]
  %v37 = vld [vmem:[%s1 + $0x60] sm:$0xff]
  %v38 = vld [vmem:[%s1 + $0x68] sm:$0xff]
  %v39 = vld [vmem:[%s1 + $0x70] sm:$0xff]
  %v40 = vld [vmem:[%s1 + $0x78] sm:$0xff]
  %v41 = vld [vmem:[%s1 + $0x80] sm:$0xff]
  %v42 = vld [vmem:[%s1 + $0x88] sm:$0xff]
  %v43 = vld [vmem:[%s1 + $0x90] sm:$0xff]
  %v44 = vld [vmem:[%s1 + $0x98] sm:$0xff]
  %v45 = vld [vmem:[%s1 + $0xa0] sm:$0xff]
  %v46 = vld [vmem:[%s1 + $0xa8] sm:$0xff]
  %v47 = vld [vmem:[%s1 + $0xb0] sm:$0xff]
  %v48 = vld [vmem:[%s1 + $0xb8] sm:$0xff]
  %v49 = vld [vmem:[%s1 + $0xc0] sm:$0xff]
  %v50 = vld [vmem:[%s1 + $0xc8] sm:$0xff]
  %v51 = vld [vmem:[%s1 + $0xd0] sm:$0xff]
  %v52 = vld [vmem:[%s1 + $0xd8] sm:$0xff]
  %v53 = vld [vmem:[%s1 + $0xe0] sm:$0xff]
  %v54 = vld [vmem:[%s1 + $0xe8] sm:$0xff]
  %v55 = vld [vmem:[%s1 + $0xf0] sm:$0xff]
  %v56 = vld [vmem:[%s1 + $0xf8] sm:$0xff]
  %v70 = vunpack.c.l.b16 %v12
  %v71 = vunpack.c.l.b16 %v13
  %v72 = vunpack.c.l.b16 %v14
  %v73 = vunpack.c.l.b16 %v15
  %v74 = vunpack.c.l.b16 %v16
  %v75 = vunpack.c.l.b16 %v17
  %v76 = vunpack.c.l.b16 %v18
  %v77 = vunpack.c.l.b16 %v19
  %v78 = vunpack.c.l.b16 %v20
  %v79 = vunpack.c.l.b16 %v21
  %v80 = vunpack.c.l.b16 %v22
  %v81 = vunpack.c.l.b16 %v23
  %v82 = vunpack.c.l.b16 %v24
  %v83 = vpack.c.b16 %v71, %v70
  %v84 = vpack.c.b16 %v73, %v72
  %v85 = vpack.c.b16 %v75, %v74
  %v86 = vpack.c.b16 %v77, %v76
  %v87 = vpack.c.b16 %v79, %v78
  %v88 = vpack.c.b16 %v81, %v80
  %v89 = vpack.c.b16 %v82, %v82
  %v122 = vunpack.c.l.b16 %v25
  %v123 = vunpack.c.h.b16 %v25
  %v124 = vunpack.c.l.b16 %v26
  %v125 = vunpack.c.h.b16 %v26
  %v126 = vunpack.c.l.b16 %v27
  %v127 = vunpack.c.h.b16 %v27
  %v128 = vunpack.c.l.b16 %v28
  %v129 = vunpack.c.h.b16 %v28
  %v130 = vunpack.c.l.b16 %v29
  %v131 = vunpack.c.h.b16 %v29
  %v132 = vunpack.c.l.b16 %v30
  %v133 = vunpack.c.h.b16 %v30
  %v134 = vunpack.c.l.b16 %v31
  %v135 = vunpack.c.h.b16 %v31
  %v136 = vunpack.c.l.b16 %v32
  %v137 = vunpack.c.h.b16 %v32
  %v138 = vunpack.c.l.b16 %v33
  %v139 = vunpack.c.h.b16 %v33
  %v140 = vunpack.c.l.b16 %v34
  %v141 = vunpack.c.h.b16 %v34
  %v142 = vunpack.c.l.b16 %v35
  %v143 = vunpack.c.h.b16 %v35
  %v144 = vunpack.c.l.b16 %v36
  %v145 = vunpack.c.h.b16 %v36
  %v146 = vunpack.c.l.b16 %v37
  %v147 = vunpack.c.h.b16 %v37
  %v148 = vunpack.c.l.b16 %v38
  %v149 = vunpack.c.h.b16 %v38
  %v150 = vunpack.c.l.b16 %v39
  %v151 = vunpack.c.h.b16 %v39
  %v152 = vunpack.c.l.b16 %v40
  %v153 = vunpack.c.h.b16 %v40
  %v154 = vunpack.c.l.b16 %v41
  %v155 = vunpack.c.h.b16 %v41
  %v156 = vunpack.c.l.b16 %v42
  %v157 = vunpack.c.h.b16 %v42
  %v158 = vunpack.c.l.b16 %v43
  %v159 = vunpack.c.h.b16 %v43
  %v160 = vunpack.c.l.b16 %v44
  %v161 = vunpack.c.h.b16 %v44
  %v162 = vunpack.c.l.b16 %v45
  %v163 = vunpack.c.h.b16 %v45
  %v164 = vunpack.c.l.b16 %v46
  %v165 = vunpack.c.h.b16 %v46
  %v166 = vunpack.c.l.b16 %v47
  %v167 = vunpack.c.h.b16 %v47
  %v168 = vunpack.c.l.b16 %v48
  %v169 = vunpack.c.h.b16 %v48
  %v170 = vunpack.c.l.b16 %v49
  %v171 = vunpack.c.h.b16 %v49
  %v172 = vunpack.c.l.b16 %v50
  %v173 = vunpack.c.h.b16 %v50
  %v174 = vunpack.c.l.b16 %v51
  %v175 = vunpack.c.h.b16 %v51
  %v176 = vunpack.c.l.b16 %v52
  %v177 = vunpack.c.h.b16 %v52
  %v178 = vunpack.c.l.b16 %v53
  %v179 = vunpack.c.h.b16 %v53
  %v180 = vunpack.c.l.b16 %v54
  %v181 = vunpack.c.h.b16 %v54
  %v182 = vunpack.c.l.b16 %v55
  %v183 = vunpack.c.h.b16 %v55
  %v184 = vunpack.c.l.b16 %v56
  %v185 = vunpack.c.h.b16 %v56
  %v186 = vpack.c.b16 %v130, %v122
  %v187 = vpack.c.b16 %v131, %v123
  %v188 = vpack.c.b16 %v132, %v124
  %v189 = vpack.c.b16 %v133, %v125
  %v190 = vpack.c.b16 %v134, %v126
  %v191 = vpack.c.b16 %v135, %v127
  %v192 = vpack.c.b16 %v136, %v128
  %v193 = vpack.c.b16 %v137, %v129
  %v194 = vpack.c.b16 %v146, %v138
  %v195 = vpack.c.b16 %v147, %v139
  %v196 = vpack.c.b16 %v148, %v140
  %v197 = vpack.c.b16 %v149, %v141
  %v198 = vpack.c.b16 %v150, %v142
  %v199 = vpack.c.b16 %v151, %v143
  %v200 = vpack.c.b16 %v152, %v144
  %v201 = vpack.c.b16 %v153, %v145
  %v202 = vpack.c.b16 %v162, %v154
  %v203 = vpack.c.b16 %v163, %v155
  %v204 = vpack.c.b16 %v164, %v156
  %v205 = vpack.c.b16 %v165, %v157
  %v206 = vpack.c.b16 %v166, %v158
  %v207 = vpack.c.b16 %v167, %v159
  %v208 = vpack.c.b16 %v168, %v160
  %v209 = vpack.c.b16 %v169, %v161
  %v210 = vpack.c.b16 %v178, %v170
  %v211 = vpack.c.b16 %v179, %v171
  %v212 = vpack.c.b16 %v180, %v172
  %v213 = vpack.c.b16 %v181, %v173
  %v214 = vpack.c.b16 %v182, %v174
  %v215 = vpack.c.b16 %v183, %v175
  %v216 = vpack.c.b16 %v184, %v176
  %v217 = vpack.c.b16 %v185, %v177
  %vm250 = vcmask 523264
  %v252 = vsel %vm250, %v83, 0
  %v255 = vsel %vm250, %v84, 0
  %v258 = vsel %vm250, %v85, 0
  %v261 = vsel %vm250, %v86, 0
  %v264 = vsel %vm250, %v87, 0
  %v267 = vsel %vm250, %v88, 0
  %v270 = vsel %vm250, %v89, 0
  %272 = vmatprep.subr.bf16.mxu0 0
  %273 = vmatpush1.bf16.msra.mxu0 0
  %274 = vmatprep.subr.bf16.mxu0 0
  %275 = vmatpush1.bf16.msra.mxu0 0
  %276 = vmatprep.subr.bf16.mxu0 0
  %277 = vmatpush1.bf16.msra.mxu0 0
  %278 = vmatprep.subr.bf16.mxu0 0
  %279 = vmatpush1.bf16.msra.mxu0 0
  %280 = vmatprep.subr.bf16.mxu0 %v211
  %281 = vmatpush1.bf16.msra.mxu0 %v210
  %282 = vmatprep.subr.bf16.mxu0 %v203
  %283 = vmatpush1.bf16.msra.mxu0 %v202
  %284 = vmatprep.subr.bf16.mxu0 %v195
  %285 = vmatpush1.bf16.msra.mxu0 %v194
  %286 = vmatprep.subr.bf16.mxu0 %v187
  %287 = vmatpush1.bf16.msra.mxu0 %v186
  %288 = vmatprep.subr.bf16.mxu0 0
  %289 = vmatpush2.bf16.msra.mxu0 0
  %290 = vmatprep.subr.bf16.mxu0 0
  %291 = vmatpush2.bf16.msra.mxu0 0
  %292 = vmatprep.subr.bf16.mxu0 0
  %293 = vmatpush2.bf16.msra.mxu0 0
  %294 = vmatprep.subr.bf16.mxu0 0
  %295 = vmatpush2.bf16.msra.mxu0 0
  %296 = vmatprep.subr.bf16.mxu0 0
  %297 = vmatpush2.bf16.msra.mxu0 0
  %298 = vmatprep.subr.bf16.mxu0 0
  %299 = vmatpush2.bf16.msra.mxu0 0
  %300 = vmatprep.subr.bf16.mxu0 0
  %301 = vmatpush2.bf16.msra.mxu0 0
  %302 = vmatprep.subr.bf16.mxu0 0
  %303 = vmatpush2.bf16.msra.mxu0 0
  %304 = vmatprep.mubr.bf16.mxu0 0
  %305 = vmatmul.mubr.bf16.gmra.mxu0 %v252
  %v306 = vpop.f32.mrf.mxu0
  %v307 = vadd.f32 0.0, %v306
  %v308 = vpop.f32.mrf.mxu0
  %v309 = vadd.f32 0.0, %v308
  %v310 = vpop.f32.mrf.mxu0
  %v311 = vadd.f32 0.0, %v310
  %v312 = vpop.f32.mrf.mxu0
  %v313 = vadd.f32 0.0, %v312
  %314 = vmatprep.mubr.bf16.mxu0 0
  %315 = vmatmul.mubr.bf16.gmra.mxu0 %v255
  %v316 = vpop.f32.mrf.mxu0
  %v317 = vadd.f32 0.0, %v316
  %v318 = vpop.f32.mrf.mxu0
  %v319 = vadd.f32 0.0, %v318
  %v320 = vpop.f32.mrf.mxu0
  %v321 = vadd.f32 0.0, %v320
  %v322 = vpop.f32.mrf.mxu0
  %v323 = vadd.f32 0.0, %v322
  %324 = vmatprep.mubr.bf16.mxu0 0
  %325 = vmatmul.mubr.bf16.gmra.mxu0 %v258
  %v326 = vpop.f32.mrf.mxu0
  %v327 = vadd.f32 0.0, %v326
  %v328 = vpop.f32.mrf.mxu0
  %v329 = vadd.f32 0.0, %v328
  %v330 = vpop.f32.mrf.mxu0
  %v331 = vadd.f32 0.0, %v330
  %v332 = vpop.f32.mrf.mxu0
  %v333 = vadd.f32 0.0, %v332
  %334 = vmatprep.mubr.bf16.mxu0 0
  %335 = vmatmul.mubr.bf16.gmra.mxu0 %v261
  %v336 = vpop.f32.mrf.mxu0
  %v337 = vadd.f32 0.0, %v336
  %v338 = vpop.f32.mrf.mxu0
  %v339 = vadd.f32 0.0, %v338
  %v340 = vpop.f32.mrf.mxu0
  %v341 = vadd.f32 0.0, %v340
  %v342 = vpop.f32.mrf.mxu0
  %v343 = vadd.f32 0.0, %v342
  %344 = vmatprep.mubr.bf16.mxu0 0
  %345 = vmatmul.mubr.bf16.gmra.mxu0 %v264
  %v346 = vpop.f32.mrf.mxu0
  %v347 = vadd.f32 0.0, %v346
  %v348 = vpop.f32.mrf.mxu0
  %v349 = vadd.f32 0.0, %v348
  %v350 = vpop.f32.mrf.mxu0
  %v351 = vadd.f32 0.0, %v350
  %v352 = vpop.f32.mrf.mxu0
  %v353 = vadd.f32 0.0, %v352
  %354 = vmatprep.mubr.bf16.mxu0 0
  %355 = vmatmul.mubr.bf16.gmra.mxu0 %v267
  %v356 = vpop.f32.mrf.mxu0
  %v357 = vadd.f32 0.0, %v356
  %v358 = vpop.f32.mrf.mxu0
  %v359 = vadd.f32 0.0, %v358
  %v360 = vpop.f32.mrf.mxu0
  %v361 = vadd.f32 0.0, %v360
  %v362 = vpop.f32.mrf.mxu0
  %v363 = vadd.f32 0.0, %v362
  %364 = vmatprep.mubr.bf16.mxu0 0
  %365 = vmatmul.mubr.bf16.gmra.mxu0 %v270
  %v366 = vpop.f32.mrf.mxu0
  %v367 = vadd.f32 0.0, %v366
  %v368 = vpop.f32.mrf.mxu0
  %v369 = vadd.f32 0.0, %v368
  %v370 = vpop.f32.mrf.mxu0
  %v371 = vpop.f32.mrf.mxu0
  %372 = vdwg.mxu0
  %373 = vmatprep.subr.bf16.mxu0 0
  %374 = vmatpush1.bf16.msra.mxu0 0
  %375 = vmatprep.subr.bf16.mxu0 0
  %376 = vmatpush1.bf16.msra.mxu0 0
  %377 = vmatprep.subr.bf16.mxu0 0
  %378 = vmatpush1.bf16.msra.mxu0 0
  %379 = vmatprep.subr.bf16.mxu0 0
  %380 = vmatpush1.bf16.msra.mxu0 0
  %381 = vmatprep.subr.bf16.mxu0 %v213
  %382 = vmatpush1.bf16.msra.mxu0 %v212
  %383 = vmatprep.subr.bf16.mxu0 %v205
  %384 = vmatpush1.bf16.msra.mxu0 %v204
  %385 = vmatprep.subr.bf16.mxu0 %v197
  %386 = vmatpush1.bf16.msra.mxu0 %v196
  %387 = vmatprep.subr.bf16.mxu0 %v189
  %388 = vmatpush1.bf16.msra.mxu0 %v188
  %389 = vmatprep.subr.bf16.mxu0 0
  %390 = vmatpush2.bf16.msra.mxu0 0
  %391 = vmatprep.subr.bf16.mxu0 0
  %392 = vmatpush2.bf16.msra.mxu0 0
  %393 = vmatprep.subr.bf16.mxu0 0
  %394 = vmatpush2.bf16.msra.mxu0 0
  %395 = vmatprep.subr.bf16.mxu0 0
  %396 = vmatpush2.bf16.msra.mxu0 0
  %397 = vmatprep.subr.bf16.mxu0 0
  %398 = vmatpush2.bf16.msra.mxu0 0
  %399 = vmatprep.subr.bf16.mxu0 0
  %400 = vmatpush2.bf16.msra.mxu0 0
  %401 = vmatprep.subr.bf16.mxu0 0
  %402 = vmatpush2.bf16.msra.mxu0 0
  %403 = vmatprep.subr.bf16.mxu0 0
  %404 = vmatpush2.bf16.msra.mxu0 0
  %405 = vmatprep.mubr.bf16.mxu0 0
  %406 = vmatmul.mubr.bf16.gmra.mxu0 %v252
  %v407 = vpop.f32.mrf.mxu0
  %v408 = vadd.f32 0.0, %v407
  %v409 = vpop.f32.mrf.mxu0
  %v410 = vadd.f32 0.0, %v409
  %v411 = vpop.f32.mrf.mxu0
  %v412 = vadd.f32 0.0, %v411
  %v413 = vpop.f32.mrf.mxu0
  %v414 = vadd.f32 0.0, %v413
  %415 = vmatprep.mubr.bf16.mxu0 0
  %416 = vmatmul.mubr.bf16.gmra.mxu0 %v255
  %v417 = vpop.f32.mrf.mxu0
  %v418 = vadd.f32 0.0, %v417
  %v419 = vpop.f32.mrf.mxu0
  %v420 = vadd.f32 0.0, %v419
  %v421 = vpop.f32.mrf.mxu0
  %v422 = vadd.f32 0.0, %v421
  %v423 = vpop.f32.mrf.mxu0
  %v424 = vadd.f32 0.0, %v423
  %425 = vmatprep.mubr.bf16.mxu0 0
  %426 = vmatmul.mubr.bf16.gmra.mxu0 %v258
  %v427 = vpop.f32.mrf.mxu0
  %v428 = vadd.f32 0.0, %v427
  %v429 = vpop.f32.mrf.mxu0
  %v430 = vadd.f32 0.0, %v429
  %v431 = vpop.f32.mrf.mxu0
  %v432 = vadd.f32 0.0, %v431
  %v433 = vpop.f32.mrf.mxu0
  %v434 = vadd.f32 0.0, %v433
  %435 = vmatprep.mubr.bf16.mxu0 0
  %436 = vmatmul.mubr.bf16.gmra.mxu0 %v261
  %v437 = vpop.f32.mrf.mxu0
  %v438 = vadd.f32 0.0, %v437
  %v439 = vpop.f32.mrf.mxu0
  %v440 = vadd.f32 0.0, %v439
  %v441 = vpop.f32.mrf.mxu0
  %v442 = vadd.f32 0.0, %v441
  %v443 = vpop.f32.mrf.mxu0
  %v444 = vadd.f32 0.0, %v443
  %445 = vmatprep.mubr.bf16.mxu0 0
  %446 = vmatmul.mubr.bf16.gmra.mxu0 %v264
  %v447 = vpop.f32.mrf.mxu0
  %v448 = vadd.f32 0.0, %v447
  %v449 = vpop.f32.mrf.mxu0
  %v450 = vadd.f32 0.0, %v449
  %v451 = vpop.f32.mrf.mxu0
  %v452 = vadd.f32 0.0, %v451
  %v453 = vpop.f32.mrf.mxu0
  %v454 = vadd.f32 0.0, %v453
  %455 = vmatprep.mubr.bf16.mxu0 0
  %456 = vmatmul.mubr.bf16.gmra.mxu0 %v267
  %v457 = vpop.f32.mrf.mxu0
  %v458 = vadd.f32 0.0, %v457
  %v459 = vpop.f32.mrf.mxu0
  %v460 = vadd.f32 0.0, %v459
  %v461 = vpop.f32.mrf.mxu0
  %v462 = vadd.f32 0.0, %v461
  %v463 = vpop.f32.mrf.mxu0
  %v464 = vadd.f32 0.0, %v463
  %465 = vmatprep.mubr.bf16.mxu0 0
  %466 = vmatmul.mubr.bf16.gmra.mxu0 %v270
  %v467 = vpop.f32.mrf.mxu0
  %v468 = vadd.f32 0.0, %v467
  %v469 = vpop.f32.mrf.mxu0
  %v470 = vadd.f32 0.0, %v469
  %v471 = vpop.f32.mrf.mxu0
  %v472 = vpop.f32.mrf.mxu0
  %473 = vdwg.mxu0
  %474 = vmatprep.subr.bf16.mxu0 0
  %475 = vmatpush1.bf16.msra.mxu0 0
  %476 = vmatprep.subr.bf16.mxu0 0
  %477 = vmatpush1.bf16.msra.mxu0 0
  %478 = vmatprep.subr.bf16.mxu0 0
  %479 = vmatpush1.bf16.msra.mxu0 0
  %480 = vmatprep.subr.bf16.mxu0 0
  %481 = vmatpush1.bf16.msra.mxu0 0
  %482 = vmatprep.subr.bf16.mxu0 %v215
  %483 = vmatpush1.bf16.msra.mxu0 %v214
  %484 = vmatprep.subr.bf16.mxu0 %v207
  %485 = vmatpush1.bf16.msra.mxu0 %v206
  %486 = vmatprep.subr.bf16.mxu0 %v199
  %487 = vmatpush1.bf16.msra.mxu0 %v198
  %488 = vmatprep.subr.bf16.mxu0 %v191
  %489 = vmatpush1.bf16.msra.mxu0 %v190
  %490 = vmatprep.subr.bf16.mxu0 0
  %491 = vmatpush2.bf16.msra.mxu0 0
  %492 = vmatprep.subr.bf16.mxu0 0
  %493 = vmatpush2.bf16.msra.mxu0 0
  %494 = vmatprep.subr.bf16.mxu0 0
  %495 = vmatpush2.bf16.msra.mxu0 0
  %496 = vmatprep.subr.bf16.mxu0 0
  %497 = vmatpush2.bf16.msra.mxu0 0
  %498 = vmatprep.subr.bf16.mxu0 0
  %499 = vmatpush2.bf16.msra.mxu0 0
  %500 = vmatprep.subr.bf16.mxu0 0
  %501 = vmatpush2.bf16.msra.mxu0 0
  %502 = vmatprep.subr.bf16.mxu0 0
  %503 = vmatpush2.bf16.msra.mxu0 0
  %504 = vmatprep.subr.bf16.mxu0 0
  %505 = vmatpush2.bf16.msra.mxu0 0
  %506 = vmatprep.mubr.bf16.mxu0 0
  %507 = vmatmul.mubr.bf16.gmra.mxu0 %v252
  %v508 = vpop.f32.mrf.mxu0
  %v509 = vadd.f32 0.0, %v508
  %v510 = vpop.f32.mrf.mxu0
  %v511 = vadd.f32 0.0, %v510
  %v512 = vpop.f32.mrf.mxu0
  %v513 = vadd.f32 0.0, %v512
  %v514 = vpop.f32.mrf.mxu0
  %v515 = vadd.f32 0.0, %v514
  %516 = vmatprep.mubr.bf16.mxu0 0
  %517 = vmatmul.mubr.bf16.gmra.mxu0 %v255
  %v518 = vpop.f32.mrf.mxu0
  %v519 = vadd.f32 0.0, %v518
  %v520 = vpop.f32.mrf.mxu0
  %v521 = vadd.f32 0.0, %v520
  %v522 = vpop.f32.mrf.mxu0
  %v523 = vadd.f32 0.0, %v522
  %v524 = vpop.f32.mrf.mxu0
  %v525 = vadd.f32 0.0, %v524
  %526 = vmatprep.mubr.bf16.mxu0 0
  %527 = vmatmul.mubr.bf16.gmra.mxu0 %v258
  %v528 = vpop.f32.mrf.mxu0
  %v529 = vadd.f32 0.0, %v528
  %v530 = vpop.f32.mrf.mxu0
  %v531 = vadd.f32 0.0, %v530
  %v532 = vpop.f32.mrf.mxu0
  %v533 = vadd.f32 0.0, %v532
  %v534 = vpop.f32.mrf.mxu0
  %v535 = vadd.f32 0.0, %v534
  %536 = vmatprep.mubr.bf16.mxu0 0
  %537 = vmatmul.mubr.bf16.gmra.mxu0 %v261
  %v538 = vpop.f32.mrf.mxu0
  %v539 = vadd.f32 0.0, %v538
  %v540 = vpop.f32.mrf.mxu0
  %v541 = vadd.f32 0.0, %v540
  %v542 = vpop.f32.mrf.mxu0
  %v543 = vadd.f32 0.0, %v542
  %v544 = vpop.f32.mrf.mxu0
  %v545 = vadd.f32 0.0, %v544
  %546 = vmatprep.mubr.bf16.mxu0 0
  %547 = vmatmul.mubr.bf16.gmra.mxu0 %v264
  %v548 = vpop.f32.mrf.mxu0
  %v549 = vadd.f32 0.0, %v548
  %v550 = vpop.f32.mrf.mxu0
  %v551 = vadd.f32 0.0, %v550
  %v552 = vpop.f32.mrf.mxu0
  %v553 = vadd.f32 0.0, %v552
  %v554 = vpop.f32.mrf.mxu0
  %v555 = vadd.f32 0.0, %v554
  %556 = vmatprep.mubr.bf16.mxu0 0
  %557 = vmatmul.mubr.bf16.gmra.mxu0 %v267
  %v558 = vpop.f32.mrf.mxu0
  %v559 = vadd.f32 0.0, %v558
  %v560 = vpop.f32.mrf.mxu0
  %v561 = vadd.f32 0.0, %v560
  %v562 = vpop.f32.mrf.mxu0
  %v563 = vadd.f32 0.0, %v562
  %v564 = vpop.f32.mrf.mxu0
  %v565 = vadd.f32 0.0, %v564
  %566 = vmatprep.mubr.bf16.mxu0 0
  %567 = vmatmul.mubr.bf16.gmra.mxu0 %v270
  %v568 = vpop.f32.mrf.mxu0
  %v569 = vadd.f32 0.0, %v568
  %v570 = vpop.f32.mrf.mxu0
  %v571 = vadd.f32 0.0, %v570
  %v572 = vpop.f32.mrf.mxu0
  %v573 = vpop.f32.mrf.mxu0
  %574 = vdwg.mxu0
  %575 = vmatprep.subr.bf16.mxu0 0
  %576 = vmatpush1.bf16.msra.mxu0 0
  %577 = vmatprep.subr.bf16.mxu0 0
  %578 = vmatpush1.bf16.msra.mxu0 0
  %579 = vmatprep.subr.bf16.mxu0 0
  %580 = vmatpush1.bf16.msra.mxu0 0
  %581 = vmatprep.subr.bf16.mxu0 0
  %582 = vmatpush1.bf16.msra.mxu0 0
  %583 = vmatprep.subr.bf16.mxu0 %v217
  %584 = vmatpush1.bf16.msra.mxu0 %v216
  %585 = vmatprep.subr.bf16.mxu0 %v209
  %586 = vmatpush1.bf16.msra.mxu0 %v208
  %587 = vmatprep.subr.bf16.mxu0 %v201
  %588 = vmatpush1.bf16.msra.mxu0 %v200
  %589 = vmatprep.subr.bf16.mxu0 %v193
  %590 = vmatpush1.bf16.msra.mxu0 %v192
  %591 = vmatprep.subr.bf16.mxu0 0
  %592 = vmatpush2.bf16.msra.mxu0 0
  %593 = vmatprep.subr.bf16.mxu0 0
  %594 = vmatpush2.bf16.msra.mxu0 0
  %595 = vmatprep.subr.bf16.mxu0 0
  %596 = vmatpush2.bf16.msra.mxu0 0
  %597 = vmatprep.subr.bf16.mxu0 0
  %598 = vmatpush2.bf16.msra.mxu0 0
  %599 = vmatprep.subr.bf16.mxu0 0
  %600 = vmatpush2.bf16.msra.mxu0 0
  %601 = vmatprep.subr.bf16.mxu0 0
  %602 = vmatpush2.bf16.msra.mxu0 0
  %603 = vmatprep.subr.bf16.mxu0 0
  %604 = vmatpush2.bf16.msra.mxu0 0
  %605 = vmatprep.subr.bf16.mxu0 0
  %606 = vmatpush2.bf16.msra.mxu0 0
  %607 = vmatprep.mubr.bf16.mxu0 0
  %608 = vmatmul.mubr.bf16.gmra.mxu0 %v252
  %v609 = vpop.f32.mrf.mxu0
  %v610 = vadd.f32 0.0, %v609
  %v611 = vpop.f32.mrf.mxu0
  %v612 = vadd.f32 0.0, %v611
  %v613 = vpop.f32.mrf.mxu0
  %v614 = vadd.f32 0.0, %v613
  %v615 = vpop.f32.mrf.mxu0
  %v616 = vadd.f32 0.0, %v615
  %617 = vmatprep.mubr.bf16.mxu0 0
  %618 = vmatmul.mubr.bf16.gmra.mxu0 %v255
  %v619 = vpop.f32.mrf.mxu0
  %v620 = vadd.f32 0.0, %v619
  %v621 = vpop.f32.mrf.mxu0
  %v622 = vadd.f32 0.0, %v621
  %v623 = vpop.f32.mrf.mxu0
  %v624 = vadd.f32 0.0, %v623
  %v625 = vpop.f32.mrf.mxu0
  %v626 = vadd.f32 0.0, %v625
  %627 = vmatprep.mubr.bf16.mxu0 0
  %628 = vmatmul.mubr.bf16.gmra.mxu0 %v258
  %v629 = vpop.f32.mrf.mxu0
  %v630 = vadd.f32 0.0, %v629
  %v631 = vpop.f32.mrf.mxu0
  %v632 = vadd.f32 0.0, %v631
  %v633 = vpop.f32.mrf.mxu0
  %v634 = vadd.f32 0.0, %v633
  %v635 = vpop.f32.mrf.mxu0
  %v636 = vadd.f32 0.0, %v635
  %637 = vmatprep.mubr.bf16.mxu0 0
  %638 = vmatmul.mubr.bf16.gmra.mxu0 %v261
  %v639 = vpop.f32.mrf.mxu0
  %v640 = vadd.f32 0.0, %v639
  %v641 = vpop.f32.mrf.mxu0
  %v642 = vadd.f32 0.0, %v641
  %v643 = vpop.f32.mrf.mxu0
  %v644 = vadd.f32 0.0, %v643
  %v645 = vpop.f32.mrf.mxu0
  %v646 = vadd.f32 0.0, %v645
  %647 = vmatprep.mubr.bf16.mxu0 0
  %648 = vmatmul.mubr.bf16.gmra.mxu0 %v264
  %v649 = vpop.f32.mrf.mxu0
  %v650 = vadd.f32 0.0, %v649
  %v651 = vpop.f32.mrf.mxu0
  %v652 = vadd.f32 0.0, %v651
  %v653 = vpop.f32.mrf.mxu0
  %v654 = vadd.f32 0.0, %v653
  %v655 = vpop.f32.mrf.mxu0
  %v656 = vadd.f32 0.0, %v655
  %657 = vmatprep.mubr.bf16.mxu0 0
  %658 = vmatmul.mubr.bf16.gmra.mxu0 %v267
  %v659 = vpop.f32.mrf.mxu0
  %v660 = vadd.f32 0.0, %v659
  %v661 = vpop.f32.mrf.mxu0
  %v662 = vadd.f32 0.0, %v661
  %v663 = vpop.f32.mrf.mxu0
  %v664 = vadd.f32 0.0, %v663
  %v665 = vpop.f32.mrf.mxu0
  %v666 = vadd.f32 0.0, %v665
  %667 = vmatprep.mubr.bf16.mxu0 0
  %668 = vmatmul.mubr.bf16.gmra.mxu0 %v270
  %v669 = vpop.f32.mrf.mxu0
  %v670 = vadd.f32 0.0, %v669
  %v671 = vpop.f32.mrf.mxu0
  %v672 = vadd.f32 0.0, %v671
  %v673 = vpop.f32.mrf.mxu0
  %v674 = vpop.f32.mrf.mxu0
  %675 = vdwg.mxu0
  %676 = vst [vmem:[%s2] sm:$0xff] %v307
  %677 = vst [vmem:[%s2 + $0x8] sm:$0xff] %v309
  %678 = vst [vmem:[%s2 + $0x10] sm:$0xff] %v408
  %679 = vst [vmem:[%s2 + $0x18] sm:$0xff] %v410
  %680 = vst [vmem:[%s2 + $0x20] sm:$0xff] %v509
  %681 = vst [vmem:[%s2 + $0x28] sm:$0xff] %v511
  %682 = vst [vmem:[%s2 + $0x30] sm:$0xff] %v610
  %683 = vst [vmem:[%s2 + $0x38] sm:$0xff] %v612
  %684 = vst [vmem:[%s2 + $0x40] sm:$0xff] %v311
  %685 = vst [vmem:[%s2 + $0x48] sm:$0xff] %v313
  %686 = vst [vmem:[%s2 + $0x50] sm:$0xff] %v412
  %687 = vst [vmem:[%s2 + $0x58] sm:$0xff] %v414
  %688 = vst [vmem:[%s2 + $0x60] sm:$0xff] %v513
  %689 = vst [vmem:[%s2 + $0x68] sm:$0xff] %v515
  %690 = vst [vmem:[%s2 + $0x70] sm:$0xff] %v614
  %691 = vst [vmem:[%s2 + $0x78] sm:$0xff] %v616
  %692 = vst [vmem:[%s2 + $0x80] sm:$0xff] %v317
  %693 = vst [vmem:[%s2 + $0x88] sm:$0xff] %v319
  %694 = vst [vmem:[%s2 + $0x90] sm:$0xff] %v418
  %695 = vst [vmem:[%s2 + $0x98] sm:$0xff] %v420
  %696 = vst [vmem:[%s2 + $0xa0] sm:$0xff] %v519
  %697 = vst [vmem:[%s2 + $0xa8] sm:$0xff] %v521
  %698 = vst [vmem:[%s2 + $0xb0] sm:$0xff] %v620
  %699 = vst [vmem:[%s2 + $0xb8] sm:$0xff] %v622
  %700 = vst [vmem:[%s2 + $0xc0] sm:$0xff] %v321
  %701 = vst [vmem:[%s2 + $0xc8] sm:$0xff] %v323
  %702 = vst [vmem:[%s2 + $0xd0] sm:$0xff] %v422
  %703 = vst [vmem:[%s2 + $0xd8] sm:$0xff] %v424
  %704 = vst [vmem:[%s2 + $0xe0] sm:$0xff] %v523
  %705 = vst [vmem:[%s2 + $0xe8] sm:$0xff] %v525
  %706 = vst [vmem:[%s2 + $0xf0] sm:$0xff] %v624
  %707 = vst [vmem:[%s2 + $0xf8] sm:$0xff] %v626
  %708 = vst [vmem:[%s2 + $0x100] sm:$0xff] %v327
  %709 = vst [vmem:[%s2 + $0x108] sm:$0xff] %v329
  %710 = vst [vmem:[%s2 + $0x110] sm:$0xff] %v428
  %711 = vst [vmem:[%s2 + $0x118] sm:$0xff] %v430
  %712 = vst [vmem:[%s2 + $0x120] sm:$0xff] %v529
  %713 = vst [vmem:[%s2 + $0x128] sm:$0xff] %v531
  %714 = vst [vmem:[%s2 + $0x130] sm:$0xff] %v630
  %715 = vst [vmem:[%s2 + $0x138] sm:$0xff] %v632
  %716 = vst [vmem:[%s2 + $0x140] sm:$0xff] %v331
  %717 = vst [vmem:[%s2 + $0x148] sm:$0xff] %v333
  %718 = vst [vmem:[%s2 + $0x150] sm:$0xff] %v432
  %719 = vst [vmem:[%s2 + $0x158] sm:$0xff] %v434
  %720 = vst [vmem:[%s2 + $0x160] sm:$0xff] %v533
  %721 = vst [vmem:[%s2 + $0x168] sm:$0xff] %v535
  %722 = vst [vmem:[%s2 + $0x170] sm:$0xff] %v634
  %723 = vst [vmem:[%s2 + $0x178] sm:$0xff] %v636
  %724 = vst [vmem:[%s2 + $0x180] sm:$0xff] %v337
  %725 = vst [vmem:[%s2 + $0x188] sm:$0xff] %v339
  %726 = vst [vmem:[%s2 + $0x190] sm:$0xff] %v438
  %727 = vst [vmem:[%s2 + $0x198] sm:$0xff] %v440
  %728 = vst [vmem:[%s2 + $0x1a0] sm:$0xff] %v539
  %729 = vst [vmem:[%s2 + $0x1a8] sm:$0xff] %v541
  %730 = vst [vmem:[%s2 + $0x1b0] sm:$0xff] %v640
  %731 = vst [vmem:[%s2 + $0x1b8] sm:$0xff] %v642
  %732 = vst [vmem:[%s2 + $0x1c0] sm:$0xff] %v341
  %733 = vst [vmem:[%s2 + $0x1c8] sm:$0xff] %v343
  %734 = vst [vmem:[%s2 + $0x1d0] sm:$0xff] %v442
  %735 = vst [vmem:[%s2 + $0x1d8] sm:$0xff] %v444
  %736 = vst [vmem:[%s2 + $0x1e0] sm:$0xff] %v543
  %737 = vst [vmem:[%s2 + $0x1e8] sm:$0xff] %v545
  %738 = vst [vmem:[%s2 + $0x1f0] sm:$0xff] %v644
  %739 = vst [vmem:[%s2 + $0x1f8] sm:$0xff] %v646
  %740 = vst [vmem:[%s2 + $0x200] sm:$0xff] %v347
  %741 = vst [vmem:[%s2 + $0x208] sm:$0xff] %v349
  %742 = vst [vmem:[%s2 + $0x210] sm:$0xff] %v448
  %743 = vst [vmem:[%s2 + $0x218] sm:$0xff] %v450
  %744 = vst [vmem:[%s2 + $0x220] sm:$0xff] %v549
  %745 = vst [vmem:[%s2 + $0x228] sm:$0xff] %v551
  %746 = vst [vmem:[%s2 + $0x230] sm:$0xff] %v650
  %747 = vst [vmem:[%s2 + $0x238] sm:$0xff] %v652
  %748 = vst [vmem:[%s2 + $0x240] sm:$0xff] %v351
  %749 = vst [vmem:[%s2 + $0x248] sm:$0xff] %v353
  %750 = vst [vmem:[%s2 + $0x250] sm:$0xff] %v452
  %751 = vst [vmem:[%s2 + $0x258] sm:$0xff] %v454
  %752 = vst [vmem:[%s2 + $0x260] sm:$0xff] %v553
  %753 = vst [vmem:[%s2 + $0x268] sm:$0xff] %v555
  %754 = vst [vmem:[%s2 + $0x270] sm:$0xff] %v654
  %755 = vst [vmem:[%s2 + $0x278] sm:$0xff] %v656
  %756 = vst [vmem:[%s2 + $0x280] sm:$0xff] %v357
  %757 = vst [vmem:[%s2 + $0x288] sm:$0xff] %v359
  %758 = vst [vmem:[%s2 + $0x290] sm:$0xff] %v458
  %759 = vst [vmem:[%s2 + $0x298] sm:$0xff] %v460
  %760 = vst [vmem:[%s2 + $0x2a0] sm:$0xff] %v559
  %761 = vst [vmem:[%s2 + $0x2a8] sm:$0xff] %v561
  %762 = vst [vmem:[%s2 + $0x2b0] sm:$0xff] %v660
  %763 = vst [vmem:[%s2 + $0x2b8] sm:$0xff] %v662
  %764 = vst [vmem:[%s2 + $0x2c0] sm:$0xff] %v361
  %765 = vst [vmem:[%s2 + $0x2c8] sm:$0xff] %v363
  %766 = vst [vmem:[%s2 + $0x2d0] sm:$0xff] %v462
  %767 = vst [vmem:[%s2 + $0x2d8] sm:$0xff] %v464
  %768 = vst [vmem:[%s2 + $0x2e0] sm:$0xff] %v563
  %769 = vst [vmem:[%s2 + $0x2e8] sm:$0xff] %v565
  %770 = vst [vmem:[%s2 + $0x2f0] sm:$0xff] %v664
  %771 = vst [vmem:[%s2 + $0x2f8] sm:$0xff] %v666
  %772 = vst [vmem:[%s2 + $0x300] sm:$0x3] %v367
  %773 = vst [vmem:[%s2 + $0x308] sm:$0x3] %v369
  %774 = vst [vmem:[%s2 + $0x310] sm:$0x3] %v468
  %775 = vst [vmem:[%s2 + $0x318] sm:$0x3] %v470
  %776 = vst [vmem:[%s2 + $0x320] sm:$0x3] %v569
  %777 = vst [vmem:[%s2 + $0x328] sm:$0x3] %v571
  %778 = vst [vmem:[%s2 + $0x330] sm:$0x3] %v670
  %779 = vst [vmem:[%s2 + $0x338] sm:$0x3] %v672
  // Predicated region
  $region10: #{forward.10} parent=0 // pred_check
    _
  $region11: #{forward.10} parent=0 // pred_check_branch
    %781 = sbr.rel (0) target = $region13
  $region12: #{forward.10} parent=0 // pred_region
    _
  $region13: #{forward.10} parent=0 // pred_fallthru
    _
  // Predicated region
  $region14: #{forward.10} parent=0 // pred_check
    _
  $region15: #{forward.10} parent=0 // pred_check_branch
    %783 = sbr.rel (0) target = $region17
  $region16: #{forward.10} parent=0 // pred_region
    _
  $region17: #{forward.10} parent=0 // pred_fallthru
    _

// kernel: forward.11
$region0: #{forward.11}
  #allocation0 [shape = 'u32[]', space=smem, size = 0x4, offset = 0x4, fixed_abs, tag = 'smem constant byte address 0x4 - core index']
  #allocation1 [shape = 'u32[144,128]{1,0:T(1,128)}', space=vmem, size = 0x12000, scoped, tag = 'internal scratch']
  %s0 = inlined_call_operand.vmem [shape: bf16[512,64], index: 0, kind: input, shape index: {}]
  %s1 = inlined_call_operand.vmem [shape: bf16[64,16], index: 1, kind: input, shape index: {}]
  %s2 = inlined_call_operand.vmem [shape: f32[512,16], index: 2, kind: output, shape index: {}]
  %s3 = sld [smem:[#allocation0]]
  $region41: #{forward.11} parent=0
    _
  %s5 = ssub.s32 1, %s3
  %s6 = scalar_select 0, %s5, %s3
  loop: start=0, step=1, limit=6
  $region2: #{forward.11} parent=0 // loop_pre_header
    _
  $region3: #{forward.11} parent=0 // loop_header
    %s8 = sphi 0, %s12
    %p9 = scmp.ge.s32.totalorder %s8, 6
    %s18 = sphi 0, %s20
    %s21 = sphi 0, %s18
    %s22 = sphi 0, %s21
    %s38 = sphi 0, %s22
    %s42 = sphi 0, %s42
    %s44 = sphi 0, %s42
    %s45 = sphi 0, %s44
    %s59 = sphi 0, %s45
    %s65 = sphi 0, %s67
    %s68 = sphi 0, %s65
    %s69 = sphi 0, %s68
    %s85 = sphi 0, %s69
  $region4: #{forward.11} parent=0 // loop_header_branch
    %11 = sbr.rel (%p9) target = $region8
  $region5: #{forward.11} parent=0 // loop_body
    %s13 = ssub.s32 %s8, 1
    %s14 = ssub.s32 %s8, 2
    %s15 = sadd.s32 %s8, 1
    %s16 = ssub.s32 %s8, %s15
    %p17 = scmp.eq.s32.totalorder %s16, 0
    %s19 = sadd.s32 %s18, 1
    %s20 = scalar_select %p17, %s18, %s19
    %p23 = pneg %p17
    %p24 = scmp.eq.s32.totalorder %s8, 3
    %p25 = por %p23, %p24
    %p26 = scmp.ne.s32.totalorder %s18, %s21
    %p27 = scmp.eq.s32.totalorder %s8, 0
    %p28 = por %p26, %p27
    %p29 = scmp.ne.s32.totalorder %s18, %s21
    %p30 = scmp.eq.s32.totalorder %s13, 3
    %p31 = por %p29, %p30
    %p32 = scmp.ne.s32.totalorder %s21, %s22
    %p33 = scmp.eq.s32.totalorder %s13, 0
    %p34 = por %p32, %p33
    %p35 = scmp.ne.s32.totalorder %s21, %s22
    %p36 = scmp.eq.s32.totalorder %s14, 3
    %p37 = por %p35, %p36
    %p39 = scmp.ne.s32.totalorder %s22, %s38
    %p40 = scmp.eq.s32.totalorder %s14, 0
    %p41 = por %p39, %p40
    %s43 = sadd.s32 %s42, 1
    %p46 = scmp.eq.s32.totalorder %s8, 3
    %p47 = scmp.ne.s32.totalorder %s42, %s44
    %p48 = scmp.eq.s32.totalorder %s8, 0
    %p49 = por %p47, %p48
    %p50 = scmp.ne.s32.totalorder %s42, %s44
    %p51 = scmp.eq.s32.totalorder %s13, 3
    %p52 = por %p50, %p51
    %p53 = scmp.ne.s32.totalorder %s44, %s45
    %p54 = scmp.eq.s32.totalorder %s13, 0
    %p55 = por %p53, %p54
    %p56 = scmp.ne.s32.totalorder %s44, %s45
    %p57 = scmp.eq.s32.totalorder %s14, 3
    %p58 = por %p56, %p57
    %p60 = scmp.ne.s32.totalorder %s45, %s59
    %p61 = scmp.eq.s32.totalorder %s14, 0
    %p62 = por %p60, %p61
    %s63 = ssub.s32 %s8, %s15
    %p64 = scmp.eq.s32.totalorder %s63, 0
    %s66 = sadd.s32 %s65, 1
    %s67 = scalar_select %p64, %s65, %s66
    %p70 = pneg %p64
    %p71 = scmp.eq.s32.totalorder %s8, 3
    %p72 = por %p70, %p71
    %p73 = scmp.ne.s32.totalorder %s65, %s68
    %p74 = scmp.eq.s32.totalorder %s8, 0
    %p75 = por %p73, %p74
    %p76 = scmp.ne.s32.totalorder %s65, %s68
    %p77 = scmp.eq.s32.totalorder %s13, 3
    %p78 = por %p76, %p77
    %p79 = scmp.ne.s32.totalorder %s68, %s69
    %p80 = scmp.eq.s32.totalorder %s13, 0
    %p81 = por %p79, %p80
    %p82 = scmp.ne.s32.totalorder %s68, %s69
    %p83 = scmp.eq.s32.totalorder %s14, 3
    %p84 = por %p82, %p83
    %p86 = scmp.ne.s32.totalorder %s69, %s85
    %p87 = scmp.eq.s32.totalorder %s14, 0
    %p88 = por %p86, %p87
    %p89 = scmp.le.s32.totalorder 1, %s8
    %p90 = scmp.lt.s32.totalorder %s8, 5
    %p91 = pnand %p89, %p90
    %p92 = pneg %p91
    // Predicated region
    $region9: #{forward.11} parent=5 // pred_check
      _
    $region10: #{forward.11} parent=5 // pred_check_branch
      %94 = sbr.rel (%p91) target = $region12
    $region11: #{forward.11} parent=5 // pred_region
      %s95 = ssub.s32 %s8, 1
      // Predicated region
      $region13: #{forward.11} parent=11 // pred_check
        %p96 = pneg %p55
      $region14: #{forward.11} parent=11 // pred_check_branch
        %98 = sbr.rel (%p96) target = $region16
      $region15: #{forward.11} parent=11 // pred_region
        _
      $region16: #{forward.11} parent=11 // pred_fallthru
        _
    $region12: #{forward.11} parent=5 // pred_fallthru
      _
    %p99 = scmp.lt.s32.totalorder %s8, 4
    // Predicated region
    $region17: #{forward.11} parent=5 // pred_check
      %p100 = pneg %p99
    $region18: #{forward.11} parent=5 // pred_check_branch
      %102 = sbr.rel (%p100) target = $region20
    $region19: #{forward.11} parent=5 // pred_region
      // Predicated region
      $region21: #{forward.11} parent=19 // pred_check
        %p103 = pneg %p28
      $region22: #{forward.11} parent=19 // pred_check_branch
        %105 = sbr.rel (%p103) target = $region24
      $region23: #{forward.11} parent=19 // pred_region
        %s106 = smul.u32 16, %s8
        %p107 = scmp.lt.s32.totalorder %s106, 63
        %s108 = scalar_select %p107, %s106, 63
        %s109 = smul.addr %s108, 4
        %s110 = scalar_lea.vmem %s0, %s109
        %s111 = smul.u32 16, %s8
      $region24: #{forward.11} parent=19 // pred_fallthru
        _
    $region20: #{forward.11} parent=5 // pred_fallthru
      _
    %p112 = scmp.le.s32.totalorder 1, %s8
    %p113 = scmp.lt.s32.totalorder %s8, 5
    %p114 = pnand %p112, %p113
    %p115 = pneg %p114
    // Predicated region
    $region25: #{forward.11} parent=5 // pred_check
      _
    $region26: #{forward.11} parent=5 // pred_check_branch
      %117 = sbr.rel (%p114) target = $region28
    $region27: #{forward.11} parent=5 // pred_region
      %s118 = ssub.s32 %s8, 1
      %s119 = smul.u32 16, %s13
      %p120 = scmp.lt.s32.totalorder %s119, 63
      %s121 = scalar_select %p120, %s119, 63
      %s122 = smul.addr %s121, 4
      %s123 = scalar_lea.vmem %s0, %s122
      %p124 = pneg %p34
      %p125 = pneg %p31
      %p126 = pneg %p55
      %p127 = pneg %p52
      %p128 = pneg %p81
      %p129 = pneg %p78
      %s130 = smul.u32 16, %s13
      %p131 = scmp.lt.s32.totalorder %s130, 63
      %s132 = scalar_select %p131, %s130, 63
      %s133 = smul.addr %s132, 8
      %s134 = scalar_lea.vmem %s2, %s133
      %s135 = smul.u32 16, %s13
      %p136 = scmp.lt.s32.totalorder %s135, 63
      %s137 = scalar_select %p136, %s135, 63
      %s138 = smul.addr %s137, 4
      %s139 = scalar_lea.vmem %s0, %s138
      %s140 = smul.u32 16, %s13
      %s141 = smul.u32 16, %s13
      %p142 = scmp.lt.s32.totalorder %s141, 63
      %s143 = scalar_select %p142, %s141, 63
      %s144 = smul.addr %s143, 8
      %s145 = scalar_lea.vmem %s2, %s144
      %s146 = smul.u32 16, %s13
      %v148 = vld [vmem:[%s139] sm:$0xf]
      %v149 = vld [vmem:[%s139 + $0x4] sm:$0xf]
      %v150 = vld [vmem:[%s139 + $0x8] sm:$0xf]
      %v151 = vld [vmem:[%s139 + $0xc] sm:$0xf]
      %v152 = vld [vmem:[%s139 + $0x10] sm:$0xf]
      %v153 = vld [vmem:[%s139 + $0x14] sm:$0xf]
      %v154 = vld [vmem:[%s139 + $0x18] sm:$0xf]
      %v155 = vld [vmem:[%s139 + $0x1c] sm:$0xf]
      %v156 = vld [vmem:[%s139 + $0x20] sm:$0xf]
      %v157 = vld [vmem:[%s139 + $0x24] sm:$0xf]
      %v158 = vld [vmem:[%s139 + $0x28] sm:$0xf]
      %v159 = vld [vmem:[%s139 + $0x2c] sm:$0xf]
      %v160 = vld [vmem:[%s139 + $0x30] sm:$0xf]
      %v161 = vld [vmem:[%s139 + $0x34] sm:$0xf]
      %v162 = vld [vmem:[%s139 + $0x38] sm:$0xf]
      %v163 = vld [vmem:[%s139 + $0x3c] sm:$0xf]
      %v164 = vld [vmem:[%s1] sm:$0xf]
      %v165 = vld [vmem:[%s1 + $0x4] sm:$0xf]
      %v166 = vld [vmem:[%s1 + $0x8] sm:$0xf]
      %v167 = vld [vmem:[%s1 + $0xc] sm:$0xf]
      %v168 = vld [vmem:[%s1 + $0x10] sm:$0xf]
      %v169 = vld [vmem:[%s1 + $0x14] sm:$0xf]
      %v170 = vld [vmem:[%s1 + $0x18] sm:$0xf]
      %v171 = vld [vmem:[%s1 + $0x1c] sm:$0xf]
      %v188 = vunpack.c.l.b16 %v148
      %v189 = vunpack.c.l.b16 %v149
      %v190 = vunpack.c.l.b16 %v150
      %v191 = vunpack.c.l.b16 %v151
      %v192 = vunpack.c.l.b16 %v152
      %v193 = vunpack.c.l.b16 %v153
      %v194 = vunpack.c.l.b16 %v154
      %v195 = vunpack.c.l.b16 %v155
      %v196 = vunpack.c.l.b16 %v156
      %v197 = vunpack.c.l.b16 %v157
      %v198 = vunpack.c.l.b16 %v158
      %v199 = vunpack.c.l.b16 %v159
      %v200 = vunpack.c.l.b16 %v160
      %v201 = vunpack.c.l.b16 %v161
      %v202 = vunpack.c.l.b16 %v162
      %v203 = vunpack.c.l.b16 %v163
      %v204 = vpack.c.b16 %v189, %v188
      %v205 = vpack.c.b16 %v191, %v190
      %v206 = vpack.c.b16 %v193, %v192
      %v207 = vpack.c.b16 %v195, %v194
      %v208 = vpack.c.b16 %v197, %v196
      %v209 = vpack.c.b16 %v199, %v198
      %v210 = vpack.c.b16 %v201, %v200
      %v211 = vpack.c.b16 %v203, %v202
      %v220 = vunpack.c.l.b16 %v164
      %v221 = vunpack.c.l.b16 %v165
      %v222 = vunpack.c.l.b16 %v166
      %v223 = vunpack.c.l.b16 %v167
      %v224 = vunpack.c.l.b16 %v168
      %v225 = vunpack.c.l.b16 %v169
      %v226 = vunpack.c.l.b16 %v170
      %v227 = vunpack.c.l.b16 %v171
      %v228 = vpack.c.b16 %v221, %v220
      %v229 = vpack.c.b16 %v223, %v222
      %v230 = vpack.c.b16 %v225, %v224
      %v231 = vpack.c.b16 %v227, %v226
      %vm236 = vcmask 523264
      %v238 = vsel %vm236, %v204, 0
      %v241 = vsel %vm236, %v205, 0
      %v244 = vsel %vm236, %v206, 0
      %v247 = vsel %vm236, %v207, 0
      %v250 = vsel %vm236, %v208, 0
      %v253 = vsel %vm236, %v209, 0
      %v256 = vsel %vm236, %v210, 0
      %v259 = vsel %vm236, %v211, 0
      %261 = vmatprep.subr.bf16.mxu0 0
      %262 = vmatpush1.bf16.msra.mxu0 0
      %263 = vmatprep.subr.bf16.mxu0 0
      %264 = vmatpush1.bf16.msra.mxu0 0
      %265 = vmatprep.subr.bf16.mxu0 0
      %266 = vmatpush1.bf16.msra.mxu0 0
      %267 = vmatprep.subr.bf16.mxu0 0
      %268 = vmatpush1.bf16.msra.mxu0 0
      %269 = vmatprep.subr.bf16.mxu0 0
      %270 = vmatpush1.bf16.msra.mxu0 %v231
      %271 = vmatprep.subr.bf16.mxu0 0
      %272 = vmatpush1.bf16.msra.mxu0 %v230
      %273 = vmatprep.subr.bf16.mxu0 0
      %274 = vmatpush1.bf16.msra.mxu0 %v229
      %275 = vmatprep.subr.bf16.mxu0 0
      %276 = vmatpush1.bf16.msra.mxu0 %v228
      %277 = vmatprep.subr.bf16.mxu0 0
      %278 = vmatpush2.bf16.msra.mxu0 0
      %279 = vmatprep.subr.bf16.mxu0 0
      %280 = vmatpush2.bf16.msra.mxu0 0
      %281 = vmatprep.subr.bf16.mxu0 0
      %282 = vmatpush2.bf16.msra.mxu0 0
      %283 = vmatprep.subr.bf16.mxu0 0
      %284 = vmatpush2.bf16.msra.mxu0 0
      %285 = vmatprep.subr.bf16.mxu0 0
      %286 = vmatpush2.bf16.msra.mxu0 0
      %287 = vmatprep.subr.bf16.mxu0 0
      %288 = vmatpush2.bf16.msra.mxu0 0
      %289 = vmatprep.subr.bf16.mxu0 0
      %290 = vmatpush2.bf16.msra.mxu0 0
      %291 = vmatprep.subr.bf16.mxu0 0
      %292 = vmatpush2.bf16.msra.mxu0 0
      %293 = vmatprep.mubr.bf16.mxu0 0
      %294 = vmatmul.mubr.bf16.gmra.mxu0 %v238
      %v295 = vpop.f32.mrf.mxu0
      %v296 = vadd.f32 0.0, %v295
      %v297 = vpop.f32.mrf.mxu0
      %v298 = vpop.f32.mrf.mxu0
      %v299 = vadd.f32 0.0, %v298
      %v300 = vpop.f32.mrf.mxu0
      %301 = vmatprep.mubr.bf16.mxu0 0
      %302 = vmatmul.mubr.bf16.gmra.mxu0 %v241
      %v303 = vpop.f32.mrf.mxu0
      %v304 = vadd.f32 0.0, %v303
      %v305 = vpop.f32.mrf.mxu0
      %v306 = vpop.f32.mrf.mxu0
      %v307 = vadd.f32 0.0, %v306
      %v308 = vpop.f32.mrf.mxu0
      %309 = vmatprep.mubr.bf16.mxu0 0
      %310 = vmatmul.mubr.bf16.gmra.mxu0 %v244
      %v311 = vpop.f32.mrf.mxu0
      %v312 = vadd.f32 0.0, %v311
      %v313 = vpop.f32.mrf.mxu0
      %v314 = vpop.f32.mrf.mxu0
      %v315 = vadd.f32 0.0, %v314
      %v316 = vpop.f32.mrf.mxu0
      %317 = vmatprep.mubr.bf16.mxu0 0
      %318 = vmatmul.mubr.bf16.gmra.mxu0 %v247
      %v319 = vpop.f32.mrf.mxu0
      %v320 = vadd.f32 0.0, %v319
      %v321 = vpop.f32.mrf.mxu0
      %v322 = vpop.f32.mrf.mxu0
      %v323 = vadd.f32 0.0, %v322
      %v324 = vpop.f32.mrf.mxu0
      %325 = vmatprep.mubr.bf16.mxu0 0
      %326 = vmatmul.mubr.bf16.gmra.mxu0 %v250
      %v327 = vpop.f32.mrf.mxu0
      %v328 = vadd.f32 0.0, %v327
      %v329 = vpop.f32.mrf.mxu0
      %v330 = vpop.f32.mrf.mxu0
      %v331 = vadd.f32 0.0, %v330
      %v332 = vpop.f32.mrf.mxu0
      %333 = vmatprep.mubr.bf16.mxu0 0
      %334 = vmatmul.mubr.bf16.gmra.mxu0 %v253
      %v335 = vpop.f32.mrf.mxu0
      %v336 = vadd.f32 0.0, %v335
      %v337 = vpop.f32.mrf.mxu0
      %v338 = vpop.f32.mrf.mxu0
      %v339 = vadd.f32 0.0, %v338
      %v340 = vpop.f32.mrf.mxu0
      %341 = vmatprep.mubr.bf16.mxu0 0
      %342 = vmatmul.mubr.bf16.gmra.mxu0 %v256
      %v343 = vpop.f32.mrf.mxu0
      %v344 = vadd.f32 0.0, %v343
      %v345 = vpop.f32.mrf.mxu0
      %v346 = vpop.f32.mrf.mxu0
      %v347 = vadd.f32 0.0, %v346
      %v348 = vpop.f32.mrf.mxu0
      %349 = vmatprep.mubr.bf16.mxu0 0
      %350 = vmatmul.mubr.bf16.gmra.mxu0 %v259
      %v351 = vpop.f32.mrf.mxu0
      %v352 = vadd.f32 0.0, %v351
      %v353 = vpop.f32.mrf.mxu0
      %v354 = vpop.f32.mrf.mxu0
      %v355 = vadd.f32 0.0, %v354
      %v356 = vpop.f32.mrf.mxu0
      %357 = vdwg.mxu0
      %vm358 = vcmask 130048
      %359 = vst.msk [vmem:[%s145] sm:$0xff] %vm358, %v296
      %360 = vst.msk [vmem:[%s145 + $0x8] sm:$0xff] %vm358, %v299
      %361 = vst.msk [vmem:[%s145 + $0x10] sm:$0xff] %vm358, %v304
      %362 = vst.msk [vmem:[%s145 + $0x18] sm:$0xff] %vm358, %v307
      %363 = vst.msk [vmem:[%s145 + $0x20] sm:$0xff] %vm358, %v312
      %364 = vst.msk [vmem:[%s145 + $0x28] sm:$0xff] %vm358, %v315
      %365 = vst.msk [vmem:[%s145 + $0x30] sm:$0xff] %vm358, %v320
      %366 = vst.msk [vmem:[%s145 + $0x38] sm:$0xff] %vm358, %v323
      %367 = vst.msk [vmem:[%s145 + $0x40] sm:$0xff] %vm358, %v328
      %368 = vst.msk [vmem:[%s145 + $0x48] sm:$0xff] %vm358, %v331
      %369 = vst.msk [vmem:[%s145 + $0x50] sm:$0xff] %vm358, %v336
      %370 = vst.msk [vmem:[%s145 + $0x58] sm:$0xff] %vm358, %v339
      %371 = vst.msk [vmem:[%s145 + $0x60] sm:$0xff] %vm358, %v344
      %372 = vst.msk [vmem:[%s145 + $0x68] sm:$0xff] %vm358, %v347
      %373 = vst.msk [vmem:[%s145 + $0x70] sm:$0xff] %vm358, %v352
      %374 = vst.msk [vmem:[%s145 + $0x78] sm:$0xff] %vm358, %v355
      %s375 = smul.u32 16, %s13
      %p376 = scmp.lt.s32.totalorder %s375, 63
      %s377 = scalar_select %p376, %s375, 63
      %s378 = smul.addr %s377, 8
      %s379 = scalar_lea.vmem %s2, %s378
      // Predicated region
      $region29: #{forward.11} parent=27 // pred_check
        %p380 = pneg %p78
      $region30: #{forward.11} parent=27 // pred_check_branch
        %382 = sbr.rel (%p380) target = $region32
      $region31: #{forward.11} parent=27 // pred_region
        %s383 = smul.u32 16, %s13
      $region32: #{forward.11} parent=27 // pred_fallthru
        _
    $region28: #{forward.11} parent=5 // pred_fallthru
      _
    %p384 = scmp.le.s32.totalorder 2, %s8
    // Predicated region
    $region33: #{forward.11} parent=5 // pred_check
      %p385 = pneg %p384
    $region34: #{forward.11} parent=5 // pred_check_branch
      %387 = sbr.rel (%p385) target = $region36
    $region35: #{forward.11} parent=5 // pred_region
      %s388 = ssub.s32 %s8, 2
      // Predicated region
      $region37: #{forward.11} parent=35 // pred_check
        %p389 = pneg %p84
      $region38: #{forward.11} parent=35 // pred_check_branch
        %391 = sbr.rel (%p389) target = $region40
      $region39: #{forward.11} parent=35 // pred_region
        %s392 = smul.u32 16, %s14
        %p393 = scmp.lt.s32.totalorder %s392, 63
        %s394 = scalar_select %p393, %s392, 63
        %s395 = smul.addr %s394, 8
        %s396 = scalar_lea.vmem %s2, %s395
      $region40: #{forward.11} parent=35 // pred_fallthru
        _
    $region36: #{forward.11} parent=5 // pred_fallthru
      _
  $region6: #{forward.11} parent=0 // loop_footer
    %s12 = sadd.s32 1, %s8
  $region7: #{forward.11} parent=0 // loop_footer_branch
    %7 = sbr.rel target = $region3
  $region8: #{forward.11} parent=0 // loop_exit
    _

</llo_original>
